<compile_context>
chip_gen: v6e
topology: v6e:2x2x1
jax: 0.10.0
libtpu: 0.0.40
codegen_flags: <defaults>
</compile_context>

<pallas_src>
import functools

import jax
import jax.numpy as jnp
from jax.experimental import pallas as pl
from jax.experimental.pallas import tpu as pltpu


# ------------------------------------------------------------------ kernel ---
def _fused_attention_kernel(x_ref, wqkv_ref, wproj_ref, bproj_ref, o_ref,
                            *, num_heads, head_dim):
    # x_ref:     (B, N, C)   whole batch, single grid step
    # wqkv_ref:  (C, 3C)     pre-transposed (in, out); q columns pre-scaled
    # wproj_ref: (C, C)      pre-transposed
    # bproj_ref: (1, C)
    # o_ref:     (B, N, C)
    B, N, C = x_ref.shape
    x2d = x_ref[...].reshape(B * N, C)                               # merge leading dims

    # ---- single fused qkv projection (bias=False) --------------------------
    qkv = jnp.dot(x2d, wqkv_ref[...],
                  preferred_element_type=jnp.float32)                # (B*N, 3C)
    qkv = qkv.reshape(B, N, 3 * C)

    # ---- gather heads into one batched layout (H*B, N, hd) -----------------
    # Column layout matches torch reshape (B, N, 3, H, hd):
    #   [ q heads 0..H-1 | k heads 0..H-1 | v heads 0..H-1 ], hd cols each.
    q_heads, k_heads, v_heads = [], [], []
    for h in range(num_heads):
        lo = h * head_dim
        hi = lo + head_dim
        q_heads.append(qkv[:, :, lo:hi])                             # (B, N, hd)
        k_heads.append(qkv[:, :, C + lo:C + hi])
        v_heads.append(qkv[:, :, 2 * C + lo:2 * C + hi])
    q = jnp.stack(q_heads, axis=0).reshape(num_heads * B, N, head_dim)
    k = jnp.stack(k_heads, axis=0).reshape(num_heads * B, N, head_dim)
    v = jnp.stack(v_heads, axis=0).reshape(num_heads * B, N, head_dim)

    # ---- head-batched attention core: 2 batched matmuls + 1 f32 softmax ----
    # scale is already folded into q via the weights -> no `s * scale` here.
    s = jnp.einsum('bqd,bkd->bqk', q, k,
                   preferred_element_type=jnp.float32)               # (H*B, N, N)
    s = s - jnp.max(s, axis=-1, keepdims=True)
    p = jnp.exp(s)
    # Exact reciprocal keeps us within 1e-4 of the f32 reference; switch to
    # approx=True (EUP slot, ~free) if the tolerance is ever relaxed.
    p = p * pl.reciprocal(jnp.sum(p, axis=-1, keepdims=True), approx=False)
    o = jnp.einsum('bqk,bkd->bqd', p, v,
                   preferred_element_type=jnp.float32)               # (H*B, N, hd)

    # ---- reassemble heads along lanes -> (B, N, C) --------------------------
    o = o.reshape(num_heads, B, N, head_dim)
    attn_out = jnp.concatenate([o[h] for h in range(num_heads)], axis=-1)

    # ---- single output projection (bias=True) -------------------------------
    y = jnp.dot(attn_out.reshape(B * N, C), wproj_ref[...],
                preferred_element_type=jnp.float32) + bproj_ref[...]
    # Note (v5e): C=64 < 128 lanes -> masked stores; at production dims keep
    # the output last dim a multiple of 128 for unmasked full-width vst.
    o_ref[...] = y.reshape(B, N, C).astype(o_ref.dtype)


# ----------------------------------------------------- one-time param prep ---
def prepare_params(raw_params, num_heads):
    """Hoisted weight prep: transpose to (in, out), fold softmax scale into the
    q columns, reshape bias.  Call ONCE at parameter-initialization time."""
    w_qkv = raw_params["w_qkv"]        # (3C, C)  torch (out, in) layout
    w_proj = raw_params["w_proj"]      # (C, C)
    b_proj = raw_params["b_proj"]      # (C,)
    C = w_proj.shape[0]
    scale = (C // num_heads) ** (-0.5)
    wq_t = jnp.transpose(w_qkv[:C]) * scale          # (C, C), scale folded
    wk_t = jnp.transpose(w_qkv[C:2 * C])             # (C, C)
    wv_t = jnp.transpose(w_qkv[2 * C:])              # (C, C)
    return {
        "wqkv_t": jnp.concatenate([wq_t, wk_t, wv_t], axis=1),   # (C, 3C)
        "wproj_t": jnp.transpose(w_proj),                         # (C, C)
        "bproj": b_proj.reshape(1, C),                            # (1, C)
    }


# ----------------------------------------------------------------- wrapper ---
def attention_forward(x, prepared, num_heads):
    """Pallas port of Attention.forward. x: (B, N, C); prepared = prepare_params(...)."""
    B, N, C = x.shape
    hd = C // num_heads
    kernel = functools.partial(_fused_attention_kernel,
                               num_heads=num_heads, head_dim=hd)
    # Single grid step: everything (activations + weights) fits in VMEM at
    # these shapes, so there is no grid / pipelining machinery at all.
    vmem = pltpu.MemorySpace.VMEM
    return pl.pallas_call(
        kernel,
        out_shape=jax.ShapeDtypeStruct((B, N, C), x.dtype),
        in_specs=[
            pl.BlockSpec(memory_space=vmem),      # x
            pl.BlockSpec(memory_space=vmem),      # qkv weight (scale folded)
            pl.BlockSpec(memory_space=vmem),      # proj weight
            pl.BlockSpec(memory_space=vmem),      # proj bias
        ],
        out_specs=pl.BlockSpec(memory_space=vmem),
    )(x, prepared["wqkv_t"], prepared["wproj_t"], prepared["bproj"])


# --------------------------------------------------------------- reference ---
def attention_reference(x, raw_params, num_heads):
    B, N, C = x.shape
    hd = C // num_heads
    scale = hd ** (-0.5)
    qkv = x @ raw_params["w_qkv"].T
    qkv = qkv.reshape(B, N, 3, num_heads, hd)
    qkv = jnp.transpose(qkv, (2, 0, 3, 1, 4))
    q, k, v = qkv[0], qkv[1], qkv[2]
    attn = jnp.einsum("bhnd,bhmd->bhnm", q, k) * scale
    attn = jax.nn.softmax(attn, axis=-1)
    o = jnp.einsum("bhnm,bhmd->bhnd", attn, v)
    o = jnp.transpose(o, (0, 2, 1, 3)).reshape(B, N, C)
    return o @ raw_params["w_proj"].T + raw_params["b_proj"]


# -------------------------------------------------------------------- main ---
if __name__ == "__main__":
    B, N, C, H = 2, 16, 64, 8   # small shapes consistent with the module

    key = jax.random.PRNGKey(0)
    kx, kq, kp, kb = jax.random.split(key, 4)
    x = jax.random.normal(kx, (B, N, C), dtype=jnp.float32)
    raw_params = {
        "w_qkv": jax.random.normal(kq, (3 * C, C), dtype=jnp.float32) * 0.05,
        "w_proj": jax.random.normal(kp, (C, C), dtype=jnp.float32) * 0.05,
        "b_proj": jax.random.normal(kb, (C,), dtype=jnp.float32) * 0.05,
    }

    # One-time parameter preparation (hoisted out of the forward pass).
    prepared = prepare_params(raw_params, num_heads=H)
    prepared = jax.tree.map(jax.block_until_ready, prepared)

    out = attention_forward(x, prepared, num_heads=H)
    jax.block_until_ready(out)

    ref = attention_reference(x, raw_params, num_heads=H)
    assert out.shape == (B, N, C)
    assert jnp.allclose(out, ref, atol=1e-4, rtol=1e-4), "mismatch vs reference"

    print("KERNEL_OK")
</pallas_src>

<mosaic_0001>
module attributes {stable_mosaic.version = 11 : i64} {
  func.func @_fused_attention_kernel(%arg0: memref<2x16x64xf32, #tpu.memory_space<vmem>>, %arg1: memref<64x192xf32, #tpu.memory_space<vmem>>, %arg2: memref<64x64xf32, #tpu.memory_space<vmem>>, %arg3: memref<1x64xf32, #tpu.memory_space<vmem>>, %arg4: memref<2x16x64xf32, #tpu.memory_space<vmem>>) attributes {dimension_semantics = [], scalar_prefetch = 0 : i64, scratch_operands = 0 : i64, tpu.core_type = #tpu.core_type<tc>} {
    %c0 = arith.constant 0 : index
    %c0_0 = arith.constant 0 : index
    %c0_1 = arith.constant 0 : index
    %0 = vector.load %arg0[%c0, %c0_0, %c0_1] : memref<2x16x64xf32, #tpu.memory_space<vmem>>, vector<2x16x64xf32>
    %1 = vector.shape_cast %0 : vector<2x16x64xf32> to vector<32x64xf32>
    %c0_2 = arith.constant 0 : index
    %c0_3 = arith.constant 0 : index
    %2 = vector.load %arg1[%c0_2, %c0_3] : memref<64x192xf32, #tpu.memory_space<vmem>>, vector<64x192xf32>
    %cst = arith.constant dense<0.000000e+00> : vector<32x192xf32>
    %3 = tpu.matmul %1, %2, %cst {dimension_numbers = #tpu.dot_dimension_numbers<[1], [0], [0], [1], [0, 0, 1, 1], [], []>} : vector<32x64xf32>, vector<64x192xf32>, vector<32x192xf32> -> vector<32x192xf32>
    %4 = vector.shape_cast %3 : vector<32x192xf32> to vector<2x16x192xf32>
    %5 = vector.extract_strided_slice %4 {offsets = [0, 0, 0], sizes = [2, 16, 8], strides = [1, 1, 1]} : vector<2x16x192xf32> to vector<2x16x8xf32>
    %6 = vector.extract_strided_slice %4 {offsets = [0, 0, 64], sizes = [2, 16, 8], strides = [1, 1, 1]} : vector<2x16x192xf32> to vector<2x16x8xf32>
    %7 = vector.extract_strided_slice %4 {offsets = [0, 0, 128], sizes = [2, 16, 8], strides = [1, 1, 1]} : vector<2x16x192xf32> to vector<2x16x8xf32>
    %8 = vector.extract_strided_slice %4 {offsets = [0, 0, 8], sizes = [2, 16, 8], strides = [1, 1, 1]} : vector<2x16x192xf32> to vector<2x16x8xf32>
    %9 = vector.extract_strided_slice %4 {offsets = [0, 0, 72], sizes = [2, 16, 8], strides = [1, 1, 1]} : vector<2x16x192xf32> to vector<2x16x8xf32>
    %10 = vector.extract_strided_slice %4 {offsets = [0, 0, 136], sizes = [2, 16, 8], strides = [1, 1, 1]} : vector<2x16x192xf32> to vector<2x16x8xf32>
    %11 = vector.extract_strided_slice %4 {offsets = [0, 0, 16], sizes = [2, 16, 8], strides = [1, 1, 1]} : vector<2x16x192xf32> to vector<2x16x8xf32>
    %12 = vector.extract_strided_slice %4 {offsets = [0, 0, 80], sizes = [2, 16, 8], strides = [1, 1, 1]} : vector<2x16x192xf32> to vector<2x16x8xf32>
    %13 = vector.extract_strided_slice %4 {offsets = [0, 0, 144], sizes = [2, 16, 8], strides = [1, 1, 1]} : vector<2x16x192xf32> to vector<2x16x8xf32>
    %14 = vector.extract_strided_slice %4 {offsets = [0, 0, 24], sizes = [2, 16, 8], strides = [1, 1, 1]} : vector<2x16x192xf32> to vector<2x16x8xf32>
    %15 = vector.extract_strided_slice %4 {offsets = [0, 0, 88], sizes = [2, 16, 8], strides = [1, 1, 1]} : vector<2x16x192xf32> to vector<2x16x8xf32>
    %16 = vector.extract_strided_slice %4 {offsets = [0, 0, 152], sizes = [2, 16, 8], strides = [1, 1, 1]} : vector<2x16x192xf32> to vector<2x16x8xf32>
    %17 = vector.extract_strided_slice %4 {offsets = [0, 0, 32], sizes = [2, 16, 8], strides = [1, 1, 1]} : vector<2x16x192xf32> to vector<2x16x8xf32>
    %18 = vector.extract_strided_slice %4 {offsets = [0, 0, 96], sizes = [2, 16, 8], strides = [1, 1, 1]} : vector<2x16x192xf32> to vector<2x16x8xf32>
    %19 = vector.extract_strided_slice %4 {offsets = [0, 0, 160], sizes = [2, 16, 8], strides = [1, 1, 1]} : vector<2x16x192xf32> to vector<2x16x8xf32>
    %20 = vector.extract_strided_slice %4 {offsets = [0, 0, 40], sizes = [2, 16, 8], strides = [1, 1, 1]} : vector<2x16x192xf32> to vector<2x16x8xf32>
    %21 = vector.extract_strided_slice %4 {offsets = [0, 0, 104], sizes = [2, 16, 8], strides = [1, 1, 1]} : vector<2x16x192xf32> to vector<2x16x8xf32>
    %22 = vector.extract_strided_slice %4 {offsets = [0, 0, 168], sizes = [2, 16, 8], strides = [1, 1, 1]} : vector<2x16x192xf32> to vector<2x16x8xf32>
    %23 = vector.extract_strided_slice %4 {offsets = [0, 0, 48], sizes = [2, 16, 8], strides = [1, 1, 1]} : vector<2x16x192xf32> to vector<2x16x8xf32>
    %24 = vector.extract_strided_slice %4 {offsets = [0, 0, 112], sizes = [2, 16, 8], strides = [1, 1, 1]} : vector<2x16x192xf32> to vector<2x16x8xf32>
    %25 = vector.extract_strided_slice %4 {offsets = [0, 0, 176], sizes = [2, 16, 8], strides = [1, 1, 1]} : vector<2x16x192xf32> to vector<2x16x8xf32>
    %26 = vector.extract_strided_slice %4 {offsets = [0, 0, 56], sizes = [2, 16, 8], strides = [1, 1, 1]} : vector<2x16x192xf32> to vector<2x16x8xf32>
    %27 = vector.extract_strided_slice %4 {offsets = [0, 0, 120], sizes = [2, 16, 8], strides = [1, 1, 1]} : vector<2x16x192xf32> to vector<2x16x8xf32>
    %28 = vector.extract_strided_slice %4 {offsets = [0, 0, 184], sizes = [2, 16, 8], strides = [1, 1, 1]} : vector<2x16x192xf32> to vector<2x16x8xf32>
    %29 = vector.shape_cast %5 : vector<2x16x8xf32> to vector<1x2x16x8xf32>
    %30 = vector.shape_cast %8 : vector<2x16x8xf32> to vector<1x2x16x8xf32>
    %31 = vector.shape_cast %11 : vector<2x16x8xf32> to vector<1x2x16x8xf32>
    %32 = vector.shape_cast %14 : vector<2x16x8xf32> to vector<1x2x16x8xf32>
    %33 = vector.shape_cast %17 : vector<2x16x8xf32> to vector<1x2x16x8xf32>
    %34 = vector.shape_cast %20 : vector<2x16x8xf32> to vector<1x2x16x8xf32>
    %35 = vector.shape_cast %23 : vector<2x16x8xf32> to vector<1x2x16x8xf32>
    %36 = vector.shape_cast %26 : vector<2x16x8xf32> to vector<1x2x16x8xf32>
    %37 = tpu.concatenate %29, %30, %31, %32, %33, %34, %35, %36 in 0 : vector<1x2x16x8xf32>, vector<1x2x16x8xf32>, vector<1x2x16x8xf32>, vector<1x2x16x8xf32>, vector<1x2x16x8xf32>, vector<1x2x16x8xf32>, vector<1x2x16x8xf32>, vector<1x2x16x8xf32> -> vector<8x2x16x8xf32>
    %38 = vector.shape_cast %37 : vector<8x2x16x8xf32> to vector<16x16x8xf32>
    %39 = vector.shape_cast %6 : vector<2x16x8xf32> to vector<1x2x16x8xf32>
    %40 = vector.shape_cast %9 : vector<2x16x8xf32> to vector<1x2x16x8xf32>
    %41 = vector.shape_cast %12 : vector<2x16x8xf32> to vector<1x2x16x8xf32>
    %42 = vector.shape_cast %15 : vector<2x16x8xf32> to vector<1x2x16x8xf32>
    %43 = vector.shape_cast %18 : vector<2x16x8xf32> to vector<1x2x16x8xf32>
    %44 = vector.shape_cast %21 : vector<2x16x8xf32> to vector<1x2x16x8xf32>
    %45 = vector.shape_cast %24 : vector<2x16x8xf32> to vector<1x2x16x8xf32>
    %46 = vector.shape_cast %27 : vector<2x16x8xf32> to vector<1x2x16x8xf32>
    %47 = tpu.concatenate %39, %40, %41, %42, %43, %44, %45, %46 in 0 : vector<1x2x16x8xf32>, vector<1x2x16x8xf32>, vector<1x2x16x8xf32>, vector<1x2x16x8xf32>, vector<1x2x16x8xf32>, vector<1x2x16x8xf32>, vector<1x2x16x8xf32>, vector<1x2x16x8xf32> -> vector<8x2x16x8xf32>
    %48 = vector.shape_cast %47 : vector<8x2x16x8xf32> to vector<16x16x8xf32>
    %49 = vector.shape_cast %7 : vector<2x16x8xf32> to vector<1x2x16x8xf32>
    %50 = vector.shape_cast %10 : vector<2x16x8xf32> to vector<1x2x16x8xf32>
    %51 = vector.shape_cast %13 : vector<2x16x8xf32> to vector<1x2x16x8xf32>
    %52 = vector.shape_cast %16 : vector<2x16x8xf32> to vector<1x2x16x8xf32>
    %53 = vector.shape_cast %19 : vector<2x16x8xf32> to vector<1x2x16x8xf32>
    %54 = vector.shape_cast %22 : vector<2x16x8xf32> to vector<1x2x16x8xf32>
    %55 = vector.shape_cast %25 : vector<2x16x8xf32> to vector<1x2x16x8xf32>
    %56 = vector.shape_cast %28 : vector<2x16x8xf32> to vector<1x2x16x8xf32>
    %57 = tpu.concatenate %49, %50, %51, %52, %53, %54, %55, %56 in 0 : vector<1x2x16x8xf32>, vector<1x2x16x8xf32>, vector<1x2x16x8xf32>, vector<1x2x16x8xf32>, vector<1x2x16x8xf32>, vector<1x2x16x8xf32>, vector<1x2x16x8xf32>, vector<1x2x16x8xf32> -> vector<8x2x16x8xf32>
    %58 = vector.shape_cast %57 : vector<8x2x16x8xf32> to vector<16x16x8xf32>
    "tpu.trace_start"() <{level = 10 : i32, message = "bqd,bkd->bqk"}> : () -> ()
    %cst_4 = arith.constant dense<0.000000e+00> : vector<16x16x16xf32>
    %59 = tpu.matmul %38, %48, %cst_4 {dimension_numbers = #tpu.dot_dimension_numbers<[2], [2], [1], [1], [0, 0, 0, 1, 1, 1], [0], [0]>} : vector<16x16x8xf32>, vector<16x16x8xf32>, vector<16x16x16xf32> -> vector<16x16x16xf32>
    "tpu.trace_stop"() : () -> ()
    %cst_5 = arith.constant dense<0xFF800000> : vector<16x16xf32>
    %60 = vector.multi_reduction <maximumf>, %59, %cst_5 [2] : vector<16x16x16xf32> to vector<16x16xf32>
    %61 = vector.shape_cast %60 : vector<16x16xf32> to vector<16x16x1xf32>
    %62 = vector.broadcast %61 : vector<16x16x1xf32> to vector<16x16x16xf32>
    %63 = arith.subf %59, %62 : vector<16x16x16xf32>
    %64 = math.exp %63 : vector<16x16x16xf32>
    %cst_6 = arith.constant dense<0.000000e+00> : vector<16x16xf32>
    %65 = vector.multi_reduction <add>, %64, %cst_6 [2] : vector<16x16x16xf32> to vector<16x16xf32>
    %66 = vector.shape_cast %65 : vector<16x16xf32> to vector<16x16x1xf32>
    %67 = tpu.reciprocal %66 : vector<16x16x1xf32> -> vector<16x16x1xf32>
    %68 = vector.broadcast %67 : vector<16x16x1xf32> to vector<16x16x16xf32>
    %69 = arith.mulf %64, %68 : vector<16x16x16xf32>
    "tpu.trace_start"() <{level = 10 : i32, message = "bqk,bkd->bqd"}> : () -> ()
    %cst_7 = arith.constant dense<0.000000e+00> : vector<16x16x8xf32>
    %70 = tpu.matmul %69, %58, %cst_7 {dimension_numbers = #tpu.dot_dimension_numbers<[2], [1], [1], [2], [0, 0, 0, 1, 1, 2], [0], [0]>} : vector<16x16x16xf32>, vector<16x16x8xf32>, vector<16x16x8xf32> -> vector<16x16x8xf32>
    "tpu.trace_stop"() : () -> ()
    %71 = vector.shape_cast %70 : vector<16x16x8xf32> to vector<8x2x16x8xf32>
    %72 = vector.extract_strided_slice %71 {offsets = [0, 0, 0, 0], sizes = [1, 2, 16, 8], strides = [1, 1, 1, 1]} : vector<8x2x16x8xf32> to vector<1x2x16x8xf32>
    %73 = vector.shape_cast %72 : vector<1x2x16x8xf32> to vector<2x16x8xf32>
    %74 = vector.extract_strided_slice %71 {offsets = [1, 0, 0, 0], sizes = [1, 2, 16, 8], strides = [1, 1, 1, 1]} : vector<8x2x16x8xf32> to vector<1x2x16x8xf32>
    %75 = vector.shape_cast %74 : vector<1x2x16x8xf32> to vector<2x16x8xf32>
    %76 = vector.extract_strided_slice %71 {offsets = [2, 0, 0, 0], sizes = [1, 2, 16, 8], strides = [1, 1, 1, 1]} : vector<8x2x16x8xf32> to vector<1x2x16x8xf32>
    %77 = vector.shape_cast %76 : vector<1x2x16x8xf32> to vector<2x16x8xf32>
    %78 = vector.extract_strided_slice %71 {offsets = [3, 0, 0, 0], sizes = [1, 2, 16, 8], strides = [1, 1, 1, 1]} : vector<8x2x16x8xf32> to vector<1x2x16x8xf32>
    %79 = vector.shape_cast %78 : vector<1x2x16x8xf32> to vector<2x16x8xf32>
    %80 = vector.extract_strided_slice %71 {offsets = [4, 0, 0, 0], sizes = [1, 2, 16, 8], strides = [1, 1, 1, 1]} : vector<8x2x16x8xf32> to vector<1x2x16x8xf32>
    %81 = vector.shape_cast %80 : vector<1x2x16x8xf32> to vector<2x16x8xf32>
    %82 = vector.extract_strided_slice %71 {offsets = [5, 0, 0, 0], sizes = [1, 2, 16, 8], strides = [1, 1, 1, 1]} : vector<8x2x16x8xf32> to vector<1x2x16x8xf32>
    %83 = vector.shape_cast %82 : vector<1x2x16x8xf32> to vector<2x16x8xf32>
    %84 = vector.extract_strided_slice %71 {offsets = [6, 0, 0, 0], sizes = [1, 2, 16, 8], strides = [1, 1, 1, 1]} : vector<8x2x16x8xf32> to vector<1x2x16x8xf32>
    %85 = vector.shape_cast %84 : vector<1x2x16x8xf32> to vector<2x16x8xf32>
    %86 = vector.extract_strided_slice %71 {offsets = [7, 0, 0, 0], sizes = [1, 2, 16, 8], strides = [1, 1, 1, 1]} : vector<8x2x16x8xf32> to vector<1x2x16x8xf32>
    %87 = vector.shape_cast %86 : vector<1x2x16x8xf32> to vector<2x16x8xf32>
    %88 = tpu.concatenate %73, %75, %77, %79, %81, %83, %85, %87 in 2 : vector<2x16x8xf32>, vector<2x16x8xf32>, vector<2x16x8xf32>, vector<2x16x8xf32>, vector<2x16x8xf32>, vector<2x16x8xf32>, vector<2x16x8xf32>, vector<2x16x8xf32> -> vector<2x16x64xf32>
    %89 = vector.shape_cast %88 : vector<2x16x64xf32> to vector<32x64xf32>
    %c0_8 = arith.constant 0 : index
    %c0_9 = arith.constant 0 : index
    %90 = vector.load %arg2[%c0_8, %c0_9] : memref<64x64xf32, #tpu.memory_space<vmem>>, vector<64x64xf32>
    %cst_10 = arith.constant dense<0.000000e+00> : vector<32x64xf32>
    %91 = tpu.matmul %89, %90, %cst_10 {dimension_numbers = #tpu.dot_dimension_numbers<[1], [0], [0], [1], [0, 0, 1, 1], [], []>} : vector<32x64xf32>, vector<64x64xf32>, vector<32x64xf32> -> vector<32x64xf32>
    %c0_11 = arith.constant 0 : index
    %c0_12 = arith.constant 0 : index
    %92 = vector.load %arg3[%c0_11, %c0_12] : memref<1x64xf32, #tpu.memory_space<vmem>>, vector<1x64xf32>
    %93 = vector.broadcast %92 : vector<1x64xf32> to vector<32x64xf32>
    %94 = arith.addf %91, %93 : vector<32x64xf32>
    %95 = vector.shape_cast %94 : vector<32x64xf32> to vector<2x16x64xf32>
    %c0_13 = arith.constant 0 : index
    %c0_14 = arith.constant 0 : index
    %c0_15 = arith.constant 0 : index
    %96 = vector.load %arg4[%c0_13, %c0_14, %c0_15] : memref<2x16x64xf32, #tpu.memory_space<vmem>>, vector<2x16x64xf32>
    tpu.vector_store %arg4[%c0_13, %c0_14, %c0_15], %95 {strides = array<i32>} : memref<2x16x64xf32, #tpu.memory_space<vmem>>, vector<2x16x64xf32>,
    return
  }
}

</mosaic_0001>

<llo_original>
// kernel: tpu_custom_call.1
$region0: #{tpu_custom_call.1}
  #allocation0 [shape = 'u32[]', space=smem, size = 0x4, offset = 0x4, fixed_abs, tag = 'smem constant byte address 0x4 - core index']
  #allocation1 [shape = 'u32[144,128]{1,0:T(1,128)}', space=vmem, size = 0x12000, scoped, tag = 'internal scratch']
  %s0 = inlined_call_operand.hbm [shape: f32[2,16,64], index: 0, kind: input, shape index: {}]
  %s1 = inlined_call_operand.hbm [shape: f32[64,192], index: 1, kind: input, shape index: {}]
  %s2 = inlined_call_operand.hbm [shape: f32[64,64], index: 2, kind: input, shape index: {}]
  %s3 = inlined_call_operand.vmem [shape: f32[1,64], index: 3, kind: input, shape index: {}]
  %s4 = inlined_call_operand.hbm [shape: f32[2,16,64], index: 4, kind: output, shape index: {}]
  %s5 = sld [smem:[#allocation0]]
  $region38: #{tpu_custom_call.1} parent=0
    _
  %s7 = ssub.s32 1, %s5
  %s8 = scalar_select 0, %s7, %s5
  $region1: #{tpu_custom_call.1} parent=0
    #allocation2 [shape = 'u8[16384]{0}', space=vmem, size = 0x4000, scoped, tag = 'input window, operand 0, single buffered']
    #allocation3 [shape = 's32[1]{0}', space=sflag, size = 0x4, scoped, tag = 'scoped memory for tpu_custom_call.1']
    #allocation4 [shape = 's32[1]{0}', space=sflag, size = 0x4, scoped, tag = 'scoped memory for tpu_custom_call.1']
    #allocation5 [shape = 'u8[65536]{0}', space=vmem, size = 0x10000, scoped, tag = 'input window, operand 1, single buffered']
    #allocation6 [shape = 's32[1]{0}', space=sflag, size = 0x4, scoped, tag = 'scoped memory for tpu_custom_call.1']
    #allocation7 [shape = 'u8[32768]{0}', space=vmem, size = 0x8000, scoped, tag = 'input window, operand 2, single buffered']
    #allocation8 [shape = 'u8[16384]{0}', space=vmem, size = 0x4000, scoped, tag = 'output window, operand 0, single buffered']
    %9 = vsyncpa [#allocation3], 0
    %10 = vsyncpa [#allocation6], 0
    %11 = vsyncpa [#allocation4], 0
    // Predicated region
    $region2: #{tpu_custom_call.1} parent=1 // pred_check
      _
    $region3: #{tpu_custom_call.1} parent=1 // pred_check_branch
      %13 = sbr.rel (0) target = $region5
    $region4: #{tpu_custom_call.1} parent=1 // pred_region
      %s15 = ssub.s32 512, 512
      %16 = vsyncadd [#allocation3], %s15
      %s17 = sshll.u32 [#allocation2], 4
      %s18 = int_to_ptr.vmem [resolvable:$true] %s17
      %23 = dma.hbm_to_vmem [thread:$0]  %s0, 512, %s18, [#allocation3], 128, 128, 8
    $region5: #{tpu_custom_call.1} parent=1 // pred_fallthru
      _
    // Predicated region
    $region6: #{tpu_custom_call.1} parent=1 // pred_check
      _
    $region7: #{tpu_custom_call.1} parent=1 // pred_check_branch
      %25 = sbr.rel (0) target = $region9
    $region8: #{tpu_custom_call.1} parent=1 // pred_region
      %s27 = ssub.s32 2048, 2048
      %28 = vsyncadd [#allocation6], %s27
      %s29 = sshll.u32 [#allocation5], 4
      %s30 = int_to_ptr.vmem [resolvable:$true] %s29
      %35 = dma.hbm_to_vmem [thread:$0]  %s1, 2048, %s30, [#allocation6], 256, 256, 16
    $region9: #{tpu_custom_call.1} parent=1 // pred_fallthru
      _
    // Predicated region
    $region10: #{tpu_custom_call.1} parent=1 // pred_check
      _
    $region11: #{tpu_custom_call.1} parent=1 // pred_check_branch
      %37 = sbr.rel (0) target = $region13
    $region12: #{tpu_custom_call.1} parent=1 // pred_region
      %s39 = ssub.s32 1024, 1024
      %40 = vsyncadd [#allocation6], %s39
      %s41 = sshll.u32 [#allocation7], 4
      %s42 = int_to_ptr.vmem [resolvable:$true] %s41
      %47 = dma.hbm_to_vmem [thread:$0]  %s2, 1024, %s42, [#allocation6], 128, 128, 8
    $region13: #{tpu_custom_call.1} parent=1 // pred_fallthru
      _
    // Predicated region
    $region14: #{tpu_custom_call.1} parent=1 // pred_check
      _
    $region15: #{tpu_custom_call.1} parent=1 // pred_check_branch
      %49 = sbr.rel (0) target = $region17
    $region16: #{tpu_custom_call.1} parent=1 // pred_region
      _
    $region17: #{tpu_custom_call.1} parent=1 // pred_fallthru
      _
    // Predicated region
    $region18: #{tpu_custom_call.1} parent=1 // pred_check
      _
    $region19: #{tpu_custom_call.1} parent=1 // pred_check_branch
      %51 = sbr.rel (0) target = $region21
    $region20: #{tpu_custom_call.1} parent=1 // pred_region
      %52 = dma.done [#allocation3], 512
    $region21: #{tpu_custom_call.1} parent=1 // pred_fallthru
      _
    // Predicated region
    $region22: #{tpu_custom_call.1} parent=1 // pred_check
      _
    $region23: #{tpu_custom_call.1} parent=1 // pred_check_branch
      %54 = sbr.rel (0) target = $region25
    $region24: #{tpu_custom_call.1} parent=1 // pred_region
      %55 = dma.done [#allocation6], 2048
    $region25: #{tpu_custom_call.1} parent=1 // pred_fallthru
      _
    // Predicated region
    $region26: #{tpu_custom_call.1} parent=1 // pred_check
      _
    $region27: #{tpu_custom_call.1} parent=1 // pred_check_branch
      %57 = sbr.rel (0) target = $region29
    $region28: #{tpu_custom_call.1} parent=1 // pred_region
      %58 = dma.done [#allocation6], 1024
    $region29: #{tpu_custom_call.1} parent=1 // pred_fallthru
      _
    %v59 = vld [vmem:[#allocation2] sm:$0xff]
    %v60 = vld [vmem:[#allocation2 + $0x8] sm:$0xff]
    %v61 = vld [vmem:[#allocation2 + $0x10] sm:$0xff]
    %v62 = vld [vmem:[#allocation2 + $0x18] sm:$0xff]
    %v63 = vld [vmem:[#allocation5] sm:$0xff]
    %v64 = vld [vmem:[#allocation5 + $0x8] sm:$0xff]
    %v65 = vld [vmem:[#allocation5 + $0x10] sm:$0xff]
    %v66 = vld [vmem:[#allocation5 + $0x18] sm:$0xff]
    %v67 = vld [vmem:[#allocation5 + $0x20] sm:$0xff]
    %v68 = vld [vmem:[#allocation5 + $0x28] sm:$0xff]
    %v69 = vld [vmem:[#allocation5 + $0x30] sm:$0xff]
    %v70 = vld [vmem:[#allocation5 + $0x38] sm:$0xff]
    %v71 = vld [vmem:[#allocation5 + $0x40] sm:$0xff]
    %v72 = vld [vmem:[#allocation5 + $0x48] sm:$0xff]
    %v73 = vld [vmem:[#allocation5 + $0x50] sm:$0xff]
    %v74 = vld [vmem:[#allocation5 + $0x58] sm:$0xff]
    %v75 = vld [vmem:[#allocation5 + $0x60] sm:$0xff]
    %v76 = vld [vmem:[#allocation5 + $0x68] sm:$0xff]
    %v77 = vld [vmem:[#allocation5 + $0x70] sm:$0xff]
    %v78 = vld [vmem:[#allocation5 + $0x78] sm:$0xff]
    %vm79 = vcmask 523264
    %v81 = vsel %vm79, %v59, 0
    %v84 = vsel %vm79, %v60, 0
    %v87 = vsel %vm79, %v61, 0
    %v90 = vsel %vm79, %v62, 0
    %92 = vmatprep.subr.mxu0 0.0
    %93 = vmatpush1.msra.mxu0 0.0
    %94 = vmatprep.subr.mxu0 0.0
    %95 = vmatpush1.msra.mxu0 0.0
    %96 = vmatprep.subr.mxu0 0.0
    %97 = vmatpush1.msra.mxu0 0.0
    %98 = vmatprep.subr.mxu0 0.0
    %99 = vmatpush1.msra.mxu0 0.0
    %100 = vmatprep.subr.mxu0 0.0
    %101 = vmatpush1.msra.mxu0 0.0
    %102 = vmatprep.subr.mxu0 0.0
    %103 = vmatpush1.msra.mxu0 0.0
    %104 = vmatprep.subr.mxu0 0.0
    %105 = vmatpush1.msra.mxu0 0.0
    %106 = vmatprep.subr.mxu0 0.0
    %107 = vmatpush1.msra.mxu0 0.0
    %108 = vmatprep.subr.mxu0 %v78
    %109 = vmatpush1.msra.mxu0 %v77
    %110 = vmatprep.subr.mxu0 %v76
    %111 = vmatpush1.msra.mxu0 %v75
    %112 = vmatprep.subr.mxu0 %v74
    %113 = vmatpush1.msra.mxu0 %v73
    %114 = vmatprep.subr.mxu0 %v72
    %115 = vmatpush1.msra.mxu0 %v71
    %116 = vmatprep.subr.mxu0 %v70
    %117 = vmatpush1.msra.mxu0 %v69
    %118 = vmatprep.subr.mxu0 %v68
    %119 = vmatpush1.msra.mxu0 %v67
    %120 = vmatprep.subr.mxu0 %v66
    %121 = vmatpush1.msra.mxu0 %v65
    %122 = vmatprep.subr.mxu0 %v64
    %123 = vmatpush1.msra.mxu0 %v63
    %124 = vmatprep.subr.mxu0 0.0
    %125 = vmatpush2.msra.mxu0 0.0
    %126 = vmatprep.subr.mxu0 0.0
    %127 = vmatpush2.msra.mxu0 0.0
    %128 = vmatprep.subr.mxu0 0.0
    %129 = vmatpush2.msra.mxu0 0.0
    %130 = vmatprep.subr.mxu0 0.0
    %131 = vmatpush2.msra.mxu0 0.0
    %132 = vmatprep.subr.mxu0 0.0
    %133 = vmatpush2.msra.mxu0 0.0
    %134 = vmatprep.subr.mxu0 0.0
    %135 = vmatpush2.msra.mxu0 0.0
    %136 = vmatprep.subr.mxu0 0.0
    %137 = vmatpush2.msra.mxu0 0.0
    %138 = vmatprep.subr.mxu0 0.0
    %139 = vmatpush2.msra.mxu0 0.0
    %140 = vmatprep.subr.mxu0 0.0
    %141 = vmatpush2.msra.mxu0 0.0
    %142 = vmatprep.subr.mxu0 0.0
    %143 = vmatpush2.msra.mxu0 0.0
    %144 = vmatprep.subr.mxu0 0.0
    %145 = vmatpush2.msra.mxu0 0.0
    %146 = vmatprep.subr.mxu0 0.0
    %147 = vmatpush2.msra.mxu0 0.0
    %148 = vmatprep.subr.mxu0 0.0
    %149 = vmatpush2.msra.mxu0 0.0
    %150 = vmatprep.subr.mxu0 0.0
    %151 = vmatpush2.msra.mxu0 0.0
    %152 = vmatprep.subr.mxu0 0.0
    %153 = vmatpush2.msra.mxu0 0.0
    %154 = vmatprep.subr.mxu0 0.0
    %155 = vmatpush2.msra.mxu0 0.0
    %156 = vmatprep.mubr.f32.mxu0 0.0
    %157 = vmatmul.mubr.f32.gmra.mxu0 %v81
    %v158 = vpop.f32.mrf.mxu0
    %v159 = vadd.f32 0.0, %v158
    %v160 = vpop.f32.mrf.mxu0
    %v161 = vadd.f32 0.0, %v160
    %162 = vmatprep.mubr.f32.mxu0 0.0
    %163 = vmatmul.mubr.f32.gmra.mxu0 %v84
    %v164 = vpop.f32.mrf.mxu0
    %v165 = vadd.f32 0.0, %v164
    %v166 = vpop.f32.mrf.mxu0
    %v167 = vadd.f32 0.0, %v166
    %168 = vmatprep.mubr.f32.mxu0 0.0
    %169 = vmatmul.mubr.f32.gmra.mxu0 %v87
    %v170 = vpop.f32.mrf.mxu0
    %v171 = vadd.f32 0.0, %v170
    %v172 = vpop.f32.mrf.mxu0
    %v173 = vadd.f32 0.0, %v172
    %174 = vmatprep.mubr.f32.mxu0 0.0
    %175 = vmatmul.mubr.f32.gmra.mxu0 %v90
    %v176 = vpop.f32.mrf.mxu0
    %v177 = vadd.f32 0.0, %v176
    %v178 = vpop.f32.mrf.mxu0
    %v179 = vadd.f32 0.0, %v178
    %180 = vdwg.mxu0
    %185 = vrot.lane.b32.xlu0 %v159, 120
    %v186 = vpop.permute.xlu0 %185
    %187 = vrot.lane.b32.xlu0 %v165, 120
    %v188 = vpop.permute.xlu0 %187
    %189 = vrot.lane.b32.xlu0 %v171, 120
    %v190 = vpop.permute.xlu0 %189
    %191 = vrot.lane.b32.xlu0 %v177, 120
    %v192 = vpop.permute.xlu0 %191
    %193 = vrot.lane.b32.xlu0 %v159, 112
    %v194 = vpop.permute.xlu0 %193
    %195 = vrot.lane.b32.xlu0 %v165, 112
    %v196 = vpop.permute.xlu0 %195
    %197 = vrot.lane.b32.xlu0 %v171, 112
    %v198 = vpop.permute.xlu0 %197
    %199 = vrot.lane.b32.xlu0 %v177, 112
    %v200 = vpop.permute.xlu0 %199
    %201 = vrot.lane.b32.xlu0 %v159, 104
    %v202 = vpop.permute.xlu0 %201
    %203 = vrot.lane.b32.xlu0 %v165, 104
    %v204 = vpop.permute.xlu0 %203
    %205 = vrot.lane.b32.xlu0 %v171, 104
    %v206 = vpop.permute.xlu0 %205
    %207 = vrot.lane.b32.xlu0 %v177, 104
    %v208 = vpop.permute.xlu0 %207
    %209 = vrot.lane.b32.xlu0 %v159, 96
    %v210 = vpop.permute.xlu0 %209
    %211 = vrot.lane.b32.xlu0 %v165, 96
    %v212 = vpop.permute.xlu0 %211
    %213 = vrot.lane.b32.xlu0 %v171, 96
    %v214 = vpop.permute.xlu0 %213
    %215 = vrot.lane.b32.xlu0 %v177, 96
    %v216 = vpop.permute.xlu0 %215
    %217 = vrot.lane.b32.xlu0 %v159, 88
    %v218 = vpop.permute.xlu0 %217
    %219 = vrot.lane.b32.xlu0 %v165, 88
    %v220 = vpop.permute.xlu0 %219
    %221 = vrot.lane.b32.xlu0 %v171, 88
    %v222 = vpop.permute.xlu0 %221
    %223 = vrot.lane.b32.xlu0 %v177, 88
    %v224 = vpop.permute.xlu0 %223
    %225 = vrot.lane.b32.xlu0 %v159, 80
    %v226 = vpop.permute.xlu0 %225
    %227 = vrot.lane.b32.xlu0 %v165, 80
    %v228 = vpop.permute.xlu0 %227
    %229 = vrot.lane.b32.xlu0 %v171, 80
    %v230 = vpop.permute.xlu0 %229
    %231 = vrot.lane.b32.xlu0 %v177, 80
    %v232 = vpop.permute.xlu0 %231
    %233 = vrot.lane.b32.xlu0 %v159, 72
    %v234 = vpop.permute.xlu0 %233
    %235 = vrot.lane.b32.xlu0 %v165, 72
    %v236 = vpop.permute.xlu0 %235
    %237 = vrot.lane.b32.xlu0 %v171, 72
    %v238 = vpop.permute.xlu0 %237
    %239 = vrot.lane.b32.xlu0 %v177, 72
    %v240 = vpop.permute.xlu0 %239
    %245 = vrot.lane.b32.xlu0 %v161, 120
    %v246 = vpop.permute.xlu0 %245
    %247 = vrot.lane.b32.xlu0 %v167, 120
    %v248 = vpop.permute.xlu0 %247
    %249 = vrot.lane.b32.xlu0 %v173, 120
    %v250 = vpop.permute.xlu0 %249
    %251 = vrot.lane.b32.xlu0 %v179, 120
    %v252 = vpop.permute.xlu0 %251
    %257 = vrot.lane.b32.xlu0 %v161, 112
    %v258 = vpop.permute.xlu0 %257
    %259 = vrot.lane.b32.xlu0 %v167, 112
    %v260 = vpop.permute.xlu0 %259
    %261 = vrot.lane.b32.xlu0 %v173, 112
    %v262 = vpop.permute.xlu0 %261
    %263 = vrot.lane.b32.xlu0 %v179, 112
    %v264 = vpop.permute.xlu0 %263
    %269 = vrot.lane.b32.xlu0 %v161, 104
    %v270 = vpop.permute.xlu0 %269
    %271 = vrot.lane.b32.xlu0 %v167, 104
    %v272 = vpop.permute.xlu0 %271
    %273 = vrot.lane.b32.xlu0 %v173, 104
    %v274 = vpop.permute.xlu0 %273
    %275 = vrot.lane.b32.xlu0 %v179, 104
    %v276 = vpop.permute.xlu0 %275
    %281 = vrot.lane.b32.xlu0 %v161, 96
    %v282 = vpop.permute.xlu0 %281
    %283 = vrot.lane.b32.xlu0 %v167, 96
    %v284 = vpop.permute.xlu0 %283
    %285 = vrot.lane.b32.xlu0 %v173, 96
    %v286 = vpop.permute.xlu0 %285
    %287 = vrot.lane.b32.xlu0 %v179, 96
    %v288 = vpop.permute.xlu0 %287
    %293 = vrot.lane.b32.xlu0 %v161, 88
    %v294 = vpop.permute.xlu0 %293
    %295 = vrot.lane.b32.xlu0 %v167, 88
    %v296 = vpop.permute.xlu0 %295
    %297 = vrot.lane.b32.xlu0 %v173, 88
    %v298 = vpop.permute.xlu0 %297
    %299 = vrot.lane.b32.xlu0 %v179, 88
    %v300 = vpop.permute.xlu0 %299
    %305 = vrot.lane.b32.xlu0 %v161, 80
    %v306 = vpop.permute.xlu0 %305
    %307 = vrot.lane.b32.xlu0 %v167, 80
    %v308 = vpop.permute.xlu0 %307
    %309 = vrot.lane.b32.xlu0 %v173, 80
    %v310 = vpop.permute.xlu0 %309
    %311 = vrot.lane.b32.xlu0 %v179, 80
    %v312 = vpop.permute.xlu0 %311
    %317 = vrot.lane.b32.xlu0 %v161, 72
    %v318 = vpop.permute.xlu0 %317
    %319 = vrot.lane.b32.xlu0 %v167, 72
    %v320 = vpop.permute.xlu0 %319
    %321 = vrot.lane.b32.xlu0 %v173, 72
    %v322 = vpop.permute.xlu0 %321
    %323 = vrot.lane.b32.xlu0 %v179, 72
    %v324 = vpop.permute.xlu0 %323
    %329 = vrot.lane.b32.xlu0 %v159, 64
    %v330 = vpop.permute.xlu0 %329
    %331 = vrot.lane.b32.xlu0 %v165, 64
    %v332 = vpop.permute.xlu0 %331
    %vm333 = vcmask 64512
    %v334 = vsel %vm333, %v159, 0
    %v336 = vsel %vm333, %v165, 0
    %v338 = vsel %vm333, %v330, 0
    %v340 = vsel %vm333, %v332, 0
    %342 = vmatprep.subr.mxu0 0.0
    %343 = vmatpush1.xpose.msra.mxu0 0.0
    %344 = vmatprep.subr.mxu0 0.0
    %345 = vmatpush1.xpose.msra.mxu0 0.0
    %346 = vmatprep.subr.mxu0 0.0
    %347 = vmatpush1.xpose.msra.mxu0 0.0
    %348 = vmatprep.subr.mxu0 0.0
    %349 = vmatpush1.xpose.msra.mxu0 0.0
    %350 = vmatprep.subr.mxu0 0.0
    %351 = vmatpush1.xpose.msra.mxu0 0.0
    %352 = vmatprep.subr.mxu0 0.0
    %353 = vmatpush1.xpose.msra.mxu0 0.0
    %354 = vmatprep.subr.mxu0 0.0
    %355 = vmatpush1.xpose.msra.mxu0 0.0
    %356 = vmatprep.subr.mxu0 0.0
    %357 = vmatpush1.xpose.msra.mxu0 0.0
    %358 = vmatprep.subr.mxu0 0.0
    %359 = vmatpush1.xpose.msra.mxu0 0.0
    %360 = vmatprep.subr.mxu0 0.0
    %361 = vmatpush1.xpose.msra.mxu0 0.0
    %362 = vmatprep.subr.mxu0 0.0
    %363 = vmatpush1.xpose.msra.mxu0 0.0
    %364 = vmatprep.subr.mxu0 0.0
    %365 = vmatpush1.xpose.msra.mxu0 0.0
    %366 = vmatprep.subr.mxu0 0.0
    %367 = vmatpush1.xpose.msra.mxu0 0.0
    %368 = vmatprep.subr.mxu0 0.0
    %369 = vmatpush1.xpose.msra.mxu0 0.0
    %370 = vmatprep.subr.mxu0 0.0
    %371 = vmatpush1.xpose.msra.mxu0 %v340
    %372 = vmatprep.subr.mxu0 0.0
    %373 = vmatpush1.xpose.msra.mxu0 %v338
    %374 = vmatprep.subr.mxu0 0.0
    %375 = vmatpush2.xpose.msra.mxu0 0.0
    %376 = vmatprep.subr.mxu0 0.0
    %377 = vmatpush2.xpose.msra.mxu0 0.0
    %378 = vmatprep.subr.mxu0 0.0
    %379 = vmatpush2.xpose.msra.mxu0 0.0
    %380 = vmatprep.subr.mxu0 0.0
    %381 = vmatpush2.xpose.msra.mxu0 0.0
    %382 = vmatprep.subr.mxu0 0.0
    %383 = vmatpush2.xpose.msra.mxu0 0.0
    %384 = vmatprep.subr.mxu0 0.0
    %385 = vmatpush2.xpose.msra.mxu0 0.0
    %386 = vmatprep.subr.mxu0 0.0
    %387 = vmatpush2.xpose.msra.mxu0 0.0
    %388 = vmatprep.subr.mxu0 0.0
    %389 = vmatpush2.xpose.msra.mxu0 0.0
    %390 = vmatprep.subr.mxu0 0.0
    %391 = vmatpush2.xpose.msra.mxu0 0.0
    %392 = vmatprep.subr.mxu0 0.0
    %393 = vmatpush2.xpose.msra.mxu0 0.0
    %394 = vmatprep.subr.mxu0 0.0
    %395 = vmatpush2.xpose.msra.mxu0 0.0
    %396 = vmatprep.subr.mxu0 0.0
    %397 = vmatpush2.xpose.msra.mxu0 0.0
    %398 = vmatprep.subr.mxu0 0.0
    %399 = vmatpush2.xpose.msra.mxu0 0.0
    %400 = vmatprep.subr.mxu0 0.0
    %401 = vmatpush2.xpose.msra.mxu0 0.0
    %402 = vmatprep.subr.mxu0 0.0
    %403 = vmatpush2.xpose.msra.mxu0 0.0
    %404 = vmatprep.subr.mxu0 0.0
    %405 = vmatpush2.xpose.msra.mxu0 0.0
    %406 = vmatprep.mubr.f32.mxu0 0.0
    %407 = vmatmul.mubr.f32.gmra.mxu0 %v334
    %v408 = vpop.f32.mrf.mxu0
    %v409 = vadd.f32 0.0, %v408
    %v410 = vpop.f32.mrf.mxu0
    %411 = vmatprep.mubr.f32.mxu0 0.0
    %412 = vmatmul.mubr.f32.gmra.mxu0 %v336
    %v413 = vpop.f32.mrf.mxu0
    %v414 = vadd.f32 0.0, %v413
    %v415 = vpop.f32.mrf.mxu0
    %416 = vdwg.mxu0
    %417 = vrot.lane.b32.xlu0 %v171, 64
    %v418 = vpop.permute.xlu0 %417
    %419 = vrot.lane.b32.xlu0 %v177, 64
    %v420 = vpop.permute.xlu0 %419
    %v421 = vsel %vm333, %v171, 0
    %v423 = vsel %vm333, %v177, 0
    %v425 = vsel %vm333, %v418, 0
    %v427 = vsel %vm333, %v420, 0
    %429 = vmatprep.subr.mxu0 0.0
    %430 = vmatpush1.xpose.msra.mxu0 0.0
    %431 = vmatprep.subr.mxu0 0.0
    %432 = vmatpush1.xpose.msra.mxu0 0.0
    %433 = vmatprep.subr.mxu0 0.0
    %434 = vmatpush1.xpose.msra.mxu0 0.0
    %435 = vmatprep.subr.mxu0 0.0
    %436 = vmatpush1.xpose.msra.mxu0 0.0
    %437 = vmatprep.subr.mxu0 0.0
    %438 = vmatpush1.xpose.msra.mxu0 0.0
    %439 = vmatprep.subr.mxu0 0.0
    %440 = vmatpush1.xpose.msra.mxu0 0.0
    %441 = vmatprep.subr.mxu0 0.0
    %442 = vmatpush1.xpose.msra.mxu0 0.0
    %443 = vmatprep.subr.mxu0 0.0
    %444 = vmatpush1.xpose.msra.mxu0 0.0
    %445 = vmatprep.subr.mxu0 0.0
    %446 = vmatpush1.xpose.msra.mxu0 0.0
    %447 = vmatprep.subr.mxu0 0.0
    %448 = vmatpush1.xpose.msra.mxu0 0.0
    %449 = vmatprep.subr.mxu0 0.0
    %450 = vmatpush1.xpose.msra.mxu0 0.0
    %451 = vmatprep.subr.mxu0 0.0
    %452 = vmatpush1.xpose.msra.mxu0 0.0
    %453 = vmatprep.subr.mxu0 0.0
    %454 = vmatpush1.xpose.msra.mxu0 0.0
    %455 = vmatprep.subr.mxu0 0.0
    %456 = vmatpush1.xpose.msra.mxu0 0.0
    %457 = vmatprep.subr.mxu0 0.0
    %458 = vmatpush1.xpose.msra.mxu0 %v427
    %459 = vmatprep.subr.mxu0 0.0
    %460 = vmatpush1.xpose.msra.mxu0 %v425
    %461 = vmatprep.subr.mxu0 0.0
    %462 = vmatpush2.xpose.msra.mxu0 0.0
    %463 = vmatprep.subr.mxu0 0.0
    %464 = vmatpush2.xpose.msra.mxu0 0.0
    %465 = vmatprep.subr.mxu0 0.0
    %466 = vmatpush2.xpose.msra.mxu0 0.0
    %467 = vmatprep.subr.mxu0 0.0
    %468 = vmatpush2.xpose.msra.mxu0 0.0
    %469 = vmatprep.subr.mxu0 0.0
    %470 = vmatpush2.xpose.msra.mxu0 0.0
    %471 = vmatprep.subr.mxu0 0.0
    %472 = vmatpush2.xpose.msra.mxu0 0.0
    %473 = vmatprep.subr.mxu0 0.0
    %474 = vmatpush2.xpose.msra.mxu0 0.0
    %475 = vmatprep.subr.mxu0 0.0
    %476 = vmatpush2.xpose.msra.mxu0 0.0
    %477 = vmatprep.subr.mxu0 0.0
    %478 = vmatpush2.xpose.msra.mxu0 0.0
    %479 = vmatprep.subr.mxu0 0.0
    %480 = vmatpush2.xpose.msra.mxu0 0.0
    %481 = vmatprep.subr.mxu0 0.0
    %482 = vmatpush2.xpose.msra.mxu0 0.0
    %483 = vmatprep.subr.mxu0 0.0
    %484 = vmatpush2.xpose.msra.mxu0 0.0
    %485 = vmatprep.subr.mxu0 0.0
    %486 = vmatpush2.xpose.msra.mxu0 0.0
    %487 = vmatprep.subr.mxu0 0.0
    %488 = vmatpush2.xpose.msra.mxu0 0.0
    %489 = vmatprep.subr.mxu0 0.0
    %490 = vmatpush2.xpose.msra.mxu0 0.0
    %491 = vmatprep.subr.mxu0 0.0
    %492 = vmatpush2.xpose.msra.mxu0 0.0
    %493 = vmatprep.mubr.f32.mxu0 0.0
    %494 = vmatmul.mubr.f32.gmra.mxu0 %v421
    %v495 = vpop.f32.mrf.mxu0
    %v496 = vadd.f32 0.0, %v495
    %v497 = vpop.f32.mrf.mxu0
    %498 = vmatprep.mubr.f32.mxu0 0.0
    %499 = vmatmul.mubr.f32.gmra.mxu0 %v423
    %v500 = vpop.f32.mrf.mxu0
    %v501 = vadd.f32 0.0, %v500
    %v502 = vpop.f32.mrf.mxu0
    %503 = vdwg.mxu0
    %504 = vrot.lane.b32.xlu0 %v186, 64
    %v505 = vpop.permute.xlu0 %504
    %506 = vrot.lane.b32.xlu0 %v188, 64
    %v507 = vpop.permute.xlu0 %506
    %v508 = vsel %vm333, %v186, 0
    %v510 = vsel %vm333, %v188, 0
    %v512 = vsel %vm333, %v505, 0
    %v514 = vsel %vm333, %v507, 0
    %516 = vmatprep.subr.mxu0 0.0
    %517 = vmatpush1.xpose.msra.mxu0 0.0
    %518 = vmatprep.subr.mxu0 0.0
    %519 = vmatpush1.xpose.msra.mxu0 0.0
    %520 = vmatprep.subr.mxu0 0.0
    %521 = vmatpush1.xpose.msra.mxu0 0.0
    %522 = vmatprep.subr.mxu0 0.0
    %523 = vmatpush1.xpose.msra.mxu0 0.0
    %524 = vmatprep.subr.mxu0 0.0
    %525 = vmatpush1.xpose.msra.mxu0 0.0
    %526 = vmatprep.subr.mxu0 0.0
    %527 = vmatpush1.xpose.msra.mxu0 0.0
    %528 = vmatprep.subr.mxu0 0.0
    %529 = vmatpush1.xpose.msra.mxu0 0.0
    %530 = vmatprep.subr.mxu0 0.0
    %531 = vmatpush1.xpose.msra.mxu0 0.0
    %532 = vmatprep.subr.mxu0 0.0
    %533 = vmatpush1.xpose.msra.mxu0 0.0
    %534 = vmatprep.subr.mxu0 0.0
    %535 = vmatpush1.xpose.msra.mxu0 0.0
    %536 = vmatprep.subr.mxu0 0.0
    %537 = vmatpush1.xpose.msra.mxu0 0.0
    %538 = vmatprep.subr.mxu0 0.0
    %539 = vmatpush1.xpose.msra.mxu0 0.0
    %540 = vmatprep.subr.mxu0 0.0
    %541 = vmatpush1.xpose.msra.mxu0 0.0
    %542 = vmatprep.subr.mxu0 0.0
    %543 = vmatpush1.xpose.msra.mxu0 0.0
    %544 = vmatprep.subr.mxu0 0.0
    %545 = vmatpush1.xpose.msra.mxu0 %v514
    %546 = vmatprep.subr.mxu0 0.0
    %547 = vmatpush1.xpose.msra.mxu0 %v512
    %548 = vmatprep.subr.mxu0 0.0
    %549 = vmatpush2.xpose.msra.mxu0 0.0
    %550 = vmatprep.subr.mxu0 0.0
    %551 = vmatpush2.xpose.msra.mxu0 0.0
    %552 = vmatprep.subr.mxu0 0.0
    %553 = vmatpush2.xpose.msra.mxu0 0.0
    %554 = vmatprep.subr.mxu0 0.0
    %555 = vmatpush2.xpose.msra.mxu0 0.0
    %556 = vmatprep.subr.mxu0 0.0
    %557 = vmatpush2.xpose.msra.mxu0 0.0
    %558 = vmatprep.subr.mxu0 0.0
    %559 = vmatpush2.xpose.msra.mxu0 0.0
    %560 = vmatprep.subr.mxu0 0.0
    %561 = vmatpush2.xpose.msra.mxu0 0.0
    %562 = vmatprep.subr.mxu0 0.0
    %563 = vmatpush2.xpose.msra.mxu0 0.0
    %564 = vmatprep.subr.mxu0 0.0
    %565 = vmatpush2.xpose.msra.mxu0 0.0
    %566 = vmatprep.subr.mxu0 0.0
    %567 = vmatpush2.xpose.msra.mxu0 0.0
    %568 = vmatprep.subr.mxu0 0.0
    %569 = vmatpush2.xpose.msra.mxu0 0.0
    %570 = vmatprep.subr.mxu0 0.0
    %571 = vmatpush2.xpose.msra.mxu0 0.0
    %572 = vmatprep.subr.mxu0 0.0
    %573 = vmatpush2.xpose.msra.mxu0 0.0
    %574 = vmatprep.subr.mxu0 0.0
    %575 = vmatpush2.xpose.msra.mxu0 0.0
    %576 = vmatprep.subr.mxu0 0.0
    %577 = vmatpush2.xpose.msra.mxu0 0.0
    %578 = vmatprep.subr.mxu0 0.0
    %579 = vmatpush2.xpose.msra.mxu0 0.0
    %580 = vmatprep.mubr.f32.mxu0 0.0
    %581 = vmatmul.mubr.f32.gmra.mxu0 %v508
    %v582 = vpop.f32.mrf.mxu0
    %v583 = vadd.f32 0.0, %v582
    %v584 = vpop.f32.mrf.mxu0
    %585 = vmatprep.mubr.f32.mxu0 0.0
    %586 = vmatmul.mubr.f32.gmra.mxu0 %v510
    %v587 = vpop.f32.mrf.mxu0
    %v588 = vadd.f32 0.0, %v587
    %v589 = vpop.f32.mrf.mxu0
    %590 = vdwg.mxu0
    %591 = vrot.lane.b32.xlu0 %v190, 64
    %v592 = vpop.permute.xlu0 %591
    %593 = vrot.lane.b32.xlu0 %v192, 64
    %v594 = vpop.permute.xlu0 %593
    %v595 = vsel %vm333, %v190, 0
    %v597 = vsel %vm333, %v192, 0
    %v599 = vsel %vm333, %v592, 0
    %v601 = vsel %vm333, %v594, 0
    %603 = vmatprep.subr.mxu0 0.0
    %604 = vmatpush1.xpose.msra.mxu0 0.0
    %605 = vmatprep.subr.mxu0 0.0
    %606 = vmatpush1.xpose.msra.mxu0 0.0
    %607 = vmatprep.subr.mxu0 0.0
    %608 = vmatpush1.xpose.msra.mxu0 0.0
    %609 = vmatprep.subr.mxu0 0.0
    %610 = vmatpush1.xpose.msra.mxu0 0.0
    %611 = vmatprep.subr.mxu0 0.0
    %612 = vmatpush1.xpose.msra.mxu0 0.0
    %613 = vmatprep.subr.mxu0 0.0
    %614 = vmatpush1.xpose.msra.mxu0 0.0
    %615 = vmatprep.subr.mxu0 0.0
    %616 = vmatpush1.xpose.msra.mxu0 0.0
    %617 = vmatprep.subr.mxu0 0.0
    %618 = vmatpush1.xpose.msra.mxu0 0.0
    %619 = vmatprep.subr.mxu0 0.0
    %620 = vmatpush1.xpose.msra.mxu0 0.0
    %621 = vmatprep.subr.mxu0 0.0
    %622 = vmatpush1.xpose.msra.mxu0 0.0
    %623 = vmatprep.subr.mxu0 0.0
    %624 = vmatpush1.xpose.msra.mxu0 0.0
    %625 = vmatprep.subr.mxu0 0.0
    %626 = vmatpush1.xpose.msra.mxu0 0.0
    %627 = vmatprep.subr.mxu0 0.0
    %628 = vmatpush1.xpose.msra.mxu0 0.0
    %629 = vmatprep.subr.mxu0 0.0
    %630 = vmatpush1.xpose.msra.mxu0 0.0
    %631 = vmatprep.subr.mxu0 0.0
    %632 = vmatpush1.xpose.msra.mxu0 %v601
    %633 = vmatprep.subr.mxu0 0.0
    %634 = vmatpush1.xpose.msra.mxu0 %v599
    %635 = vmatprep.subr.mxu0 0.0
    %636 = vmatpush2.xpose.msra.mxu0 0.0
    %637 = vmatprep.subr.mxu0 0.0
    %638 = vmatpush2.xpose.msra.mxu0 0.0
    %639 = vmatprep.subr.mxu0 0.0
    %640 = vmatpush2.xpose.msra.mxu0 0.0
    %641 = vmatprep.subr.mxu0 0.0
    %642 = vmatpush2.xpose.msra.mxu0 0.0
    %643 = vmatprep.subr.mxu0 0.0
    %644 = vmatpush2.xpose.msra.mxu0 0.0
    %645 = vmatprep.subr.mxu0 0.0
    %646 = vmatpush2.xpose.msra.mxu0 0.0
    %647 = vmatprep.subr.mxu0 0.0
    %648 = vmatpush2.xpose.msra.mxu0 0.0
    %649 = vmatprep.subr.mxu0 0.0
    %650 = vmatpush2.xpose.msra.mxu0 0.0
    %651 = vmatprep.subr.mxu0 0.0
    %652 = vmatpush2.xpose.msra.mxu0 0.0
    %653 = vmatprep.subr.mxu0 0.0
    %654 = vmatpush2.xpose.msra.mxu0 0.0
    %655 = vmatprep.subr.mxu0 0.0
    %656 = vmatpush2.xpose.msra.mxu0 0.0
    %657 = vmatprep.subr.mxu0 0.0
    %658 = vmatpush2.xpose.msra.mxu0 0.0
    %659 = vmatprep.subr.mxu0 0.0
    %660 = vmatpush2.xpose.msra.mxu0 0.0
    %661 = vmatprep.subr.mxu0 0.0
    %662 = vmatpush2.xpose.msra.mxu0 0.0
    %663 = vmatprep.subr.mxu0 0.0
    %664 = vmatpush2.xpose.msra.mxu0 0.0
    %665 = vmatprep.subr.mxu0 0.0
    %666 = vmatpush2.xpose.msra.mxu0 0.0
    %667 = vmatprep.mubr.f32.mxu0 0.0
    %668 = vmatmul.mubr.f32.gmra.mxu0 %v595
    %v669 = vpop.f32.mrf.mxu0
    %v670 = vadd.f32 0.0, %v669
    %v671 = vpop.f32.mrf.mxu0
    %672 = vmatprep.mubr.f32.mxu0 0.0
    %673 = vmatmul.mubr.f32.gmra.mxu0 %v597
    %v674 = vpop.f32.mrf.mxu0
    %v675 = vadd.f32 0.0, %v674
    %v676 = vpop.f32.mrf.mxu0
    %677 = vdwg.mxu0
    %678 = vrot.lane.b32.xlu0 %v194, 64
    %v679 = vpop.permute.xlu0 %678
    %680 = vrot.lane.b32.xlu0 %v196, 64
    %v681 = vpop.permute.xlu0 %680
    %v682 = vsel %vm333, %v194, 0
    %v684 = vsel %vm333, %v196, 0
    %v686 = vsel %vm333, %v679, 0
    %v688 = vsel %vm333, %v681, 0
    %690 = vmatprep.subr.mxu0 0.0
    %691 = vmatpush1.xpose.msra.mxu0 0.0
    %692 = vmatprep.subr.mxu0 0.0
    %693 = vmatpush1.xpose.msra.mxu0 0.0
    %694 = vmatprep.subr.mxu0 0.0
    %695 = vmatpush1.xpose.msra.mxu0 0.0
    %696 = vmatprep.subr.mxu0 0.0
    %697 = vmatpush1.xpose.msra.mxu0 0.0
    %698 = vmatprep.subr.mxu0 0.0
    %699 = vmatpush1.xpose.msra.mxu0 0.0
    %700 = vmatprep.subr.mxu0 0.0
    %701 = vmatpush1.xpose.msra.mxu0 0.0
    %702 = vmatprep.subr.mxu0 0.0
    %703 = vmatpush1.xpose.msra.mxu0 0.0
    %704 = vmatprep.subr.mxu0 0.0
    %705 = vmatpush1.xpose.msra.mxu0 0.0
    %706 = vmatprep.subr.mxu0 0.0
    %707 = vmatpush1.xpose.msra.mxu0 0.0
    %708 = vmatprep.subr.mxu0 0.0
    %709 = vmatpush1.xpose.msra.mxu0 0.0
    %710 = vmatprep.subr.mxu0 0.0
    %711 = vmatpush1.xpose.msra.mxu0 0.0
    %712 = vmatprep.subr.mxu0 0.0
    %713 = vmatpush1.xpose.msra.mxu0 0.0
    %714 = vmatprep.subr.mxu0 0.0
    %715 = vmatpush1.xpose.msra.mxu0 0.0
    %716 = vmatprep.subr.mxu0 0.0
    %717 = vmatpush1.xpose.msra.mxu0 0.0
    %718 = vmatprep.subr.mxu0 0.0
    %719 = vmatpush1.xpose.msra.mxu0 %v688
    %720 = vmatprep.subr.mxu0 0.0
    %721 = vmatpush1.xpose.msra.mxu0 %v686
    %722 = vmatprep.subr.mxu0 0.0
    %723 = vmatpush2.xpose.msra.mxu0 0.0
    %724 = vmatprep.subr.mxu0 0.0
    %725 = vmatpush2.xpose.msra.mxu0 0.0
    %726 = vmatprep.subr.mxu0 0.0
    %727 = vmatpush2.xpose.msra.mxu0 0.0
    %728 = vmatprep.subr.mxu0 0.0
    %729 = vmatpush2.xpose.msra.mxu0 0.0
    %730 = vmatprep.subr.mxu0 0.0
    %731 = vmatpush2.xpose.msra.mxu0 0.0
    %732 = vmatprep.subr.mxu0 0.0
    %733 = vmatpush2.xpose.msra.mxu0 0.0
    %734 = vmatprep.subr.mxu0 0.0
    %735 = vmatpush2.xpose.msra.mxu0 0.0
    %736 = vmatprep.subr.mxu0 0.0
    %737 = vmatpush2.xpose.msra.mxu0 0.0
    %738 = vmatprep.subr.mxu0 0.0
    %739 = vmatpush2.xpose.msra.mxu0 0.0
    %740 = vmatprep.subr.mxu0 0.0
    %741 = vmatpush2.xpose.msra.mxu0 0.0
    %742 = vmatprep.subr.mxu0 0.0
    %743 = vmatpush2.xpose.msra.mxu0 0.0
    %744 = vmatprep.subr.mxu0 0.0
    %745 = vmatpush2.xpose.msra.mxu0 0.0
    %746 = vmatprep.subr.mxu0 0.0
    %747 = vmatpush2.xpose.msra.mxu0 0.0
    %748 = vmatprep.subr.mxu0 0.0
    %749 = vmatpush2.xpose.msra.mxu0 0.0
    %750 = vmatprep.subr.mxu0 0.0
    %751 = vmatpush2.xpose.msra.mxu0 0.0
    %752 = vmatprep.subr.mxu0 0.0
    %753 = vmatpush2.xpose.msra.mxu0 0.0
    %754 = vmatprep.mubr.f32.mxu0 0.0
    %755 = vmatmul.mubr.f32.gmra.mxu0 %v682
    %v756 = vpop.f32.mrf.mxu0
    %v757 = vadd.f32 0.0, %v756
    %v758 = vpop.f32.mrf.mxu0
    %759 = vmatprep.mubr.f32.mxu0 0.0
    %760 = vmatmul.mubr.f32.gmra.mxu0 %v684
    %v761 = vpop.f32.mrf.mxu0
    %v762 = vadd.f32 0.0, %v761
    %v763 = vpop.f32.mrf.mxu0
    %764 = vdwg.mxu0
    %765 = vrot.lane.b32.xlu0 %v198, 64
    %v766 = vpop.permute.xlu0 %765
    %767 = vrot.lane.b32.xlu0 %v200, 64
    %v768 = vpop.permute.xlu0 %767
    %v769 = vsel %vm333, %v198, 0
    %v771 = vsel %vm333, %v200, 0
    %v773 = vsel %vm333, %v766, 0
    %v775 = vsel %vm333, %v768, 0
    %777 = vmatprep.subr.mxu0 0.0
    %778 = vmatpush1.xpose.msra.mxu0 0.0
    %779 = vmatprep.subr.mxu0 0.0
    %780 = vmatpush1.xpose.msra.mxu0 0.0
    %781 = vmatprep.subr.mxu0 0.0
    %782 = vmatpush1.xpose.msra.mxu0 0.0
    %783 = vmatprep.subr.mxu0 0.0
    %784 = vmatpush1.xpose.msra.mxu0 0.0
    %785 = vmatprep.subr.mxu0 0.0
    %786 = vmatpush1.xpose.msra.mxu0 0.0
    %787 = vmatprep.subr.mxu0 0.0
    %788 = vmatpush1.xpose.msra.mxu0 0.0
    %789 = vmatprep.subr.mxu0 0.0
    %790 = vmatpush1.xpose.msra.mxu0 0.0
    %791 = vmatprep.subr.mxu0 0.0
    %792 = vmatpush1.xpose.msra.mxu0 0.0
    %793 = vmatprep.subr.mxu0 0.0
    %794 = vmatpush1.xpose.msra.mxu0 0.0
    %795 = vmatprep.subr.mxu0 0.0
    %796 = vmatpush1.xpose.msra.mxu0 0.0
    %797 = vmatprep.subr.mxu0 0.0
    %798 = vmatpush1.xpose.msra.mxu0 0.0
    %799 = vmatprep.subr.mxu0 0.0
    %800 = vmatpush1.xpose.msra.mxu0 0.0
    %801 = vmatprep.subr.mxu0 0.0
    %802 = vmatpush1.xpose.msra.mxu0 0.0
    %803 = vmatprep.subr.mxu0 0.0
    %804 = vmatpush1.xpose.msra.mxu0 0.0
    %805 = vmatprep.subr.mxu0 0.0
    %806 = vmatpush1.xpose.msra.mxu0 %v775
    %807 = vmatprep.subr.mxu0 0.0
    %808 = vmatpush1.xpose.msra.mxu0 %v773
    %809 = vmatprep.subr.mxu0 0.0
    %810 = vmatpush2.xpose.msra.mxu0 0.0
    %811 = vmatprep.subr.mxu0 0.0
    %812 = vmatpush2.xpose.msra.mxu0 0.0
    %813 = vmatprep.subr.mxu0 0.0
    %814 = vmatpush2.xpose.msra.mxu0 0.0
    %815 = vmatprep.subr.mxu0 0.0
    %816 = vmatpush2.xpose.msra.mxu0 0.0
    %817 = vmatprep.subr.mxu0 0.0
    %818 = vmatpush2.xpose.msra.mxu0 0.0
    %819 = vmatprep.subr.mxu0 0.0
    %820 = vmatpush2.xpose.msra.mxu0 0.0
    %821 = vmatprep.subr.mxu0 0.0
    %822 = vmatpush2.xpose.msra.mxu0 0.0
    %823 = vmatprep.subr.mxu0 0.0
    %824 = vmatpush2.xpose.msra.mxu0 0.0
    %825 = vmatprep.subr.mxu0 0.0
    %826 = vmatpush2.xpose.msra.mxu0 0.0
    %827 = vmatprep.subr.mxu0 0.0
    %828 = vmatpush2.xpose.msra.mxu0 0.0
    %829 = vmatprep.subr.mxu0 0.0
    %830 = vmatpush2.xpose.msra.mxu0 0.0
    %831 = vmatprep.subr.mxu0 0.0
    %832 = vmatpush2.xpose.msra.mxu0 0.0
    %833 = vmatprep.subr.mxu0 0.0
    %834 = vmatpush2.xpose.msra.mxu0 0.0
    %835 = vmatprep.subr.mxu0 0.0
    %836 = vmatpush2.xpose.msra.mxu0 0.0
    %837 = vmatprep.subr.mxu0 0.0
    %838 = vmatpush2.xpose.msra.mxu0 0.0
    %839 = vmatprep.subr.mxu0 0.0
    %840 = vmatpush2.xpose.msra.mxu0 0.0
    %841 = vmatprep.mubr.f32.mxu0 0.0
    %842 = vmatmul.mubr.f32.gmra.mxu0 %v769
    %v843 = vpop.f32.mrf.mxu0
    %v844 = vadd.f32 0.0, %v843
    %v845 = vpop.f32.mrf.mxu0
    %846 = vmatprep.mubr.f32.mxu0 0.0
    %847 = vmatmul.mubr.f32.gmra.mxu0 %v771
    %v848 = vpop.f32.mrf.mxu0
    %v849 = vadd.f32 0.0, %v848
    %v850 = vpop.f32.mrf.mxu0
    %851 = vdwg.mxu0
    %852 = vrot.lane.b32.xlu0 %v202, 64
    %v853 = vpop.permute.xlu0 %852
    %854 = vrot.lane.b32.xlu0 %v204, 64
    %v855 = vpop.permute.xlu0 %854
    %v856 = vsel %vm333, %v202, 0
    %v858 = vsel %vm333, %v204, 0
    %v860 = vsel %vm333, %v853, 0
    %v862 = vsel %vm333, %v855, 0
    %864 = vmatprep.subr.mxu0 0.0
    %865 = vmatpush1.xpose.msra.mxu0 0.0
    %866 = vmatprep.subr.mxu0 0.0
    %867 = vmatpush1.xpose.msra.mxu0 0.0
    %868 = vmatprep.subr.mxu0 0.0
    %869 = vmatpush1.xpose.msra.mxu0 0.0
    %870 = vmatprep.subr.mxu0 0.0
    %871 = vmatpush1.xpose.msra.mxu0 0.0
    %872 = vmatprep.subr.mxu0 0.0
    %873 = vmatpush1.xpose.msra.mxu0 0.0
    %874 = vmatprep.subr.mxu0 0.0
    %875 = vmatpush1.xpose.msra.mxu0 0.0
    %876 = vmatprep.subr.mxu0 0.0
    %877 = vmatpush1.xpose.msra.mxu0 0.0
    %878 = vmatprep.subr.mxu0 0.0
    %879 = vmatpush1.xpose.msra.mxu0 0.0
    %880 = vmatprep.subr.mxu0 0.0
    %881 = vmatpush1.xpose.msra.mxu0 0.0
    %882 = vmatprep.subr.mxu0 0.0
    %883 = vmatpush1.xpose.msra.mxu0 0.0
    %884 = vmatprep.subr.mxu0 0.0
    %885 = vmatpush1.xpose.msra.mxu0 0.0
    %886 = vmatprep.subr.mxu0 0.0
    %887 = vmatpush1.xpose.msra.mxu0 0.0
    %888 = vmatprep.subr.mxu0 0.0
    %889 = vmatpush1.xpose.msra.mxu0 0.0
    %890 = vmatprep.subr.mxu0 0.0
    %891 = vmatpush1.xpose.msra.mxu0 0.0
    %892 = vmatprep.subr.mxu0 0.0
    %893 = vmatpush1.xpose.msra.mxu0 %v862
    %894 = vmatprep.subr.mxu0 0.0
    %895 = vmatpush1.xpose.msra.mxu0 %v860
    %896 = vmatprep.subr.mxu0 0.0
    %897 = vmatpush2.xpose.msra.mxu0 0.0
    %898 = vmatprep.subr.mxu0 0.0
    %899 = vmatpush2.xpose.msra.mxu0 0.0
    %900 = vmatprep.subr.mxu0 0.0
    %901 = vmatpush2.xpose.msra.mxu0 0.0
    %902 = vmatprep.subr.mxu0 0.0
    %903 = vmatpush2.xpose.msra.mxu0 0.0
    %904 = vmatprep.subr.mxu0 0.0
    %905 = vmatpush2.xpose.msra.mxu0 0.0
    %906 = vmatprep.subr.mxu0 0.0
    %907 = vmatpush2.xpose.msra.mxu0 0.0
    %908 = vmatprep.subr.mxu0 0.0
    %909 = vmatpush2.xpose.msra.mxu0 0.0
    %910 = vmatprep.subr.mxu0 0.0
    %911 = vmatpush2.xpose.msra.mxu0 0.0
    %912 = vmatprep.subr.mxu0 0.0
    %913 = vmatpush2.xpose.msra.mxu0 0.0
    %914 = vmatprep.subr.mxu0 0.0
    %915 = vmatpush2.xpose.msra.mxu0 0.0
    %916 = vmatprep.subr.mxu0 0.0
    %917 = vmatpush2.xpose.msra.mxu0 0.0
    %918 = vmatprep.subr.mxu0 0.0
    %919 = vmatpush2.xpose.msra.mxu0 0.0
    %920 = vmatprep.subr.mxu0 0.0
    %921 = vmatpush2.xpose.msra.mxu0 0.0
    %922 = vmatprep.subr.mxu0 0.0
    %923 = vmatpush2.xpose.msra.mxu0 0.0
    %924 = vmatprep.subr.mxu0 0.0
    %925 = vmatpush2.xpose.msra.mxu0 0.0
    %926 = vmatprep.subr.mxu0 0.0
    %927 = vmatpush2.xpose.msra.mxu0 0.0
    %928 = vmatprep.mubr.f32.mxu0 0.0
    %929 = vmatmul.mubr.f32.gmra.mxu0 %v856
    %v930 = vpop.f32.mrf.mxu0
    %v931 = vadd.f32 0.0, %v930
    %v932 = vpop.f32.mrf.mxu0
    %933 = vmatprep.mubr.f32.mxu0 0.0
    %934 = vmatmul.mubr.f32.gmra.mxu0 %v858
    %v935 = vpop.f32.mrf.mxu0
    %v936 = vadd.f32 0.0, %v935
    %v937 = vpop.f32.mrf.mxu0
    %938 = vdwg.mxu0
    %939 = vrot.lane.b32.xlu0 %v206, 64
    %v940 = vpop.permute.xlu0 %939
    %941 = vrot.lane.b32.xlu0 %v208, 64
    %v942 = vpop.permute.xlu0 %941
    %v943 = vsel %vm333, %v206, 0
    %v945 = vsel %vm333, %v208, 0
    %v947 = vsel %vm333, %v940, 0
    %v949 = vsel %vm333, %v942, 0
    %951 = vmatprep.subr.mxu0 0.0
    %952 = vmatpush1.xpose.msra.mxu0 0.0
    %953 = vmatprep.subr.mxu0 0.0
    %954 = vmatpush1.xpose.msra.mxu0 0.0
    %955 = vmatprep.subr.mxu0 0.0
    %956 = vmatpush1.xpose.msra.mxu0 0.0
    %957 = vmatprep.subr.mxu0 0.0
    %958 = vmatpush1.xpose.msra.mxu0 0.0
    %959 = vmatprep.subr.mxu0 0.0
    %960 = vmatpush1.xpose.msra.mxu0 0.0
    %961 = vmatprep.subr.mxu0 0.0
    %962 = vmatpush1.xpose.msra.mxu0 0.0
    %963 = vmatprep.subr.mxu0 0.0
    %964 = vmatpush1.xpose.msra.mxu0 0.0
    %965 = vmatprep.subr.mxu0 0.0
    %966 = vmatpush1.xpose.msra.mxu0 0.0
    %967 = vmatprep.subr.mxu0 0.0
    %968 = vmatpush1.xpose.msra.mxu0 0.0
    %969 = vmatprep.subr.mxu0 0.0
    %970 = vmatpush1.xpose.msra.mxu0 0.0
    %971 = vmatprep.subr.mxu0 0.0
    %972 = vmatpush1.xpose.msra.mxu0 0.0
    %973 = vmatprep.subr.mxu0 0.0
    %974 = vmatpush1.xpose.msra.mxu0 0.0
    %975 = vmatprep.subr.mxu0 0.0
    %976 = vmatpush1.xpose.msra.mxu0 0.0
    %977 = vmatprep.subr.mxu0 0.0
    %978 = vmatpush1.xpose.msra.mxu0 0.0
    %979 = vmatprep.subr.mxu0 0.0
    %980 = vmatpush1.xpose.msra.mxu0 %v949
    %981 = vmatprep.subr.mxu0 0.0
    %982 = vmatpush1.xpose.msra.mxu0 %v947
    %983 = vmatprep.subr.mxu0 0.0
    %984 = vmatpush2.xpose.msra.mxu0 0.0
    %985 = vmatprep.subr.mxu0 0.0
    %986 = vmatpush2.xpose.msra.mxu0 0.0
    %987 = vmatprep.subr.mxu0 0.0
    %988 = vmatpush2.xpose.msra.mxu0 0.0
    %989 = vmatprep.subr.mxu0 0.0
    %990 = vmatpush2.xpose.msra.mxu0 0.0
    %991 = vmatprep.subr.mxu0 0.0
    %992 = vmatpush2.xpose.msra.mxu0 0.0
    %993 = vmatprep.subr.mxu0 0.0
    %994 = vmatpush2.xpose.msra.mxu0 0.0
    %995 = vmatprep.subr.mxu0 0.0
    %996 = vmatpush2.xpose.msra.mxu0 0.0
    %997 = vmatprep.subr.mxu0 0.0
    %998 = vmatpush2.xpose.msra.mxu0 0.0
    %999 = vmatprep.subr.mxu0 0.0
    %1000 = vmatpush2.xpose.msra.mxu0 0.0
    %1001 = vmatprep.subr.mxu0 0.0
    %1002 = vmatpush2.xpose.msra.mxu0 0.0
    %1003 = vmatprep.subr.mxu0 0.0
    %1004 = vmatpush2.xpose.msra.mxu0 0.0
    %1005 = vmatprep.subr.mxu0 0.0
    %1006 = vmatpush2.xpose.msra.mxu0 0.0
    %1007 = vmatprep.subr.mxu0 0.0
    %1008 = vmatpush2.xpose.msra.mxu0 0.0
    %1009 = vmatprep.subr.mxu0 0.0
    %1010 = vmatpush2.xpose.msra.mxu0 0.0
    %1011 = vmatprep.subr.mxu0 0.0
    %1012 = vmatpush2.xpose.msra.mxu0 0.0
    %1013 = vmatprep.subr.mxu0 0.0
    %1014 = vmatpush2.xpose.msra.mxu0 0.0
    %1015 = vmatprep.mubr.f32.mxu0 0.0
    %1016 = vmatmul.mubr.f32.gmra.mxu0 %v943
    %v1017 = vpop.f32.mrf.mxu0
    %v1018 = vadd.f32 0.0, %v1017
    %v1019 = vpop.f32.mrf.mxu0
    %1020 = vmatprep.mubr.f32.mxu0 0.0
    %1021 = vmatmul.mubr.f32.gmra.mxu0 %v945
    %v1022 = vpop.f32.mrf.mxu0
    %v1023 = vadd.f32 0.0, %v1022
    %v1024 = vpop.f32.mrf.mxu0
    %1025 = vdwg.mxu0
    %1026 = vrot.lane.b32.xlu0 %v210, 64
    %v1027 = vpop.permute.xlu0 %1026
    %1028 = vrot.lane.b32.xlu0 %v212, 64
    %v1029 = vpop.permute.xlu0 %1028
    %v1030 = vsel %vm333, %v210, 0
    %v1032 = vsel %vm333, %v212, 0
    %v1034 = vsel %vm333, %v1027, 0
    %v1036 = vsel %vm333, %v1029, 0
    %1038 = vmatprep.subr.mxu0 0.0
    %1039 = vmatpush1.xpose.msra.mxu0 0.0
    %1040 = vmatprep.subr.mxu0 0.0
    %1041 = vmatpush1.xpose.msra.mxu0 0.0
    %1042 = vmatprep.subr.mxu0 0.0
    %1043 = vmatpush1.xpose.msra.mxu0 0.0
    %1044 = vmatprep.subr.mxu0 0.0
    %1045 = vmatpush1.xpose.msra.mxu0 0.0
    %1046 = vmatprep.subr.mxu0 0.0
    %1047 = vmatpush1.xpose.msra.mxu0 0.0
    %1048 = vmatprep.subr.mxu0 0.0
    %1049 = vmatpush1.xpose.msra.mxu0 0.0
    %1050 = vmatprep.subr.mxu0 0.0
    %1051 = vmatpush1.xpose.msra.mxu0 0.0
    %1052 = vmatprep.subr.mxu0 0.0
    %1053 = vmatpush1.xpose.msra.mxu0 0.0
    %1054 = vmatprep.subr.mxu0 0.0
    %1055 = vmatpush1.xpose.msra.mxu0 0.0
    %1056 = vmatprep.subr.mxu0 0.0
    %1057 = vmatpush1.xpose.msra.mxu0 0.0
    %1058 = vmatprep.subr.mxu0 0.0
    %1059 = vmatpush1.xpose.msra.mxu0 0.0
    %1060 = vmatprep.subr.mxu0 0.0
    %1061 = vmatpush1.xpose.msra.mxu0 0.0
    %1062 = vmatprep.subr.mxu0 0.0
    %1063 = vmatpush1.xpose.msra.mxu0 0.0
    %1064 = vmatprep.subr.mxu0 0.0
    %1065 = vmatpush1.xpose.msra.mxu0 0.0
    %1066 = vmatprep.subr.mxu0 0.0
    %1067 = vmatpush1.xpose.msra.mxu0 %v1036
    %1068 = vmatprep.subr.mxu0 0.0
    %1069 = vmatpush1.xpose.msra.mxu0 %v1034
    %1070 = vmatprep.subr.mxu0 0.0
    %1071 = vmatpush2.xpose.msra.mxu0 0.0
    %1072 = vmatprep.subr.mxu0 0.0
    %1073 = vmatpush2.xpose.msra.mxu0 0.0
    %1074 = vmatprep.subr.mxu0 0.0
    %1075 = vmatpush2.xpose.msra.mxu0 0.0
    %1076 = vmatprep.subr.mxu0 0.0
    %1077 = vmatpush2.xpose.msra.mxu0 0.0
    %1078 = vmatprep.subr.mxu0 0.0
    %1079 = vmatpush2.xpose.msra.mxu0 0.0
    %1080 = vmatprep.subr.mxu0 0.0
    %1081 = vmatpush2.xpose.msra.mxu0 0.0
    %1082 = vmatprep.subr.mxu0 0.0
    %1083 = vmatpush2.xpose.msra.mxu0 0.0
    %1084 = vmatprep.subr.mxu0 0.0
    %1085 = vmatpush2.xpose.msra.mxu0 0.0
    %1086 = vmatprep.subr.mxu0 0.0
    %1087 = vmatpush2.xpose.msra.mxu0 0.0
    %1088 = vmatprep.subr.mxu0 0.0
    %1089 = vmatpush2.xpose.msra.mxu0 0.0
    %1090 = vmatprep.subr.mxu0 0.0
    %1091 = vmatpush2.xpose.msra.mxu0 0.0
    %1092 = vmatprep.subr.mxu0 0.0
    %1093 = vmatpush2.xpose.msra.mxu0 0.0
    %1094 = vmatprep.subr.mxu0 0.0
    %1095 = vmatpush2.xpose.msra.mxu0 0.0
    %1096 = vmatprep.subr.mxu0 0.0
    %1097 = vmatpush2.xpose.msra.mxu0 0.0
    %1098 = vmatprep.subr.mxu0 0.0
    %1099 = vmatpush2.xpose.msra.mxu0 0.0
    %1100 = vmatprep.subr.mxu0 0.0
    %1101 = vmatpush2.xpose.msra.mxu0 0.0
    %1102 = vmatprep.mubr.f32.mxu0 0.0
    %1103 = vmatmul.mubr.f32.gmra.mxu0 %v1030
    %v1104 = vpop.f32.mrf.mxu0
    %v1105 = vadd.f32 0.0, %v1104
    %v1106 = vpop.f32.mrf.mxu0
    %1107 = vmatprep.mubr.f32.mxu0 0.0
    %1108 = vmatmul.mubr.f32.gmra.mxu0 %v1032
    %v1109 = vpop.f32.mrf.mxu0
    %v1110 = vadd.f32 0.0, %v1109
    %v1111 = vpop.f32.mrf.mxu0
    %1112 = vdwg.mxu0
    %1113 = vrot.lane.b32.xlu0 %v214, 64
    %v1114 = vpop.permute.xlu0 %1113
    %1115 = vrot.lane.b32.xlu0 %v216, 64
    %v1116 = vpop.permute.xlu0 %1115
    %v1117 = vsel %vm333, %v214, 0
    %v1119 = vsel %vm333, %v216, 0
    %v1121 = vsel %vm333, %v1114, 0
    %v1123 = vsel %vm333, %v1116, 0
    %1125 = vmatprep.subr.mxu0 0.0
    %1126 = vmatpush1.xpose.msra.mxu0 0.0
    %1127 = vmatprep.subr.mxu0 0.0
    %1128 = vmatpush1.xpose.msra.mxu0 0.0
    %1129 = vmatprep.subr.mxu0 0.0
    %1130 = vmatpush1.xpose.msra.mxu0 0.0
    %1131 = vmatprep.subr.mxu0 0.0
    %1132 = vmatpush1.xpose.msra.mxu0 0.0
    %1133 = vmatprep.subr.mxu0 0.0
    %1134 = vmatpush1.xpose.msra.mxu0 0.0
    %1135 = vmatprep.subr.mxu0 0.0
    %1136 = vmatpush1.xpose.msra.mxu0 0.0
    %1137 = vmatprep.subr.mxu0 0.0
    %1138 = vmatpush1.xpose.msra.mxu0 0.0
    %1139 = vmatprep.subr.mxu0 0.0
    %1140 = vmatpush1.xpose.msra.mxu0 0.0
    %1141 = vmatprep.subr.mxu0 0.0
    %1142 = vmatpush1.xpose.msra.mxu0 0.0
    %1143 = vmatprep.subr.mxu0 0.0
    %1144 = vmatpush1.xpose.msra.mxu0 0.0
    %1145 = vmatprep.subr.mxu0 0.0
    %1146 = vmatpush1.xpose.msra.mxu0 0.0
    %1147 = vmatprep.subr.mxu0 0.0
    %1148 = vmatpush1.xpose.msra.mxu0 0.0
    %1149 = vmatprep.subr.mxu0 0.0
    %1150 = vmatpush1.xpose.msra.mxu0 0.0
    %1151 = vmatprep.subr.mxu0 0.0
    %1152 = vmatpush1.xpose.msra.mxu0 0.0
    %1153 = vmatprep.subr.mxu0 0.0
    %1154 = vmatpush1.xpose.msra.mxu0 %v1123
    %1155 = vmatprep.subr.mxu0 0.0
    %1156 = vmatpush1.xpose.msra.mxu0 %v1121
    %1157 = vmatprep.subr.mxu0 0.0
    %1158 = vmatpush2.xpose.msra.mxu0 0.0
    %1159 = vmatprep.subr.mxu0 0.0
    %1160 = vmatpush2.xpose.msra.mxu0 0.0
    %1161 = vmatprep.subr.mxu0 0.0
    %1162 = vmatpush2.xpose.msra.mxu0 0.0
    %1163 = vmatprep.subr.mxu0 0.0
    %1164 = vmatpush2.xpose.msra.mxu0 0.0
    %1165 = vmatprep.subr.mxu0 0.0
    %1166 = vmatpush2.xpose.msra.mxu0 0.0
    %1167 = vmatprep.subr.mxu0 0.0
    %1168 = vmatpush2.xpose.msra.mxu0 0.0
    %1169 = vmatprep.subr.mxu0 0.0
    %1170 = vmatpush2.xpose.msra.mxu0 0.0
    %1171 = vmatprep.subr.mxu0 0.0
    %1172 = vmatpush2.xpose.msra.mxu0 0.0
    %1173 = vmatprep.subr.mxu0 0.0
    %1174 = vmatpush2.xpose.msra.mxu0 0.0
    %1175 = vmatprep.subr.mxu0 0.0
    %1176 = vmatpush2.xpose.msra.mxu0 0.0
    %1177 = vmatprep.subr.mxu0 0.0
    %1178 = vmatpush2.xpose.msra.mxu0 0.0
    %1179 = vmatprep.subr.mxu0 0.0
    %1180 = vmatpush2.xpose.msra.mxu0 0.0
    %1181 = vmatprep.subr.mxu0 0.0
    %1182 = vmatpush2.xpose.msra.mxu0 0.0
    %1183 = vmatprep.subr.mxu0 0.0
    %1184 = vmatpush2.xpose.msra.mxu0 0.0
    %1185 = vmatprep.subr.mxu0 0.0
    %1186 = vmatpush2.xpose.msra.mxu0 0.0
    %1187 = vmatprep.subr.mxu0 0.0
    %1188 = vmatpush2.xpose.msra.mxu0 0.0
    %1189 = vmatprep.mubr.f32.mxu0 0.0
    %1190 = vmatmul.mubr.f32.gmra.mxu0 %v1117
    %v1191 = vpop.f32.mrf.mxu0
    %v1192 = vadd.f32 0.0, %v1191
    %v1193 = vpop.f32.mrf.mxu0
    %1194 = vmatprep.mubr.f32.mxu0 0.0
    %1195 = vmatmul.mubr.f32.gmra.mxu0 %v1119
    %v1196 = vpop.f32.mrf.mxu0
    %v1197 = vadd.f32 0.0, %v1196
    %v1198 = vpop.f32.mrf.mxu0
    %1199 = vdwg.mxu0
    %1200 = vrot.lane.b32.xlu0 %v218, 64
    %v1201 = vpop.permute.xlu0 %1200
    %1202 = vrot.lane.b32.xlu0 %v220, 64
    %v1203 = vpop.permute.xlu0 %1202
    %v1204 = vsel %vm333, %v218, 0
    %v1206 = vsel %vm333, %v220, 0
    %v1208 = vsel %vm333, %v1201, 0
    %v1210 = vsel %vm333, %v1203, 0
    %1212 = vmatprep.subr.mxu0 0.0
    %1213 = vmatpush1.xpose.msra.mxu0 0.0
    %1214 = vmatprep.subr.mxu0 0.0
    %1215 = vmatpush1.xpose.msra.mxu0 0.0
    %1216 = vmatprep.subr.mxu0 0.0
    %1217 = vmatpush1.xpose.msra.mxu0 0.0
    %1218 = vmatprep.subr.mxu0 0.0
    %1219 = vmatpush1.xpose.msra.mxu0 0.0
    %1220 = vmatprep.subr.mxu0 0.0
    %1221 = vmatpush1.xpose.msra.mxu0 0.0
    %1222 = vmatprep.subr.mxu0 0.0
    %1223 = vmatpush1.xpose.msra.mxu0 0.0
    %1224 = vmatprep.subr.mxu0 0.0
    %1225 = vmatpush1.xpose.msra.mxu0 0.0
    %1226 = vmatprep.subr.mxu0 0.0
    %1227 = vmatpush1.xpose.msra.mxu0 0.0
    %1228 = vmatprep.subr.mxu0 0.0
    %1229 = vmatpush1.xpose.msra.mxu0 0.0
    %1230 = vmatprep.subr.mxu0 0.0
    %1231 = vmatpush1.xpose.msra.mxu0 0.0
    %1232 = vmatprep.subr.mxu0 0.0
    %1233 = vmatpush1.xpose.msra.mxu0 0.0
    %1234 = vmatprep.subr.mxu0 0.0
    %1235 = vmatpush1.xpose.msra.mxu0 0.0
    %1236 = vmatprep.subr.mxu0 0.0
    %1237 = vmatpush1.xpose.msra.mxu0 0.0
    %1238 = vmatprep.subr.mxu0 0.0
    %1239 = vmatpush1.xpose.msra.mxu0 0.0
    %1240 = vmatprep.subr.mxu0 0.0
    %1241 = vmatpush1.xpose.msra.mxu0 %v1210
    %1242 = vmatprep.subr.mxu0 0.0
    %1243 = vmatpush1.xpose.msra.mxu0 %v1208
    %1244 = vmatprep.subr.mxu0 0.0
    %1245 = vmatpush2.xpose.msra.mxu0 0.0
    %1246 = vmatprep.subr.mxu0 0.0
    %1247 = vmatpush2.xpose.msra.mxu0 0.0
    %1248 = vmatprep.subr.mxu0 0.0
    %1249 = vmatpush2.xpose.msra.mxu0 0.0
    %1250 = vmatprep.subr.mxu0 0.0
    %1251 = vmatpush2.xpose.msra.mxu0 0.0
    %1252 = vmatprep.subr.mxu0 0.0
    %1253 = vmatpush2.xpose.msra.mxu0 0.0
    %1254 = vmatprep.subr.mxu0 0.0
    %1255 = vmatpush2.xpose.msra.mxu0 0.0
    %1256 = vmatprep.subr.mxu0 0.0
    %1257 = vmatpush2.xpose.msra.mxu0 0.0
    %1258 = vmatprep.subr.mxu0 0.0
    %1259 = vmatpush2.xpose.msra.mxu0 0.0
    %1260 = vmatprep.subr.mxu0 0.0
    %1261 = vmatpush2.xpose.msra.mxu0 0.0
    %1262 = vmatprep.subr.mxu0 0.0
    %1263 = vmatpush2.xpose.msra.mxu0 0.0
    %1264 = vmatprep.subr.mxu0 0.0
    %1265 = vmatpush2.xpose.msra.mxu0 0.0
    %1266 = vmatprep.subr.mxu0 0.0
    %1267 = vmatpush2.xpose.msra.mxu0 0.0
    %1268 = vmatprep.subr.mxu0 0.0
    %1269 = vmatpush2.xpose.msra.mxu0 0.0
    %1270 = vmatprep.subr.mxu0 0.0
    %1271 = vmatpush2.xpose.msra.mxu0 0.0
    %1272 = vmatprep.subr.mxu0 0.0
    %1273 = vmatpush2.xpose.msra.mxu0 0.0
    %1274 = vmatprep.subr.mxu0 0.0
    %1275 = vmatpush2.xpose.msra.mxu0 0.0
    %1276 = vmatprep.mubr.f32.mxu0 0.0
    %1277 = vmatmul.mubr.f32.gmra.mxu0 %v1204
    %v1278 = vpop.f32.mrf.mxu0
    %v1279 = vadd.f32 0.0, %v1278
    %v1280 = vpop.f32.mrf.mxu0
    %1281 = vmatprep.mubr.f32.mxu0 0.0
    %1282 = vmatmul.mubr.f32.gmra.mxu0 %v1206
    %v1283 = vpop.f32.mrf.mxu0
    %v1284 = vadd.f32 0.0, %v1283
    %v1285 = vpop.f32.mrf.mxu0
    %1286 = vdwg.mxu0
    %1287 = vrot.lane.b32.xlu0 %v222, 64
    %v1288 = vpop.permute.xlu0 %1287
    %1289 = vrot.lane.b32.xlu0 %v224, 64
    %v1290 = vpop.permute.xlu0 %1289
    %v1291 = vsel %vm333, %v222, 0
    %v1293 = vsel %vm333, %v224, 0
    %v1295 = vsel %vm333, %v1288, 0
    %v1297 = vsel %vm333, %v1290, 0
    %1299 = vmatprep.subr.mxu0 0.0
    %1300 = vmatpush1.xpose.msra.mxu0 0.0
    %1301 = vmatprep.subr.mxu0 0.0
    %1302 = vmatpush1.xpose.msra.mxu0 0.0
    %1303 = vmatprep.subr.mxu0 0.0
    %1304 = vmatpush1.xpose.msra.mxu0 0.0
    %1305 = vmatprep.subr.mxu0 0.0
    %1306 = vmatpush1.xpose.msra.mxu0 0.0
    %1307 = vmatprep.subr.mxu0 0.0
    %1308 = vmatpush1.xpose.msra.mxu0 0.0
    %1309 = vmatprep.subr.mxu0 0.0
    %1310 = vmatpush1.xpose.msra.mxu0 0.0
    %1311 = vmatprep.subr.mxu0 0.0
    %1312 = vmatpush1.xpose.msra.mxu0 0.0
    %1313 = vmatprep.subr.mxu0 0.0
    %1314 = vmatpush1.xpose.msra.mxu0 0.0
    %1315 = vmatprep.subr.mxu0 0.0
    %1316 = vmatpush1.xpose.msra.mxu0 0.0
    %1317 = vmatprep.subr.mxu0 0.0
    %1318 = vmatpush1.xpose.msra.mxu0 0.0
    %1319 = vmatprep.subr.mxu0 0.0
    %1320 = vmatpush1.xpose.msra.mxu0 0.0
    %1321 = vmatprep.subr.mxu0 0.0
    %1322 = vmatpush1.xpose.msra.mxu0 0.0
    %1323 = vmatprep.subr.mxu0 0.0
    %1324 = vmatpush1.xpose.msra.mxu0 0.0
    %1325 = vmatprep.subr.mxu0 0.0
    %1326 = vmatpush1.xpose.msra.mxu0 0.0
    %1327 = vmatprep.subr.mxu0 0.0
    %1328 = vmatpush1.xpose.msra.mxu0 %v1297
    %1329 = vmatprep.subr.mxu0 0.0
    %1330 = vmatpush1.xpose.msra.mxu0 %v1295
    %1331 = vmatprep.subr.mxu0 0.0
    %1332 = vmatpush2.xpose.msra.mxu0 0.0
    %1333 = vmatprep.subr.mxu0 0.0
    %1334 = vmatpush2.xpose.msra.mxu0 0.0
    %1335 = vmatprep.subr.mxu0 0.0
    %1336 = vmatpush2.xpose.msra.mxu0 0.0
    %1337 = vmatprep.subr.mxu0 0.0
    %1338 = vmatpush2.xpose.msra.mxu0 0.0
    %1339 = vmatprep.subr.mxu0 0.0
    %1340 = vmatpush2.xpose.msra.mxu0 0.0
    %1341 = vmatprep.subr.mxu0 0.0
    %1342 = vmatpush2.xpose.msra.mxu0 0.0
    %1343 = vmatprep.subr.mxu0 0.0
    %1344 = vmatpush2.xpose.msra.mxu0 0.0
    %1345 = vmatprep.subr.mxu0 0.0
    %1346 = vmatpush2.xpose.msra.mxu0 0.0
    %1347 = vmatprep.subr.mxu0 0.0
    %1348 = vmatpush2.xpose.msra.mxu0 0.0
    %1349 = vmatprep.subr.mxu0 0.0
    %1350 = vmatpush2.xpose.msra.mxu0 0.0
    %1351 = vmatprep.subr.mxu0 0.0
    %1352 = vmatpush2.xpose.msra.mxu0 0.0
    %1353 = vmatprep.subr.mxu0 0.0
    %1354 = vmatpush2.xpose.msra.mxu0 0.0
    %1355 = vmatprep.subr.mxu0 0.0
    %1356 = vmatpush2.xpose.msra.mxu0 0.0
    %1357 = vmatprep.subr.mxu0 0.0
    %1358 = vmatpush2.xpose.msra.mxu0 0.0
    %1359 = vmatprep.subr.mxu0 0.0
    %1360 = vmatpush2.xpose.msra.mxu0 0.0
    %1361 = vmatprep.subr.mxu0 0.0
    %1362 = vmatpush2.xpose.msra.mxu0 0.0
    %1363 = vmatprep.mubr.f32.mxu0 0.0
    %1364 = vmatmul.mubr.f32.gmra.mxu0 %v1291
    %v1365 = vpop.f32.mrf.mxu0
    %v1366 = vadd.f32 0.0, %v1365
    %v1367 = vpop.f32.mrf.mxu0
    %1368 = vmatprep.mubr.f32.mxu0 0.0
    %1369 = vmatmul.mubr.f32.gmra.mxu0 %v1293
    %v1370 = vpop.f32.mrf.mxu0
    %v1371 = vadd.f32 0.0, %v1370
    %v1372 = vpop.f32.mrf.mxu0
    %1373 = vdwg.mxu0
    %1374 = vrot.lane.b32.xlu0 %v226, 64
    %v1375 = vpop.permute.xlu0 %1374
    %1376 = vrot.lane.b32.xlu0 %v228, 64
    %v1377 = vpop.permute.xlu0 %1376
    %v1378 = vsel %vm333, %v226, 0
    %v1380 = vsel %vm333, %v228, 0
    %v1382 = vsel %vm333, %v1375, 0
    %v1384 = vsel %vm333, %v1377, 0
    %1386 = vmatprep.subr.mxu0 0.0
    %1387 = vmatpush1.xpose.msra.mxu0 0.0
    %1388 = vmatprep.subr.mxu0 0.0
    %1389 = vmatpush1.xpose.msra.mxu0 0.0
    %1390 = vmatprep.subr.mxu0 0.0
    %1391 = vmatpush1.xpose.msra.mxu0 0.0
    %1392 = vmatprep.subr.mxu0 0.0
    %1393 = vmatpush1.xpose.msra.mxu0 0.0
    %1394 = vmatprep.subr.mxu0 0.0
    %1395 = vmatpush1.xpose.msra.mxu0 0.0
    %1396 = vmatprep.subr.mxu0 0.0
    %1397 = vmatpush1.xpose.msra.mxu0 0.0
    %1398 = vmatprep.subr.mxu0 0.0
    %1399 = vmatpush1.xpose.msra.mxu0 0.0
    %1400 = vmatprep.subr.mxu0 0.0
    %1401 = vmatpush1.xpose.msra.mxu0 0.0
    %1402 = vmatprep.subr.mxu0 0.0
    %1403 = vmatpush1.xpose.msra.mxu0 0.0
    %1404 = vmatprep.subr.mxu0 0.0
    %1405 = vmatpush1.xpose.msra.mxu0 0.0
    %1406 = vmatprep.subr.mxu0 0.0
    %1407 = vmatpush1.xpose.msra.mxu0 0.0
    %1408 = vmatprep.subr.mxu0 0.0
    %1409 = vmatpush1.xpose.msra.mxu0 0.0
    %1410 = vmatprep.subr.mxu0 0.0
    %1411 = vmatpush1.xpose.msra.mxu0 0.0
    %1412 = vmatprep.subr.mxu0 0.0
    %1413 = vmatpush1.xpose.msra.mxu0 0.0
    %1414 = vmatprep.subr.mxu0 0.0
    %1415 = vmatpush1.xpose.msra.mxu0 %v1384
    %1416 = vmatprep.subr.mxu0 0.0
    %1417 = vmatpush1.xpose.msra.mxu0 %v1382
    %1418 = vmatprep.subr.mxu0 0.0
    %1419 = vmatpush2.xpose.msra.mxu0 0.0
    %1420 = vmatprep.subr.mxu0 0.0
    %1421 = vmatpush2.xpose.msra.mxu0 0.0
    %1422 = vmatprep.subr.mxu0 0.0
    %1423 = vmatpush2.xpose.msra.mxu0 0.0
    %1424 = vmatprep.subr.mxu0 0.0
    %1425 = vmatpush2.xpose.msra.mxu0 0.0
    %1426 = vmatprep.subr.mxu0 0.0
    %1427 = vmatpush2.xpose.msra.mxu0 0.0
    %1428 = vmatprep.subr.mxu0 0.0
    %1429 = vmatpush2.xpose.msra.mxu0 0.0
    %1430 = vmatprep.subr.mxu0 0.0
    %1431 = vmatpush2.xpose.msra.mxu0 0.0
    %1432 = vmatprep.subr.mxu0 0.0
    %1433 = vmatpush2.xpose.msra.mxu0 0.0
    %1434 = vmatprep.subr.mxu0 0.0
    %1435 = vmatpush2.xpose.msra.mxu0 0.0
    %1436 = vmatprep.subr.mxu0 0.0
    %1437 = vmatpush2.xpose.msra.mxu0 0.0
    %1438 = vmatprep.subr.mxu0 0.0
    %1439 = vmatpush2.xpose.msra.mxu0 0.0
    %1440 = vmatprep.subr.mxu0 0.0
    %1441 = vmatpush2.xpose.msra.mxu0 0.0
    %1442 = vmatprep.subr.mxu0 0.0
    %1443 = vmatpush2.xpose.msra.mxu0 0.0
    %1444 = vmatprep.subr.mxu0 0.0
    %1445 = vmatpush2.xpose.msra.mxu0 0.0
    %1446 = vmatprep.subr.mxu0 0.0
    %1447 = vmatpush2.xpose.msra.mxu0 0.0
    %1448 = vmatprep.subr.mxu0 0.0
    %1449 = vmatpush2.xpose.msra.mxu0 0.0
    %1450 = vmatprep.mubr.f32.mxu0 0.0
    %1451 = vmatmul.mubr.f32.gmra.mxu0 %v1378
    %v1452 = vpop.f32.mrf.mxu0
    %v1453 = vadd.f32 0.0, %v1452
    %v1454 = vpop.f32.mrf.mxu0
    %1455 = vmatprep.mubr.f32.mxu0 0.0
    %1456 = vmatmul.mubr.f32.gmra.mxu0 %v1380
    %v1457 = vpop.f32.mrf.mxu0
    %v1458 = vadd.f32 0.0, %v1457
    %v1459 = vpop.f32.mrf.mxu0
    %1460 = vdwg.mxu0
    %1461 = vrot.lane.b32.xlu0 %v230, 64
    %v1462 = vpop.permute.xlu0 %1461
    %1463 = vrot.lane.b32.xlu0 %v232, 64
    %v1464 = vpop.permute.xlu0 %1463
    %v1465 = vsel %vm333, %v230, 0
    %v1467 = vsel %vm333, %v232, 0
    %v1469 = vsel %vm333, %v1462, 0
    %v1471 = vsel %vm333, %v1464, 0
    %1473 = vmatprep.subr.mxu0 0.0
    %1474 = vmatpush1.xpose.msra.mxu0 0.0
    %1475 = vmatprep.subr.mxu0 0.0
    %1476 = vmatpush1.xpose.msra.mxu0 0.0
    %1477 = vmatprep.subr.mxu0 0.0
    %1478 = vmatpush1.xpose.msra.mxu0 0.0
    %1479 = vmatprep.subr.mxu0 0.0
    %1480 = vmatpush1.xpose.msra.mxu0 0.0
    %1481 = vmatprep.subr.mxu0 0.0
    %1482 = vmatpush1.xpose.msra.mxu0 0.0
    %1483 = vmatprep.subr.mxu0 0.0
    %1484 = vmatpush1.xpose.msra.mxu0 0.0
    %1485 = vmatprep.subr.mxu0 0.0
    %1486 = vmatpush1.xpose.msra.mxu0 0.0
    %1487 = vmatprep.subr.mxu0 0.0
    %1488 = vmatpush1.xpose.msra.mxu0 0.0
    %1489 = vmatprep.subr.mxu0 0.0
    %1490 = vmatpush1.xpose.msra.mxu0 0.0
    %1491 = vmatprep.subr.mxu0 0.0
    %1492 = vmatpush1.xpose.msra.mxu0 0.0
    %1493 = vmatprep.subr.mxu0 0.0
    %1494 = vmatpush1.xpose.msra.mxu0 0.0
    %1495 = vmatprep.subr.mxu0 0.0
    %1496 = vmatpush1.xpose.msra.mxu0 0.0
    %1497 = vmatprep.subr.mxu0 0.0
    %1498 = vmatpush1.xpose.msra.mxu0 0.0
    %1499 = vmatprep.subr.mxu0 0.0
    %1500 = vmatpush1.xpose.msra.mxu0 0.0
    %1501 = vmatprep.subr.mxu0 0.0
    %1502 = vmatpush1.xpose.msra.mxu0 %v1471
    %1503 = vmatprep.subr.mxu0 0.0
    %1504 = vmatpush1.xpose.msra.mxu0 %v1469
    %1505 = vmatprep.subr.mxu0 0.0
    %1506 = vmatpush2.xpose.msra.mxu0 0.0
    %1507 = vmatprep.subr.mxu0 0.0
    %1508 = vmatpush2.xpose.msra.mxu0 0.0
    %1509 = vmatprep.subr.mxu0 0.0
    %1510 = vmatpush2.xpose.msra.mxu0 0.0
    %1511 = vmatprep.subr.mxu0 0.0
    %1512 = vmatpush2.xpose.msra.mxu0 0.0
    %1513 = vmatprep.subr.mxu0 0.0
    %1514 = vmatpush2.xpose.msra.mxu0 0.0
    %1515 = vmatprep.subr.mxu0 0.0
    %1516 = vmatpush2.xpose.msra.mxu0 0.0
    %1517 = vmatprep.subr.mxu0 0.0
    %1518 = vmatpush2.xpose.msra.mxu0 0.0
    %1519 = vmatprep.subr.mxu0 0.0
    %1520 = vmatpush2.xpose.msra.mxu0 0.0
    %1521 = vmatprep.subr.mxu0 0.0
    %1522 = vmatpush2.xpose.msra.mxu0 0.0
    %1523 = vmatprep.subr.mxu0 0.0
    %1524 = vmatpush2.xpose.msra.mxu0 0.0
    %1525 = vmatprep.subr.mxu0 0.0
    %1526 = vmatpush2.xpose.msra.mxu0 0.0
    %1527 = vmatprep.subr.mxu0 0.0
    %1528 = vmatpush2.xpose.msra.mxu0 0.0
    %1529 = vmatprep.subr.mxu0 0.0
    %1530 = vmatpush2.xpose.msra.mxu0 0.0
    %1531 = vmatprep.subr.mxu0 0.0
    %1532 = vmatpush2.xpose.msra.mxu0 0.0
    %1533 = vmatprep.subr.mxu0 0.0
    %1534 = vmatpush2.xpose.msra.mxu0 0.0
    %1535 = vmatprep.subr.mxu0 0.0
    %1536 = vmatpush2.xpose.msra.mxu0 0.0
    %1537 = vmatprep.mubr.f32.mxu0 0.0
    %1538 = vmatmul.mubr.f32.gmra.mxu0 %v1465
    %v1539 = vpop.f32.mrf.mxu0
    %v1540 = vadd.f32 0.0, %v1539
    %v1541 = vpop.f32.mrf.mxu0
    %1542 = vmatprep.mubr.f32.mxu0 0.0
    %1543 = vmatmul.mubr.f32.gmra.mxu0 %v1467
    %v1544 = vpop.f32.mrf.mxu0
    %v1545 = vadd.f32 0.0, %v1544
    %v1546 = vpop.f32.mrf.mxu0
    %1547 = vdwg.mxu0
    %1548 = vrot.lane.b32.xlu0 %v234, 64
    %v1549 = vpop.permute.xlu0 %1548
    %1550 = vrot.lane.b32.xlu0 %v236, 64
    %v1551 = vpop.permute.xlu0 %1550
    %v1552 = vsel %vm333, %v234, 0
    %v1554 = vsel %vm333, %v236, 0
    %v1556 = vsel %vm333, %v1549, 0
    %v1558 = vsel %vm333, %v1551, 0
    %1560 = vmatprep.subr.mxu0 0.0
    %1561 = vmatpush1.xpose.msra.mxu0 0.0
    %1562 = vmatprep.subr.mxu0 0.0
    %1563 = vmatpush1.xpose.msra.mxu0 0.0
    %1564 = vmatprep.subr.mxu0 0.0
    %1565 = vmatpush1.xpose.msra.mxu0 0.0
    %1566 = vmatprep.subr.mxu0 0.0
    %1567 = vmatpush1.xpose.msra.mxu0 0.0
    %1568 = vmatprep.subr.mxu0 0.0
    %1569 = vmatpush1.xpose.msra.mxu0 0.0
    %1570 = vmatprep.subr.mxu0 0.0
    %1571 = vmatpush1.xpose.msra.mxu0 0.0
    %1572 = vmatprep.subr.mxu0 0.0
    %1573 = vmatpush1.xpose.msra.mxu0 0.0
    %1574 = vmatprep.subr.mxu0 0.0
    %1575 = vmatpush1.xpose.msra.mxu0 0.0
    %1576 = vmatprep.subr.mxu0 0.0
    %1577 = vmatpush1.xpose.msra.mxu0 0.0
    %1578 = vmatprep.subr.mxu0 0.0
    %1579 = vmatpush1.xpose.msra.mxu0 0.0
    %1580 = vmatprep.subr.mxu0 0.0
    %1581 = vmatpush1.xpose.msra.mxu0 0.0
    %1582 = vmatprep.subr.mxu0 0.0
    %1583 = vmatpush1.xpose.msra.mxu0 0.0
    %1584 = vmatprep.subr.mxu0 0.0
    %1585 = vmatpush1.xpose.msra.mxu0 0.0
    %1586 = vmatprep.subr.mxu0 0.0
    %1587 = vmatpush1.xpose.msra.mxu0 0.0
    %1588 = vmatprep.subr.mxu0 0.0
    %1589 = vmatpush1.xpose.msra.mxu0 %v1558
    %1590 = vmatprep.subr.mxu0 0.0
    %1591 = vmatpush1.xpose.msra.mxu0 %v1556
    %1592 = vmatprep.subr.mxu0 0.0
    %1593 = vmatpush2.xpose.msra.mxu0 0.0
    %1594 = vmatprep.subr.mxu0 0.0
    %1595 = vmatpush2.xpose.msra.mxu0 0.0
    %1596 = vmatprep.subr.mxu0 0.0
    %1597 = vmatpush2.xpose.msra.mxu0 0.0
    %1598 = vmatprep.subr.mxu0 0.0
    %1599 = vmatpush2.xpose.msra.mxu0 0.0
    %1600 = vmatprep.subr.mxu0 0.0
    %1601 = vmatpush2.xpose.msra.mxu0 0.0
    %1602 = vmatprep.subr.mxu0 0.0
    %1603 = vmatpush2.xpose.msra.mxu0 0.0
    %1604 = vmatprep.subr.mxu0 0.0
    %1605 = vmatpush2.xpose.msra.mxu0 0.0
    %1606 = vmatprep.subr.mxu0 0.0
    %1607 = vmatpush2.xpose.msra.mxu0 0.0
    %1608 = vmatprep.subr.mxu0 0.0
    %1609 = vmatpush2.xpose.msra.mxu0 0.0
    %1610 = vmatprep.subr.mxu0 0.0
    %1611 = vmatpush2.xpose.msra.mxu0 0.0
    %1612 = vmatprep.subr.mxu0 0.0
    %1613 = vmatpush2.xpose.msra.mxu0 0.0
    %1614 = vmatprep.subr.mxu0 0.0
    %1615 = vmatpush2.xpose.msra.mxu0 0.0
    %1616 = vmatprep.subr.mxu0 0.0
    %1617 = vmatpush2.xpose.msra.mxu0 0.0
    %1618 = vmatprep.subr.mxu0 0.0
    %1619 = vmatpush2.xpose.msra.mxu0 0.0
    %1620 = vmatprep.subr.mxu0 0.0
    %1621 = vmatpush2.xpose.msra.mxu0 0.0
    %1622 = vmatprep.subr.mxu0 0.0
    %1623 = vmatpush2.xpose.msra.mxu0 0.0
    %1624 = vmatprep.mubr.f32.mxu0 0.0
    %1625 = vmatmul.mubr.f32.gmra.mxu0 %v1552
    %v1626 = vpop.f32.mrf.mxu0
    %v1627 = vadd.f32 0.0, %v1626
    %v1628 = vpop.f32.mrf.mxu0
    %1629 = vmatprep.mubr.f32.mxu0 0.0
    %1630 = vmatmul.mubr.f32.gmra.mxu0 %v1554
    %v1631 = vpop.f32.mrf.mxu0
    %v1632 = vadd.f32 0.0, %v1631
    %v1633 = vpop.f32.mrf.mxu0
    %1634 = vdwg.mxu0
    %1635 = vrot.lane.b32.xlu0 %v238, 64
    %v1636 = vpop.permute.xlu0 %1635
    %1637 = vrot.lane.b32.xlu0 %v240, 64
    %v1638 = vpop.permute.xlu0 %1637
    %v1639 = vsel %vm333, %v238, 0
    %v1641 = vsel %vm333, %v240, 0
    %v1643 = vsel %vm333, %v1636, 0
    %v1645 = vsel %vm333, %v1638, 0
    %1647 = vmatprep.subr.mxu0 0.0
    %1648 = vmatpush1.xpose.msra.mxu0 0.0
    %1649 = vmatprep.subr.mxu0 0.0
    %1650 = vmatpush1.xpose.msra.mxu0 0.0
    %1651 = vmatprep.subr.mxu0 0.0
    %1652 = vmatpush1.xpose.msra.mxu0 0.0
    %1653 = vmatprep.subr.mxu0 0.0
    %1654 = vmatpush1.xpose.msra.mxu0 0.0
    %1655 = vmatprep.subr.mxu0 0.0
    %1656 = vmatpush1.xpose.msra.mxu0 0.0
    %1657 = vmatprep.subr.mxu0 0.0
    %1658 = vmatpush1.xpose.msra.mxu0 0.0
    %1659 = vmatprep.subr.mxu0 0.0
    %1660 = vmatpush1.xpose.msra.mxu0 0.0
    %1661 = vmatprep.subr.mxu0 0.0
    %1662 = vmatpush1.xpose.msra.mxu0 0.0
    %1663 = vmatprep.subr.mxu0 0.0
    %1664 = vmatpush1.xpose.msra.mxu0 0.0
    %1665 = vmatprep.subr.mxu0 0.0
    %1666 = vmatpush1.xpose.msra.mxu0 0.0
    %1667 = vmatprep.subr.mxu0 0.0
    %1668 = vmatpush1.xpose.msra.mxu0 0.0
    %1669 = vmatprep.subr.mxu0 0.0
    %1670 = vmatpush1.xpose.msra.mxu0 0.0
    %1671 = vmatprep.subr.mxu0 0.0
    %1672 = vmatpush1.xpose.msra.mxu0 0.0
    %1673 = vmatprep.subr.mxu0 0.0
    %1674 = vmatpush1.xpose.msra.mxu0 0.0
    %1675 = vmatprep.subr.mxu0 0.0
    %1676 = vmatpush1.xpose.msra.mxu0 %v1645
    %1677 = vmatprep.subr.mxu0 0.0
    %1678 = vmatpush1.xpose.msra.mxu0 %v1643
    %1679 = vmatprep.subr.mxu0 0.0
    %1680 = vmatpush2.xpose.msra.mxu0 0.0
    %1681 = vmatprep.subr.mxu0 0.0
    %1682 = vmatpush2.xpose.msra.mxu0 0.0
    %1683 = vmatprep.subr.mxu0 0.0
    %1684 = vmatpush2.xpose.msra.mxu0 0.0
    %1685 = vmatprep.subr.mxu0 0.0
    %1686 = vmatpush2.xpose.msra.mxu0 0.0
    %1687 = vmatprep.subr.mxu0 0.0
    %1688 = vmatpush2.xpose.msra.mxu0 0.0
    %1689 = vmatprep.subr.mxu0 0.0
    %1690 = vmatpush2.xpose.msra.mxu0 0.0
    %1691 = vmatprep.subr.mxu0 0.0
    %1692 = vmatpush2.xpose.msra.mxu0 0.0
    %1693 = vmatprep.subr.mxu0 0.0
    %1694 = vmatpush2.xpose.msra.mxu0 0.0
    %1695 = vmatprep.subr.mxu0 0.0
    %1696 = vmatpush2.xpose.msra.mxu0 0.0
    %1697 = vmatprep.subr.mxu0 0.0
    %1698 = vmatpush2.xpose.msra.mxu0 0.0
    %1699 = vmatprep.subr.mxu0 0.0
    %1700 = vmatpush2.xpose.msra.mxu0 0.0
    %1701 = vmatprep.subr.mxu0 0.0
    %1702 = vmatpush2.xpose.msra.mxu0 0.0
    %1703 = vmatprep.subr.mxu0 0.0
    %1704 = vmatpush2.xpose.msra.mxu0 0.0
    %1705 = vmatprep.subr.mxu0 0.0
    %1706 = vmatpush2.xpose.msra.mxu0 0.0
    %1707 = vmatprep.subr.mxu0 0.0
    %1708 = vmatpush2.xpose.msra.mxu0 0.0
    %1709 = vmatprep.subr.mxu0 0.0
    %1710 = vmatpush2.xpose.msra.mxu0 0.0
    %1711 = vmatprep.mubr.f32.mxu0 0.0
    %1712 = vmatmul.mubr.f32.gmra.mxu0 %v1639
    %v1713 = vpop.f32.mrf.mxu0
    %v1714 = vadd.f32 0.0, %v1713
    %v1715 = vpop.f32.mrf.mxu0
    %1716 = vmatprep.mubr.f32.mxu0 0.0
    %1717 = vmatmul.mubr.f32.gmra.mxu0 %v1641
    %v1718 = vpop.f32.mrf.mxu0
    %v1719 = vadd.f32 0.0, %v1718
    %v1720 = vpop.f32.mrf.mxu0
    %1721 = vdwg.mxu0
    %vm1722 = vcmask 130048
    %v1723 = vsel %vm1722, %v409, -inf
    %1724 = vmax.xlane.f32.xlu0 %v1723
    %v1725 = vpop.xlane.xlu0 %1724
    %v1726 = vsel %vm1722, %v414, -inf
    %1727 = vmax.xlane.f32.xlu0 %v1726
    %v1728 = vpop.xlane.xlu0 %1727
    %v1729 = vsel %vm1722, %v496, -inf
    %1730 = vmax.xlane.f32.xlu0 %v1729
    %v1731 = vpop.xlane.xlu0 %1730
    %v1732 = vsel %vm1722, %v501, -inf
    %1733 = vmax.xlane.f32.xlu0 %v1732
    %v1734 = vpop.xlane.xlu0 %1733
    %v1735 = vsel %vm1722, %v583, -inf
    %1736 = vmax.xlane.f32.xlu0 %v1735
    %v1737 = vpop.xlane.xlu0 %1736
    %v1738 = vsel %vm1722, %v588, -inf
    %1739 = vmax.xlane.f32.xlu0 %v1738
    %v1740 = vpop.xlane.xlu0 %1739
    %v1741 = vsel %vm1722, %v670, -inf
    %1742 = vmax.xlane.f32.xlu0 %v1741
    %v1743 = vpop.xlane.xlu0 %1742
    %v1744 = vsel %vm1722, %v675, -inf
    %1745 = vmax.xlane.f32.xlu0 %v1744
    %v1746 = vpop.xlane.xlu0 %1745
    %v1747 = vsel %vm1722, %v757, -inf
    %1748 = vmax.xlane.f32.xlu0 %v1747
    %v1749 = vpop.xlane.xlu0 %1748
    %v1750 = vsel %vm1722, %v762, -inf
    %1751 = vmax.xlane.f32.xlu0 %v1750
    %v1752 = vpop.xlane.xlu0 %1751
    %v1753 = vsel %vm1722, %v844, -inf
    %1754 = vmax.xlane.f32.xlu0 %v1753
    %v1755 = vpop.xlane.xlu0 %1754
    %v1756 = vsel %vm1722, %v849, -inf
    %1757 = vmax.xlane.f32.xlu0 %v1756
    %v1758 = vpop.xlane.xlu0 %1757
    %v1759 = vsel %vm1722, %v931, -inf
    %1760 = vmax.xlane.f32.xlu0 %v1759
    %v1761 = vpop.xlane.xlu0 %1760
    %v1762 = vsel %vm1722, %v936, -inf
    %1763 = vmax.xlane.f32.xlu0 %v1762
    %v1764 = vpop.xlane.xlu0 %1763
    %v1765 = vsel %vm1722, %v1018, -inf
    %1766 = vmax.xlane.f32.xlu0 %v1765
    %v1767 = vpop.xlane.xlu0 %1766
    %v1768 = vsel %vm1722, %v1023, -inf
    %1769 = vmax.xlane.f32.xlu0 %v1768
    %v1770 = vpop.xlane.xlu0 %1769
    %v1771 = vsel %vm1722, %v1105, -inf
    %1772 = vmax.xlane.f32.xlu0 %v1771
    %v1773 = vpop.xlane.xlu0 %1772
    %v1774 = vsel %vm1722, %v1110, -inf
    %1775 = vmax.xlane.f32.xlu0 %v1774
    %v1776 = vpop.xlane.xlu0 %1775
    %v1777 = vsel %vm1722, %v1192, -inf
    %1778 = vmax.xlane.f32.xlu0 %v1777
    %v1779 = vpop.xlane.xlu0 %1778
    %v1780 = vsel %vm1722, %v1197, -inf
    %1781 = vmax.xlane.f32.xlu0 %v1780
    %v1782 = vpop.xlane.xlu0 %1781
    %v1783 = vsel %vm1722, %v1279, -inf
    %1784 = vmax.xlane.f32.xlu0 %v1783
    %v1785 = vpop.xlane.xlu0 %1784
    %v1786 = vsel %vm1722, %v1284, -inf
    %1787 = vmax.xlane.f32.xlu0 %v1786
    %v1788 = vpop.xlane.xlu0 %1787
    %v1789 = vsel %vm1722, %v1366, -inf
    %1790 = vmax.xlane.f32.xlu0 %v1789
    %v1791 = vpop.xlane.xlu0 %1790
    %v1792 = vsel %vm1722, %v1371, -inf
    %1793 = vmax.xlane.f32.xlu0 %v1792
    %v1794 = vpop.xlane.xlu0 %1793
    %v1795 = vsel %vm1722, %v1453, -inf
    %1796 = vmax.xlane.f32.xlu0 %v1795
    %v1797 = vpop.xlane.xlu0 %1796
    %v1798 = vsel %vm1722, %v1458, -inf
    %1799 = vmax.xlane.f32.xlu0 %v1798
    %v1800 = vpop.xlane.xlu0 %1799
    %v1801 = vsel %vm1722, %v1540, -inf
    %1802 = vmax.xlane.f32.xlu0 %v1801
    %v1803 = vpop.xlane.xlu0 %1802
    %v1804 = vsel %vm1722, %v1545, -inf
    %1805 = vmax.xlane.f32.xlu0 %v1804
    %v1806 = vpop.xlane.xlu0 %1805
    %v1807 = vsel %vm1722, %v1627, -inf
    %1808 = vmax.xlane.f32.xlu0 %v1807
    %v1809 = vpop.xlane.xlu0 %1808
    %v1810 = vsel %vm1722, %v1632, -inf
    %1811 = vmax.xlane.f32.xlu0 %v1810
    %v1812 = vpop.xlane.xlu0 %1811
    %v1813 = vsel %vm1722, %v1714, -inf
    %1814 = vmax.xlane.f32.xlu0 %v1813
    %v1815 = vpop.xlane.xlu0 %1814
    %v1816 = vsel %vm1722, %v1719, -inf
    %1817 = vmax.xlane.f32.xlu0 %v1816
    %v1818 = vpop.xlane.xlu0 %1817
    %v1819 = vsub.f32 %v409, %v1725
    %v1820 = vsub.f32 %v414, %v1728
    %v1821 = vsub.f32 %v496, %v1731
    %v1822 = vsub.f32 %v501, %v1734
    %v1823 = vsub.f32 %v583, %v1737
    %v1824 = vsub.f32 %v588, %v1740
    %v1825 = vsub.f32 %v670, %v1743
    %v1826 = vsub.f32 %v675, %v1746
    %v1827 = vsub.f32 %v757, %v1749
    %v1828 = vsub.f32 %v762, %v1752
    %v1829 = vsub.f32 %v844, %v1755
    %v1830 = vsub.f32 %v849, %v1758
    %v1831 = vsub.f32 %v931, %v1761
    %v1832 = vsub.f32 %v936, %v1764
    %v1833 = vsub.f32 %v1018, %v1767
    %v1834 = vsub.f32 %v1023, %v1770
    %v1835 = vsub.f32 %v1105, %v1773
    %v1836 = vsub.f32 %v1110, %v1776
    %v1837 = vsub.f32 %v1192, %v1779
    %v1838 = vsub.f32 %v1197, %v1782
    %v1839 = vsub.f32 %v1279, %v1785
    %v1840 = vsub.f32 %v1284, %v1788
    %v1841 = vsub.f32 %v1366, %v1791
    %v1842 = vsub.f32 %v1371, %v1794
    %v1843 = vsub.f32 %v1453, %v1797
    %v1844 = vsub.f32 %v1458, %v1800
    %v1845 = vsub.f32 %v1540, %v1803
    %v1846 = vsub.f32 %v1545, %v1806
    %v1847 = vsub.f32 %v1627, %v1809
    %v1848 = vsub.f32 %v1632, %v1812
    %v1849 = vsub.f32 %v1714, %v1815
    %v1850 = vsub.f32 %v1719, %v1818
    %v1851 = vmul.f32 %v1819, 1.442695
    %v1852 = vpow.pop %v1851
    %v1853 = vmul.f32 %v1820, 1.442695
    %v1854 = vpow.pop %v1853
    %v1855 = vmul.f32 %v1821, 1.442695
    %v1856 = vpow.pop %v1855
    %v1857 = vmul.f32 %v1822, 1.442695
    %v1858 = vpow.pop %v1857
    %v1859 = vmul.f32 %v1823, 1.442695
    %v1860 = vpow.pop %v1859
    %v1861 = vmul.f32 %v1824, 1.442695
    %v1862 = vpow.pop %v1861
    %v1863 = vmul.f32 %v1825, 1.442695
    %v1864 = vpow.pop %v1863
    %v1865 = vmul.f32 %v1826, 1.442695
    %v1866 = vpow.pop %v1865
    %v1867 = vmul.f32 %v1827, 1.442695
    %v1868 = vpow.pop %v1867
    %v1869 = vmul.f32 %v1828, 1.442695
    %v1870 = vpow.pop %v1869
    %v1871 = vmul.f32 %v1829, 1.442695
    %v1872 = vpow.pop %v1871
    %v1873 = vmul.f32 %v1830, 1.442695
    %v1874 = vpow.pop %v1873
    %v1875 = vmul.f32 %v1831, 1.442695
    %v1876 = vpow.pop %v1875
    %v1877 = vmul.f32 %v1832, 1.442695
    %v1878 = vpow.pop %v1877
    %v1879 = vmul.f32 %v1833, 1.442695
    %v1880 = vpow.pop %v1879
    %v1881 = vmul.f32 %v1834, 1.442695
    %v1882 = vpow.pop %v1881
    %v1883 = vmul.f32 %v1835, 1.442695
    %v1884 = vpow.pop %v1883
    %v1885 = vmul.f32 %v1836, 1.442695
    %v1886 = vpow.pop %v1885
    %v1887 = vmul.f32 %v1837, 1.442695
    %v1888 = vpow.pop %v1887
    %v1889 = vmul.f32 %v1838, 1.442695
    %v1890 = vpow.pop %v1889
    %v1891 = vmul.f32 %v1839, 1.442695
    %v1892 = vpow.pop %v1891
    %v1893 = vmul.f32 %v1840, 1.442695
    %v1894 = vpow.pop %v1893
    %v1895 = vmul.f32 %v1841, 1.442695
    %v1896 = vpow.pop %v1895
    %v1897 = vmul.f32 %v1842, 1.442695
    %v1898 = vpow.pop %v1897
    %v1899 = vmul.f32 %v1843, 1.442695
    %v1900 = vpow.pop %v1899
    %v1901 = vmul.f32 %v1844, 1.442695
    %v1902 = vpow.pop %v1901
    %v1903 = vmul.f32 %v1845, 1.442695
    %v1904 = vpow.pop %v1903
    %v1905 = vmul.f32 %v1846, 1.442695
    %v1906 = vpow.pop %v1905
    %v1907 = vmul.f32 %v1847, 1.442695
    %v1908 = vpow.pop %v1907
    %v1909 = vmul.f32 %v1848, 1.442695
    %v1910 = vpow.pop %v1909
    %v1911 = vmul.f32 %v1849, 1.442695
    %v1912 = vpow.pop %v1911
    %v1913 = vmul.f32 %v1850, 1.442695
    %v1914 = vpow.pop %v1913
    %v1915 = vsel %vm1722, %v1852, 0.0
    %1916 = vadd.xlane.f32.xlu0 %v1915
    %v1917 = vpop.xlane.xlu0 %1916
    %v1918 = vsel %vm1722, %v1854, 0.0
    %1919 = vadd.xlane.f32.xlu0 %v1918
    %v1920 = vpop.xlane.xlu0 %1919
    %v1921 = vsel %vm1722, %v1856, 0.0
    %1922 = vadd.xlane.f32.xlu0 %v1921
    %v1923 = vpop.xlane.xlu0 %1922
    %v1924 = vsel %vm1722, %v1858, 0.0
    %1925 = vadd.xlane.f32.xlu0 %v1924
    %v1926 = vpop.xlane.xlu0 %1925
    %v1927 = vsel %vm1722, %v1860, 0.0
    %1928 = vadd.xlane.f32.xlu0 %v1927
    %v1929 = vpop.xlane.xlu0 %1928
    %v1930 = vsel %vm1722, %v1862, 0.0
    %1931 = vadd.xlane.f32.xlu0 %v1930
    %v1932 = vpop.xlane.xlu0 %1931
    %v1933 = vsel %vm1722, %v1864, 0.0
    %1934 = vadd.xlane.f32.xlu0 %v1933
    %v1935 = vpop.xlane.xlu0 %1934
    %v1936 = vsel %vm1722, %v1866, 0.0
    %1937 = vadd.xlane.f32.xlu0 %v1936
    %v1938 = vpop.xlane.xlu0 %1937
    %v1939 = vsel %vm1722, %v1868, 0.0
    %1940 = vadd.xlane.f32.xlu0 %v1939
    %v1941 = vpop.xlane.xlu0 %1940
    %v1942 = vsel %vm1722, %v1870, 0.0
    %1943 = vadd.xlane.f32.xlu0 %v1942
    %v1944 = vpop.xlane.xlu0 %1943
    %v1945 = vsel %vm1722, %v1872, 0.0
    %1946 = vadd.xlane.f32.xlu0 %v1945
    %v1947 = vpop.xlane.xlu0 %1946
    %v1948 = vsel %vm1722, %v1874, 0.0
    %1949 = vadd.xlane.f32.xlu0 %v1948
    %v1950 = vpop.xlane.xlu0 %1949
    %v1951 = vsel %vm1722, %v1876, 0.0
    %1952 = vadd.xlane.f32.xlu0 %v1951
    %v1953 = vpop.xlane.xlu0 %1952
    %v1954 = vsel %vm1722, %v1878, 0.0
    %1955 = vadd.xlane.f32.xlu0 %v1954
    %v1956 = vpop.xlane.xlu0 %1955
    %v1957 = vsel %vm1722, %v1880, 0.0
    %1958 = vadd.xlane.f32.xlu0 %v1957
    %v1959 = vpop.xlane.xlu0 %1958
    %v1960 = vsel %vm1722, %v1882, 0.0
    %1961 = vadd.xlane.f32.xlu0 %v1960
    %v1962 = vpop.xlane.xlu0 %1961
    %v1963 = vsel %vm1722, %v1884, 0.0
    %1964 = vadd.xlane.f32.xlu0 %v1963
    %v1965 = vpop.xlane.xlu0 %1964
    %v1966 = vsel %vm1722, %v1886, 0.0
    %1967 = vadd.xlane.f32.xlu0 %v1966
    %v1968 = vpop.xlane.xlu0 %1967
    %v1969 = vsel %vm1722, %v1888, 0.0
    %1970 = vadd.xlane.f32.xlu0 %v1969
    %v1971 = vpop.xlane.xlu0 %1970
    %v1972 = vsel %vm1722, %v1890, 0.0
    %1973 = vadd.xlane.f32.xlu0 %v1972
    %v1974 = vpop.xlane.xlu0 %1973
    %v1975 = vsel %vm1722, %v1892, 0.0
    %1976 = vadd.xlane.f32.xlu0 %v1975
    %v1977 = vpop.xlane.xlu0 %1976
    %v1978 = vsel %vm1722, %v1894, 0.0
    %1979 = vadd.xlane.f32.xlu0 %v1978
    %v1980 = vpop.xlane.xlu0 %1979
    %v1981 = vsel %vm1722, %v1896, 0.0
    %1982 = vadd.xlane.f32.xlu0 %v1981
    %v1983 = vpop.xlane.xlu0 %1982
    %v1984 = vsel %vm1722, %v1898, 0.0
    %1985 = vadd.xlane.f32.xlu0 %v1984
    %v1986 = vpop.xlane.xlu0 %1985
    %v1987 = vsel %vm1722, %v1900, 0.0
    %1988 = vadd.xlane.f32.xlu0 %v1987
    %v1989 = vpop.xlane.xlu0 %1988
    %v1990 = vsel %vm1722, %v1902, 0.0
    %1991 = vadd.xlane.f32.xlu0 %v1990
    %v1992 = vpop.xlane.xlu0 %1991
    %v1993 = vsel %vm1722, %v1904, 0.0
    %1994 = vadd.xlane.f32.xlu0 %v1993
    %v1995 = vpop.xlane.xlu0 %1994
    %v1996 = vsel %vm1722, %v1906, 0.0
    %1997 = vadd.xlane.f32.xlu0 %v1996
    %v1998 = vpop.xlane.xlu0 %1997
    %v1999 = vsel %vm1722, %v1908, 0.0
    %2000 = vadd.xlane.f32.xlu0 %v1999
    %v2001 = vpop.xlane.xlu0 %2000
    %v2002 = vsel %vm1722, %v1910, 0.0
    %2003 = vadd.xlane.f32.xlu0 %v2002
    %v2004 = vpop.xlane.xlu0 %2003
    %v2005 = vsel %vm1722, %v1912, 0.0
    %2006 = vadd.xlane.f32.xlu0 %v2005
    %v2007 = vpop.xlane.xlu0 %2006
    %v2008 = vsel %vm1722, %v1914, 0.0
    %2009 = vadd.xlane.f32.xlu0 %v2008
    %v2010 = vpop.xlane.xlu0 %2009
    %v2011 = vrcp.pop %v1917
    %v2012 = vrcp.pop %v1920
    %v2013 = vrcp.pop %v1923
    %v2014 = vrcp.pop %v1926
    %v2015 = vrcp.pop %v1929
    %v2016 = vrcp.pop %v1932
    %v2017 = vrcp.pop %v1935
    %v2018 = vrcp.pop %v1938
    %v2019 = vrcp.pop %v1941
    %v2020 = vrcp.pop %v1944
    %v2021 = vrcp.pop %v1947
    %v2022 = vrcp.pop %v1950
    %v2023 = vrcp.pop %v1953
    %v2024 = vrcp.pop %v1956
    %v2025 = vrcp.pop %v1959
    %v2026 = vrcp.pop %v1962
    %v2027 = vrcp.pop %v1965
    %v2028 = vrcp.pop %v1968
    %v2029 = vrcp.pop %v1971
    %v2030 = vrcp.pop %v1974
    %v2031 = vrcp.pop %v1977
    %v2032 = vrcp.pop %v1980
    %v2033 = vrcp.pop %v1983
    %v2034 = vrcp.pop %v1986
    %v2035 = vrcp.pop %v1989
    %v2036 = vrcp.pop %v1992
    %v2037 = vrcp.pop %v1995
    %v2038 = vrcp.pop %v1998
    %v2039 = vrcp.pop %v2001
    %v2040 = vrcp.pop %v2004
    %v2041 = vrcp.pop %v2007
    %v2042 = vrcp.pop %v2010
    %v2043 = vmul.f32 %v1852, %v2011
    %v2044 = vmul.f32 %v1854, %v2012
    %v2045 = vmul.f32 %v1856, %v2013
    %v2046 = vmul.f32 %v1858, %v2014
    %v2047 = vmul.f32 %v1860, %v2015
    %v2048 = vmul.f32 %v1862, %v2016
    %v2049 = vmul.f32 %v1864, %v2017
    %v2050 = vmul.f32 %v1866, %v2018
    %v2051 = vmul.f32 %v1868, %v2019
    %v2052 = vmul.f32 %v1870, %v2020
    %v2053 = vmul.f32 %v1872, %v2021
    %v2054 = vmul.f32 %v1874, %v2022
    %v2055 = vmul.f32 %v1876, %v2023
    %v2056 = vmul.f32 %v1878, %v2024
    %v2057 = vmul.f32 %v1880, %v2025
    %v2058 = vmul.f32 %v1882, %v2026
    %v2059 = vmul.f32 %v1884, %v2027
    %v2060 = vmul.f32 %v1886, %v2028
    %v2061 = vmul.f32 %v1888, %v2029
    %v2062 = vmul.f32 %v1890, %v2030
    %v2063 = vmul.f32 %v1892, %v2031
    %v2064 = vmul.f32 %v1894, %v2032
    %v2065 = vmul.f32 %v1896, %v2033
    %v2066 = vmul.f32 %v1898, %v2034
    %v2067 = vmul.f32 %v1900, %v2035
    %v2068 = vmul.f32 %v1902, %v2036
    %v2069 = vmul.f32 %v1904, %v2037
    %v2070 = vmul.f32 %v1906, %v2038
    %v2071 = vmul.f32 %v1908, %v2039
    %v2072 = vmul.f32 %v1910, %v2040
    %v2073 = vmul.f32 %v1912, %v2041
    %v2074 = vmul.f32 %v1914, %v2042
    %v2076 = vsel %vm1722, %v2043, 0
    %v2079 = vsel %vm1722, %v2044, 0
    %2081 = vmatprep.subr.mxu0 0.0
    %2082 = vmatpush1.msra.mxu0 0.0
    %2083 = vmatprep.subr.mxu0 0.0
    %2084 = vmatpush1.msra.mxu0 0.0
    %2085 = vmatprep.subr.mxu0 0.0
    %2086 = vmatpush1.msra.mxu0 0.0
    %2087 = vmatprep.subr.mxu0 0.0
    %2088 = vmatpush1.msra.mxu0 0.0
    %2089 = vmatprep.subr.mxu0 0.0
    %2090 = vmatpush1.msra.mxu0 0.0
    %2091 = vmatprep.subr.mxu0 0.0
    %2092 = vmatpush1.msra.mxu0 0.0
    %2093 = vmatprep.subr.mxu0 0.0
    %2094 = vmatpush1.msra.mxu0 0.0
    %2095 = vmatprep.subr.mxu0 0.0
    %2096 = vmatpush1.msra.mxu0 0.0
    %2097 = vmatprep.subr.mxu0 0.0
    %2098 = vmatpush1.msra.mxu0 0.0
    %2099 = vmatprep.subr.mxu0 0.0
    %2100 = vmatpush1.msra.mxu0 0.0
    %2101 = vmatprep.subr.mxu0 0.0
    %2102 = vmatpush1.msra.mxu0 0.0
    %2103 = vmatprep.subr.mxu0 0.0
    %2104 = vmatpush1.msra.mxu0 0.0
    %2105 = vmatprep.subr.mxu0 0.0
    %2106 = vmatpush1.msra.mxu0 0.0
    %2107 = vmatprep.subr.mxu0 0.0
    %2108 = vmatpush1.msra.mxu0 0.0
    %2109 = vmatprep.subr.mxu0 0.0
    %2110 = vmatpush1.msra.mxu0 %v167
    %2111 = vmatprep.subr.mxu0 0.0
    %2112 = vmatpush1.msra.mxu0 %v161
    %2113 = vmatprep.subr.mxu0 0.0
    %2114 = vmatpush2.msra.mxu0 0.0
    %2115 = vmatprep.subr.mxu0 0.0
    %2116 = vmatpush2.msra.mxu0 0.0
    %2117 = vmatprep.subr.mxu0 0.0
    %2118 = vmatpush2.msra.mxu0 0.0
    %2119 = vmatprep.subr.mxu0 0.0
    %2120 = vmatpush2.msra.mxu0 0.0
    %2121 = vmatprep.subr.mxu0 0.0
    %2122 = vmatpush2.msra.mxu0 0.0
    %2123 = vmatprep.subr.mxu0 0.0
    %2124 = vmatpush2.msra.mxu0 0.0
    %2125 = vmatprep.subr.mxu0 0.0
    %2126 = vmatpush2.msra.mxu0 0.0
    %2127 = vmatprep.subr.mxu0 0.0
    %2128 = vmatpush2.msra.mxu0 0.0
    %2129 = vmatprep.subr.mxu0 0.0
    %2130 = vmatpush2.msra.mxu0 0.0
    %2131 = vmatprep.subr.mxu0 0.0
    %2132 = vmatpush2.msra.mxu0 0.0
    %2133 = vmatprep.subr.mxu0 0.0
    %2134 = vmatpush2.msra.mxu0 0.0
    %2135 = vmatprep.subr.mxu0 0.0
    %2136 = vmatpush2.msra.mxu0 0.0
    %2137 = vmatprep.subr.mxu0 0.0
    %2138 = vmatpush2.msra.mxu0 0.0
    %2139 = vmatprep.subr.mxu0 0.0
    %2140 = vmatpush2.msra.mxu0 0.0
    %2141 = vmatprep.subr.mxu0 0.0
    %2142 = vmatpush2.msra.mxu0 0.0
    %2143 = vmatprep.subr.mxu0 0.0
    %2144 = vmatpush2.msra.mxu0 0.0
    %2145 = vmatprep.mubr.f32.mxu0 0.0
    %2146 = vmatmul.mubr.f32.gmra.mxu0 %v2076
    %v2147 = vpop.f32.mrf.mxu0
    %v2148 = vadd.f32 0.0, %v2147
    %v2149 = vpop.f32.mrf.mxu0
    %2150 = vmatprep.mubr.f32.mxu0 0.0
    %2151 = vmatmul.mubr.f32.gmra.mxu0 %v2079
    %v2152 = vpop.f32.mrf.mxu0
    %v2153 = vadd.f32 0.0, %v2152
    %v2154 = vpop.f32.mrf.mxu0
    %2155 = vdwg.mxu0
    %v2157 = vsel %vm1722, %v2045, 0
    %v2160 = vsel %vm1722, %v2046, 0
    %2162 = vmatprep.subr.mxu0 0.0
    %2163 = vmatpush1.msra.mxu0 0.0
    %2164 = vmatprep.subr.mxu0 0.0
    %2165 = vmatpush1.msra.mxu0 0.0
    %2166 = vmatprep.subr.mxu0 0.0
    %2167 = vmatpush1.msra.mxu0 0.0
    %2168 = vmatprep.subr.mxu0 0.0
    %2169 = vmatpush1.msra.mxu0 0.0
    %2170 = vmatprep.subr.mxu0 0.0
    %2171 = vmatpush1.msra.mxu0 0.0
    %2172 = vmatprep.subr.mxu0 0.0
    %2173 = vmatpush1.msra.mxu0 0.0
    %2174 = vmatprep.subr.mxu0 0.0
    %2175 = vmatpush1.msra.mxu0 0.0
    %2176 = vmatprep.subr.mxu0 0.0
    %2177 = vmatpush1.msra.mxu0 0.0
    %2178 = vmatprep.subr.mxu0 0.0
    %2179 = vmatpush1.msra.mxu0 0.0
    %2180 = vmatprep.subr.mxu0 0.0
    %2181 = vmatpush1.msra.mxu0 0.0
    %2182 = vmatprep.subr.mxu0 0.0
    %2183 = vmatpush1.msra.mxu0 0.0
    %2184 = vmatprep.subr.mxu0 0.0
    %2185 = vmatpush1.msra.mxu0 0.0
    %2186 = vmatprep.subr.mxu0 0.0
    %2187 = vmatpush1.msra.mxu0 0.0
    %2188 = vmatprep.subr.mxu0 0.0
    %2189 = vmatpush1.msra.mxu0 0.0
    %2190 = vmatprep.subr.mxu0 0.0
    %2191 = vmatpush1.msra.mxu0 %v179
    %2192 = vmatprep.subr.mxu0 0.0
    %2193 = vmatpush1.msra.mxu0 %v173
    %2194 = vmatprep.subr.mxu0 0.0
    %2195 = vmatpush2.msra.mxu0 0.0
    %2196 = vmatprep.subr.mxu0 0.0
    %2197 = vmatpush2.msra.mxu0 0.0
    %2198 = vmatprep.subr.mxu0 0.0
    %2199 = vmatpush2.msra.mxu0 0.0
    %2200 = vmatprep.subr.mxu0 0.0
    %2201 = vmatpush2.msra.mxu0 0.0
    %2202 = vmatprep.subr.mxu0 0.0
    %2203 = vmatpush2.msra.mxu0 0.0
    %2204 = vmatprep.subr.mxu0 0.0
    %2205 = vmatpush2.msra.mxu0 0.0
    %2206 = vmatprep.subr.mxu0 0.0
    %2207 = vmatpush2.msra.mxu0 0.0
    %2208 = vmatprep.subr.mxu0 0.0
    %2209 = vmatpush2.msra.mxu0 0.0
    %2210 = vmatprep.subr.mxu0 0.0
    %2211 = vmatpush2.msra.mxu0 0.0
    %2212 = vmatprep.subr.mxu0 0.0
    %2213 = vmatpush2.msra.mxu0 0.0
    %2214 = vmatprep.subr.mxu0 0.0
    %2215 = vmatpush2.msra.mxu0 0.0
    %2216 = vmatprep.subr.mxu0 0.0
    %2217 = vmatpush2.msra.mxu0 0.0
    %2218 = vmatprep.subr.mxu0 0.0
    %2219 = vmatpush2.msra.mxu0 0.0
    %2220 = vmatprep.subr.mxu0 0.0
    %2221 = vmatpush2.msra.mxu0 0.0
    %2222 = vmatprep.subr.mxu0 0.0
    %2223 = vmatpush2.msra.mxu0 0.0
    %2224 = vmatprep.subr.mxu0 0.0
    %2225 = vmatpush2.msra.mxu0 0.0
    %2226 = vmatprep.mubr.f32.mxu0 0.0
    %2227 = vmatmul.mubr.f32.gmra.mxu0 %v2157
    %v2228 = vpop.f32.mrf.mxu0
    %v2229 = vadd.f32 0.0, %v2228
    %v2230 = vpop.f32.mrf.mxu0
    %2231 = vmatprep.mubr.f32.mxu0 0.0
    %2232 = vmatmul.mubr.f32.gmra.mxu0 %v2160
    %v2233 = vpop.f32.mrf.mxu0
    %v2234 = vadd.f32 0.0, %v2233
    %v2235 = vpop.f32.mrf.mxu0
    %2236 = vdwg.mxu0
    %v2238 = vsel %vm1722, %v2047, 0
    %v2241 = vsel %vm1722, %v2048, 0
    %2243 = vmatprep.subr.mxu0 0.0
    %2244 = vmatpush1.msra.mxu0 0.0
    %2245 = vmatprep.subr.mxu0 0.0
    %2246 = vmatpush1.msra.mxu0 0.0
    %2247 = vmatprep.subr.mxu0 0.0
    %2248 = vmatpush1.msra.mxu0 0.0
    %2249 = vmatprep.subr.mxu0 0.0
    %2250 = vmatpush1.msra.mxu0 0.0
    %2251 = vmatprep.subr.mxu0 0.0
    %2252 = vmatpush1.msra.mxu0 0.0
    %2253 = vmatprep.subr.mxu0 0.0
    %2254 = vmatpush1.msra.mxu0 0.0
    %2255 = vmatprep.subr.mxu0 0.0
    %2256 = vmatpush1.msra.mxu0 0.0
    %2257 = vmatprep.subr.mxu0 0.0
    %2258 = vmatpush1.msra.mxu0 0.0
    %2259 = vmatprep.subr.mxu0 0.0
    %2260 = vmatpush1.msra.mxu0 0.0
    %2261 = vmatprep.subr.mxu0 0.0
    %2262 = vmatpush1.msra.mxu0 0.0
    %2263 = vmatprep.subr.mxu0 0.0
    %2264 = vmatpush1.msra.mxu0 0.0
    %2265 = vmatprep.subr.mxu0 0.0
    %2266 = vmatpush1.msra.mxu0 0.0
    %2267 = vmatprep.subr.mxu0 0.0
    %2268 = vmatpush1.msra.mxu0 0.0
    %2269 = vmatprep.subr.mxu0 0.0
    %2270 = vmatpush1.msra.mxu0 0.0
    %2271 = vmatprep.subr.mxu0 0.0
    %2272 = vmatpush1.msra.mxu0 %v248
    %2273 = vmatprep.subr.mxu0 0.0
    %2274 = vmatpush1.msra.mxu0 %v246
    %2275 = vmatprep.subr.mxu0 0.0
    %2276 = vmatpush2.msra.mxu0 0.0
    %2277 = vmatprep.subr.mxu0 0.0
    %2278 = vmatpush2.msra.mxu0 0.0
    %2279 = vmatprep.subr.mxu0 0.0
    %2280 = vmatpush2.msra.mxu0 0.0
    %2281 = vmatprep.subr.mxu0 0.0
    %2282 = vmatpush2.msra.mxu0 0.0
    %2283 = vmatprep.subr.mxu0 0.0
    %2284 = vmatpush2.msra.mxu0 0.0
    %2285 = vmatprep.subr.mxu0 0.0
    %2286 = vmatpush2.msra.mxu0 0.0
    %2287 = vmatprep.subr.mxu0 0.0
    %2288 = vmatpush2.msra.mxu0 0.0
    %2289 = vmatprep.subr.mxu0 0.0
    %2290 = vmatpush2.msra.mxu0 0.0
    %2291 = vmatprep.subr.mxu0 0.0
    %2292 = vmatpush2.msra.mxu0 0.0
    %2293 = vmatprep.subr.mxu0 0.0
    %2294 = vmatpush2.msra.mxu0 0.0
    %2295 = vmatprep.subr.mxu0 0.0
    %2296 = vmatpush2.msra.mxu0 0.0
    %2297 = vmatprep.subr.mxu0 0.0
    %2298 = vmatpush2.msra.mxu0 0.0
    %2299 = vmatprep.subr.mxu0 0.0
    %2300 = vmatpush2.msra.mxu0 0.0
    %2301 = vmatprep.subr.mxu0 0.0
    %2302 = vmatpush2.msra.mxu0 0.0
    %2303 = vmatprep.subr.mxu0 0.0
    %2304 = vmatpush2.msra.mxu0 0.0
    %2305 = vmatprep.subr.mxu0 0.0
    %2306 = vmatpush2.msra.mxu0 0.0
    %2307 = vmatprep.mubr.f32.mxu0 0.0
    %2308 = vmatmul.mubr.f32.gmra.mxu0 %v2238
    %v2309 = vpop.f32.mrf.mxu0
    %v2310 = vadd.f32 0.0, %v2309
    %v2311 = vpop.f32.mrf.mxu0
    %2312 = vmatprep.mubr.f32.mxu0 0.0
    %2313 = vmatmul.mubr.f32.gmra.mxu0 %v2241
    %v2314 = vpop.f32.mrf.mxu0
    %v2315 = vadd.f32 0.0, %v2314
    %v2316 = vpop.f32.mrf.mxu0
    %2317 = vdwg.mxu0
    %v2319 = vsel %vm1722, %v2049, 0
    %v2322 = vsel %vm1722, %v2050, 0
    %2324 = vmatprep.subr.mxu0 0.0
    %2325 = vmatpush1.msra.mxu0 0.0
    %2326 = vmatprep.subr.mxu0 0.0
    %2327 = vmatpush1.msra.mxu0 0.0
    %2328 = vmatprep.subr.mxu0 0.0
    %2329 = vmatpush1.msra.mxu0 0.0
    %2330 = vmatprep.subr.mxu0 0.0
    %2331 = vmatpush1.msra.mxu0 0.0
    %2332 = vmatprep.subr.mxu0 0.0
    %2333 = vmatpush1.msra.mxu0 0.0
    %2334 = vmatprep.subr.mxu0 0.0
    %2335 = vmatpush1.msra.mxu0 0.0
    %2336 = vmatprep.subr.mxu0 0.0
    %2337 = vmatpush1.msra.mxu0 0.0
    %2338 = vmatprep.subr.mxu0 0.0
    %2339 = vmatpush1.msra.mxu0 0.0
    %2340 = vmatprep.subr.mxu0 0.0
    %2341 = vmatpush1.msra.mxu0 0.0
    %2342 = vmatprep.subr.mxu0 0.0
    %2343 = vmatpush1.msra.mxu0 0.0
    %2344 = vmatprep.subr.mxu0 0.0
    %2345 = vmatpush1.msra.mxu0 0.0
    %2346 = vmatprep.subr.mxu0 0.0
    %2347 = vmatpush1.msra.mxu0 0.0
    %2348 = vmatprep.subr.mxu0 0.0
    %2349 = vmatpush1.msra.mxu0 0.0
    %2350 = vmatprep.subr.mxu0 0.0
    %2351 = vmatpush1.msra.mxu0 0.0
    %2352 = vmatprep.subr.mxu0 0.0
    %2353 = vmatpush1.msra.mxu0 %v252
    %2354 = vmatprep.subr.mxu0 0.0
    %2355 = vmatpush1.msra.mxu0 %v250
    %2356 = vmatprep.subr.mxu0 0.0
    %2357 = vmatpush2.msra.mxu0 0.0
    %2358 = vmatprep.subr.mxu0 0.0
    %2359 = vmatpush2.msra.mxu0 0.0
    %2360 = vmatprep.subr.mxu0 0.0
    %2361 = vmatpush2.msra.mxu0 0.0
    %2362 = vmatprep.subr.mxu0 0.0
    %2363 = vmatpush2.msra.mxu0 0.0
    %2364 = vmatprep.subr.mxu0 0.0
    %2365 = vmatpush2.msra.mxu0 0.0
    %2366 = vmatprep.subr.mxu0 0.0
    %2367 = vmatpush2.msra.mxu0 0.0
    %2368 = vmatprep.subr.mxu0 0.0
    %2369 = vmatpush2.msra.mxu0 0.0
    %2370 = vmatprep.subr.mxu0 0.0
    %2371 = vmatpush2.msra.mxu0 0.0
    %2372 = vmatprep.subr.mxu0 0.0
    %2373 = vmatpush2.msra.mxu0 0.0
    %2374 = vmatprep.subr.mxu0 0.0
    %2375 = vmatpush2.msra.mxu0 0.0
    %2376 = vmatprep.subr.mxu0 0.0
    %2377 = vmatpush2.msra.mxu0 0.0
    %2378 = vmatprep.subr.mxu0 0.0
    %2379 = vmatpush2.msra.mxu0 0.0
    %2380 = vmatprep.subr.mxu0 0.0
    %2381 = vmatpush2.msra.mxu0 0.0
    %2382 = vmatprep.subr.mxu0 0.0
    %2383 = vmatpush2.msra.mxu0 0.0
    %2384 = vmatprep.subr.mxu0 0.0
    %2385 = vmatpush2.msra.mxu0 0.0
    %2386 = vmatprep.subr.mxu0 0.0
    %2387 = vmatpush2.msra.mxu0 0.0
    %2388 = vmatprep.mubr.f32.mxu0 0.0
    %2389 = vmatmul.mubr.f32.gmra.mxu0 %v2319
    %v2390 = vpop.f32.mrf.mxu0
    %v2391 = vadd.f32 0.0, %v2390
    %v2392 = vpop.f32.mrf.mxu0
    %2393 = vmatprep.mubr.f32.mxu0 0.0
    %2394 = vmatmul.mubr.f32.gmra.mxu0 %v2322
    %v2395 = vpop.f32.mrf.mxu0
    %v2396 = vadd.f32 0.0, %v2395
    %v2397 = vpop.f32.mrf.mxu0
    %2398 = vdwg.mxu0
    %v2400 = vsel %vm1722, %v2051, 0
    %v2403 = vsel %vm1722, %v2052, 0
    %2405 = vmatprep.subr.mxu0 0.0
    %2406 = vmatpush1.msra.mxu0 0.0
    %2407 = vmatprep.subr.mxu0 0.0
    %2408 = vmatpush1.msra.mxu0 0.0
    %2409 = vmatprep.subr.mxu0 0.0
    %2410 = vmatpush1.msra.mxu0 0.0
    %2411 = vmatprep.subr.mxu0 0.0
    %2412 = vmatpush1.msra.mxu0 0.0
    %2413 = vmatprep.subr.mxu0 0.0
    %2414 = vmatpush1.msra.mxu0 0.0
    %2415 = vmatprep.subr.mxu0 0.0
    %2416 = vmatpush1.msra.mxu0 0.0
    %2417 = vmatprep.subr.mxu0 0.0
    %2418 = vmatpush1.msra.mxu0 0.0
    %2419 = vmatprep.subr.mxu0 0.0
    %2420 = vmatpush1.msra.mxu0 0.0
    %2421 = vmatprep.subr.mxu0 0.0
    %2422 = vmatpush1.msra.mxu0 0.0
    %2423 = vmatprep.subr.mxu0 0.0
    %2424 = vmatpush1.msra.mxu0 0.0
    %2425 = vmatprep.subr.mxu0 0.0
    %2426 = vmatpush1.msra.mxu0 0.0
    %2427 = vmatprep.subr.mxu0 0.0
    %2428 = vmatpush1.msra.mxu0 0.0
    %2429 = vmatprep.subr.mxu0 0.0
    %2430 = vmatpush1.msra.mxu0 0.0
    %2431 = vmatprep.subr.mxu0 0.0
    %2432 = vmatpush1.msra.mxu0 0.0
    %2433 = vmatprep.subr.mxu0 0.0
    %2434 = vmatpush1.msra.mxu0 %v260
    %2435 = vmatprep.subr.mxu0 0.0
    %2436 = vmatpush1.msra.mxu0 %v258
    %2437 = vmatprep.subr.mxu0 0.0
    %2438 = vmatpush2.msra.mxu0 0.0
    %2439 = vmatprep.subr.mxu0 0.0
    %2440 = vmatpush2.msra.mxu0 0.0
    %2441 = vmatprep.subr.mxu0 0.0
    %2442 = vmatpush2.msra.mxu0 0.0
    %2443 = vmatprep.subr.mxu0 0.0
    %2444 = vmatpush2.msra.mxu0 0.0
    %2445 = vmatprep.subr.mxu0 0.0
    %2446 = vmatpush2.msra.mxu0 0.0
    %2447 = vmatprep.subr.mxu0 0.0
    %2448 = vmatpush2.msra.mxu0 0.0
    %2449 = vmatprep.subr.mxu0 0.0
    %2450 = vmatpush2.msra.mxu0 0.0
    %2451 = vmatprep.subr.mxu0 0.0
    %2452 = vmatpush2.msra.mxu0 0.0
    %2453 = vmatprep.subr.mxu0 0.0
    %2454 = vmatpush2.msra.mxu0 0.0
    %2455 = vmatprep.subr.mxu0 0.0
    %2456 = vmatpush2.msra.mxu0 0.0
    %2457 = vmatprep.subr.mxu0 0.0
    %2458 = vmatpush2.msra.mxu0 0.0
    %2459 = vmatprep.subr.mxu0 0.0
    %2460 = vmatpush2.msra.mxu0 0.0
    %2461 = vmatprep.subr.mxu0 0.0
    %2462 = vmatpush2.msra.mxu0 0.0
    %2463 = vmatprep.subr.mxu0 0.0
    %2464 = vmatpush2.msra.mxu0 0.0
    %2465 = vmatprep.subr.mxu0 0.0
    %2466 = vmatpush2.msra.mxu0 0.0
    %2467 = vmatprep.subr.mxu0 0.0
    %2468 = vmatpush2.msra.mxu0 0.0
    %2469 = vmatprep.mubr.f32.mxu0 0.0
    %2470 = vmatmul.mubr.f32.gmra.mxu0 %v2400
    %v2471 = vpop.f32.mrf.mxu0
    %v2472 = vadd.f32 0.0, %v2471
    %v2473 = vpop.f32.mrf.mxu0
    %2474 = vmatprep.mubr.f32.mxu0 0.0
    %2475 = vmatmul.mubr.f32.gmra.mxu0 %v2403
    %v2476 = vpop.f32.mrf.mxu0
    %v2477 = vadd.f32 0.0, %v2476
    %v2478 = vpop.f32.mrf.mxu0
    %2479 = vdwg.mxu0
    %v2481 = vsel %vm1722, %v2053, 0
    %v2484 = vsel %vm1722, %v2054, 0
    %2486 = vmatprep.subr.mxu0 0.0
    %2487 = vmatpush1.msra.mxu0 0.0
    %2488 = vmatprep.subr.mxu0 0.0
    %2489 = vmatpush1.msra.mxu0 0.0
    %2490 = vmatprep.subr.mxu0 0.0
    %2491 = vmatpush1.msra.mxu0 0.0
    %2492 = vmatprep.subr.mxu0 0.0
    %2493 = vmatpush1.msra.mxu0 0.0
    %2494 = vmatprep.subr.mxu0 0.0
    %2495 = vmatpush1.msra.mxu0 0.0
    %2496 = vmatprep.subr.mxu0 0.0
    %2497 = vmatpush1.msra.mxu0 0.0
    %2498 = vmatprep.subr.mxu0 0.0
    %2499 = vmatpush1.msra.mxu0 0.0
    %2500 = vmatprep.subr.mxu0 0.0
    %2501 = vmatpush1.msra.mxu0 0.0
    %2502 = vmatprep.subr.mxu0 0.0
    %2503 = vmatpush1.msra.mxu0 0.0
    %2504 = vmatprep.subr.mxu0 0.0
    %2505 = vmatpush1.msra.mxu0 0.0
    %2506 = vmatprep.subr.mxu0 0.0
    %2507 = vmatpush1.msra.mxu0 0.0
    %2508 = vmatprep.subr.mxu0 0.0
    %2509 = vmatpush1.msra.mxu0 0.0
    %2510 = vmatprep.subr.mxu0 0.0
    %2511 = vmatpush1.msra.mxu0 0.0
    %2512 = vmatprep.subr.mxu0 0.0
    %2513 = vmatpush1.msra.mxu0 0.0
    %2514 = vmatprep.subr.mxu0 0.0
    %2515 = vmatpush1.msra.mxu0 %v264
    %2516 = vmatprep.subr.mxu0 0.0
    %2517 = vmatpush1.msra.mxu0 %v262
    %2518 = vmatprep.subr.mxu0 0.0
    %2519 = vmatpush2.msra.mxu0 0.0
    %2520 = vmatprep.subr.mxu0 0.0
    %2521 = vmatpush2.msra.mxu0 0.0
    %2522 = vmatprep.subr.mxu0 0.0
    %2523 = vmatpush2.msra.mxu0 0.0
    %2524 = vmatprep.subr.mxu0 0.0
    %2525 = vmatpush2.msra.mxu0 0.0
    %2526 = vmatprep.subr.mxu0 0.0
    %2527 = vmatpush2.msra.mxu0 0.0
    %2528 = vmatprep.subr.mxu0 0.0
    %2529 = vmatpush2.msra.mxu0 0.0
    %2530 = vmatprep.subr.mxu0 0.0
    %2531 = vmatpush2.msra.mxu0 0.0
    %2532 = vmatprep.subr.mxu0 0.0
    %2533 = vmatpush2.msra.mxu0 0.0
    %2534 = vmatprep.subr.mxu0 0.0
    %2535 = vmatpush2.msra.mxu0 0.0
    %2536 = vmatprep.subr.mxu0 0.0
    %2537 = vmatpush2.msra.mxu0 0.0
    %2538 = vmatprep.subr.mxu0 0.0
    %2539 = vmatpush2.msra.mxu0 0.0
    %2540 = vmatprep.subr.mxu0 0.0
    %2541 = vmatpush2.msra.mxu0 0.0
    %2542 = vmatprep.subr.mxu0 0.0
    %2543 = vmatpush2.msra.mxu0 0.0
    %2544 = vmatprep.subr.mxu0 0.0
    %2545 = vmatpush2.msra.mxu0 0.0
    %2546 = vmatprep.subr.mxu0 0.0
    %2547 = vmatpush2.msra.mxu0 0.0
    %2548 = vmatprep.subr.mxu0 0.0
    %2549 = vmatpush2.msra.mxu0 0.0
    %2550 = vmatprep.mubr.f32.mxu0 0.0
    %2551 = vmatmul.mubr.f32.gmra.mxu0 %v2481
    %v2552 = vpop.f32.mrf.mxu0
    %v2553 = vadd.f32 0.0, %v2552
    %v2554 = vpop.f32.mrf.mxu0
    %2555 = vmatprep.mubr.f32.mxu0 0.0
    %2556 = vmatmul.mubr.f32.gmra.mxu0 %v2484
    %v2557 = vpop.f32.mrf.mxu0
    %v2558 = vadd.f32 0.0, %v2557
    %v2559 = vpop.f32.mrf.mxu0
    %2560 = vdwg.mxu0
    %v2562 = vsel %vm1722, %v2055, 0
    %v2565 = vsel %vm1722, %v2056, 0
    %2567 = vmatprep.subr.mxu0 0.0
    %2568 = vmatpush1.msra.mxu0 0.0
    %2569 = vmatprep.subr.mxu0 0.0
    %2570 = vmatpush1.msra.mxu0 0.0
    %2571 = vmatprep.subr.mxu0 0.0
    %2572 = vmatpush1.msra.mxu0 0.0
    %2573 = vmatprep.subr.mxu0 0.0
    %2574 = vmatpush1.msra.mxu0 0.0
    %2575 = vmatprep.subr.mxu0 0.0
    %2576 = vmatpush1.msra.mxu0 0.0
    %2577 = vmatprep.subr.mxu0 0.0
    %2578 = vmatpush1.msra.mxu0 0.0
    %2579 = vmatprep.subr.mxu0 0.0
    %2580 = vmatpush1.msra.mxu0 0.0
    %2581 = vmatprep.subr.mxu0 0.0
    %2582 = vmatpush1.msra.mxu0 0.0
    %2583 = vmatprep.subr.mxu0 0.0
    %2584 = vmatpush1.msra.mxu0 0.0
    %2585 = vmatprep.subr.mxu0 0.0
    %2586 = vmatpush1.msra.mxu0 0.0
    %2587 = vmatprep.subr.mxu0 0.0
    %2588 = vmatpush1.msra.mxu0 0.0
    %2589 = vmatprep.subr.mxu0 0.0
    %2590 = vmatpush1.msra.mxu0 0.0
    %2591 = vmatprep.subr.mxu0 0.0
    %2592 = vmatpush1.msra.mxu0 0.0
    %2593 = vmatprep.subr.mxu0 0.0
    %2594 = vmatpush1.msra.mxu0 0.0
    %2595 = vmatprep.subr.mxu0 0.0
    %2596 = vmatpush1.msra.mxu0 %v272
    %2597 = vmatprep.subr.mxu0 0.0
    %2598 = vmatpush1.msra.mxu0 %v270
    %2599 = vmatprep.subr.mxu0 0.0
    %2600 = vmatpush2.msra.mxu0 0.0
    %2601 = vmatprep.subr.mxu0 0.0
    %2602 = vmatpush2.msra.mxu0 0.0
    %2603 = vmatprep.subr.mxu0 0.0
    %2604 = vmatpush2.msra.mxu0 0.0
    %2605 = vmatprep.subr.mxu0 0.0
    %2606 = vmatpush2.msra.mxu0 0.0
    %2607 = vmatprep.subr.mxu0 0.0
    %2608 = vmatpush2.msra.mxu0 0.0
    %2609 = vmatprep.subr.mxu0 0.0
    %2610 = vmatpush2.msra.mxu0 0.0
    %2611 = vmatprep.subr.mxu0 0.0
    %2612 = vmatpush2.msra.mxu0 0.0
    %2613 = vmatprep.subr.mxu0 0.0
    %2614 = vmatpush2.msra.mxu0 0.0
    %2615 = vmatprep.subr.mxu0 0.0
    %2616 = vmatpush2.msra.mxu0 0.0
    %2617 = vmatprep.subr.mxu0 0.0
    %2618 = vmatpush2.msra.mxu0 0.0
    %2619 = vmatprep.subr.mxu0 0.0
    %2620 = vmatpush2.msra.mxu0 0.0
    %2621 = vmatprep.subr.mxu0 0.0
    %2622 = vmatpush2.msra.mxu0 0.0
    %2623 = vmatprep.subr.mxu0 0.0
    %2624 = vmatpush2.msra.mxu0 0.0
    %2625 = vmatprep.subr.mxu0 0.0
    %2626 = vmatpush2.msra.mxu0 0.0
    %2627 = vmatprep.subr.mxu0 0.0
    %2628 = vmatpush2.msra.mxu0 0.0
    %2629 = vmatprep.subr.mxu0 0.0
    %2630 = vmatpush2.msra.mxu0 0.0
    %2631 = vmatprep.mubr.f32.mxu0 0.0
    %2632 = vmatmul.mubr.f32.gmra.mxu0 %v2562
    %v2633 = vpop.f32.mrf.mxu0
    %v2634 = vadd.f32 0.0, %v2633
    %v2635 = vpop.f32.mrf.mxu0
    %2636 = vmatprep.mubr.f32.mxu0 0.0
    %2637 = vmatmul.mubr.f32.gmra.mxu0 %v2565
    %v2638 = vpop.f32.mrf.mxu0
    %v2639 = vadd.f32 0.0, %v2638
    %v2640 = vpop.f32.mrf.mxu0
    %2641 = vdwg.mxu0
    %v2643 = vsel %vm1722, %v2057, 0
    %v2646 = vsel %vm1722, %v2058, 0
    %2648 = vmatprep.subr.mxu0 0.0
    %2649 = vmatpush1.msra.mxu0 0.0
    %2650 = vmatprep.subr.mxu0 0.0
    %2651 = vmatpush1.msra.mxu0 0.0
    %2652 = vmatprep.subr.mxu0 0.0
    %2653 = vmatpush1.msra.mxu0 0.0
    %2654 = vmatprep.subr.mxu0 0.0
    %2655 = vmatpush1.msra.mxu0 0.0
    %2656 = vmatprep.subr.mxu0 0.0
    %2657 = vmatpush1.msra.mxu0 0.0
    %2658 = vmatprep.subr.mxu0 0.0
    %2659 = vmatpush1.msra.mxu0 0.0
    %2660 = vmatprep.subr.mxu0 0.0
    %2661 = vmatpush1.msra.mxu0 0.0
    %2662 = vmatprep.subr.mxu0 0.0
    %2663 = vmatpush1.msra.mxu0 0.0
    %2664 = vmatprep.subr.mxu0 0.0
    %2665 = vmatpush1.msra.mxu0 0.0
    %2666 = vmatprep.subr.mxu0 0.0
    %2667 = vmatpush1.msra.mxu0 0.0
    %2668 = vmatprep.subr.mxu0 0.0
    %2669 = vmatpush1.msra.mxu0 0.0
    %2670 = vmatprep.subr.mxu0 0.0
    %2671 = vmatpush1.msra.mxu0 0.0
    %2672 = vmatprep.subr.mxu0 0.0
    %2673 = vmatpush1.msra.mxu0 0.0
    %2674 = vmatprep.subr.mxu0 0.0
    %2675 = vmatpush1.msra.mxu0 0.0
    %2676 = vmatprep.subr.mxu0 0.0
    %2677 = vmatpush1.msra.mxu0 %v276
    %2678 = vmatprep.subr.mxu0 0.0
    %2679 = vmatpush1.msra.mxu0 %v274
    %2680 = vmatprep.subr.mxu0 0.0
    %2681 = vmatpush2.msra.mxu0 0.0
    %2682 = vmatprep.subr.mxu0 0.0
    %2683 = vmatpush2.msra.mxu0 0.0
    %2684 = vmatprep.subr.mxu0 0.0
    %2685 = vmatpush2.msra.mxu0 0.0
    %2686 = vmatprep.subr.mxu0 0.0
    %2687 = vmatpush2.msra.mxu0 0.0
    %2688 = vmatprep.subr.mxu0 0.0
    %2689 = vmatpush2.msra.mxu0 0.0
    %2690 = vmatprep.subr.mxu0 0.0
    %2691 = vmatpush2.msra.mxu0 0.0
    %2692 = vmatprep.subr.mxu0 0.0
    %2693 = vmatpush2.msra.mxu0 0.0
    %2694 = vmatprep.subr.mxu0 0.0
    %2695 = vmatpush2.msra.mxu0 0.0
    %2696 = vmatprep.subr.mxu0 0.0
    %2697 = vmatpush2.msra.mxu0 0.0
    %2698 = vmatprep.subr.mxu0 0.0
    %2699 = vmatpush2.msra.mxu0 0.0
    %2700 = vmatprep.subr.mxu0 0.0
    %2701 = vmatpush2.msra.mxu0 0.0
    %2702 = vmatprep.subr.mxu0 0.0
    %2703 = vmatpush2.msra.mxu0 0.0
    %2704 = vmatprep.subr.mxu0 0.0
    %2705 = vmatpush2.msra.mxu0 0.0
    %2706 = vmatprep.subr.mxu0 0.0
    %2707 = vmatpush2.msra.mxu0 0.0
    %2708 = vmatprep.subr.mxu0 0.0
    %2709 = vmatpush2.msra.mxu0 0.0
    %2710 = vmatprep.subr.mxu0 0.0
    %2711 = vmatpush2.msra.mxu0 0.0
    %2712 = vmatprep.mubr.f32.mxu0 0.0
    %2713 = vmatmul.mubr.f32.gmra.mxu0 %v2643
    %v2714 = vpop.f32.mrf.mxu0
    %v2715 = vadd.f32 0.0, %v2714
    %v2716 = vpop.f32.mrf.mxu0
    %2717 = vmatprep.mubr.f32.mxu0 0.0
    %2718 = vmatmul.mubr.f32.gmra.mxu0 %v2646
    %v2719 = vpop.f32.mrf.mxu0
    %v2720 = vadd.f32 0.0, %v2719
    %v2721 = vpop.f32.mrf.mxu0
    %2722 = vdwg.mxu0
    %v2724 = vsel %vm1722, %v2059, 0
    %v2727 = vsel %vm1722, %v2060, 0
    %2729 = vmatprep.subr.mxu0 0.0
    %2730 = vmatpush1.msra.mxu0 0.0
    %2731 = vmatprep.subr.mxu0 0.0
    %2732 = vmatpush1.msra.mxu0 0.0
    %2733 = vmatprep.subr.mxu0 0.0
    %2734 = vmatpush1.msra.mxu0 0.0
    %2735 = vmatprep.subr.mxu0 0.0
    %2736 = vmatpush1.msra.mxu0 0.0
    %2737 = vmatprep.subr.mxu0 0.0
    %2738 = vmatpush1.msra.mxu0 0.0
    %2739 = vmatprep.subr.mxu0 0.0
    %2740 = vmatpush1.msra.mxu0 0.0
    %2741 = vmatprep.subr.mxu0 0.0
    %2742 = vmatpush1.msra.mxu0 0.0
    %2743 = vmatprep.subr.mxu0 0.0
    %2744 = vmatpush1.msra.mxu0 0.0
    %2745 = vmatprep.subr.mxu0 0.0
    %2746 = vmatpush1.msra.mxu0 0.0
    %2747 = vmatprep.subr.mxu0 0.0
    %2748 = vmatpush1.msra.mxu0 0.0
    %2749 = vmatprep.subr.mxu0 0.0
    %2750 = vmatpush1.msra.mxu0 0.0
    %2751 = vmatprep.subr.mxu0 0.0
    %2752 = vmatpush1.msra.mxu0 0.0
    %2753 = vmatprep.subr.mxu0 0.0
    %2754 = vmatpush1.msra.mxu0 0.0
    %2755 = vmatprep.subr.mxu0 0.0
    %2756 = vmatpush1.msra.mxu0 0.0
    %2757 = vmatprep.subr.mxu0 0.0
    %2758 = vmatpush1.msra.mxu0 %v284
    %2759 = vmatprep.subr.mxu0 0.0
    %2760 = vmatpush1.msra.mxu0 %v282
    %2761 = vmatprep.subr.mxu0 0.0
    %2762 = vmatpush2.msra.mxu0 0.0
    %2763 = vmatprep.subr.mxu0 0.0
    %2764 = vmatpush2.msra.mxu0 0.0
    %2765 = vmatprep.subr.mxu0 0.0
    %2766 = vmatpush2.msra.mxu0 0.0
    %2767 = vmatprep.subr.mxu0 0.0
    %2768 = vmatpush2.msra.mxu0 0.0
    %2769 = vmatprep.subr.mxu0 0.0
    %2770 = vmatpush2.msra.mxu0 0.0
    %2771 = vmatprep.subr.mxu0 0.0
    %2772 = vmatpush2.msra.mxu0 0.0
    %2773 = vmatprep.subr.mxu0 0.0
    %2774 = vmatpush2.msra.mxu0 0.0
    %2775 = vmatprep.subr.mxu0 0.0
    %2776 = vmatpush2.msra.mxu0 0.0
    %2777 = vmatprep.subr.mxu0 0.0
    %2778 = vmatpush2.msra.mxu0 0.0
    %2779 = vmatprep.subr.mxu0 0.0
    %2780 = vmatpush2.msra.mxu0 0.0
    %2781 = vmatprep.subr.mxu0 0.0
    %2782 = vmatpush2.msra.mxu0 0.0
    %2783 = vmatprep.subr.mxu0 0.0
    %2784 = vmatpush2.msra.mxu0 0.0
    %2785 = vmatprep.subr.mxu0 0.0
    %2786 = vmatpush2.msra.mxu0 0.0
    %2787 = vmatprep.subr.mxu0 0.0
    %2788 = vmatpush2.msra.mxu0 0.0
    %2789 = vmatprep.subr.mxu0 0.0
    %2790 = vmatpush2.msra.mxu0 0.0
    %2791 = vmatprep.subr.mxu0 0.0
    %2792 = vmatpush2.msra.mxu0 0.0
    %2793 = vmatprep.mubr.f32.mxu0 0.0
    %2794 = vmatmul.mubr.f32.gmra.mxu0 %v2724
    %v2795 = vpop.f32.mrf.mxu0
    %v2796 = vadd.f32 0.0, %v2795
    %v2797 = vpop.f32.mrf.mxu0
    %2798 = vmatprep.mubr.f32.mxu0 0.0
    %2799 = vmatmul.mubr.f32.gmra.mxu0 %v2727
    %v2800 = vpop.f32.mrf.mxu0
    %v2801 = vadd.f32 0.0, %v2800
    %v2802 = vpop.f32.mrf.mxu0
    %2803 = vdwg.mxu0
    %v2805 = vsel %vm1722, %v2061, 0
    %v2808 = vsel %vm1722, %v2062, 0
    %2810 = vmatprep.subr.mxu0 0.0
    %2811 = vmatpush1.msra.mxu0 0.0
    %2812 = vmatprep.subr.mxu0 0.0
    %2813 = vmatpush1.msra.mxu0 0.0
    %2814 = vmatprep.subr.mxu0 0.0
    %2815 = vmatpush1.msra.mxu0 0.0
    %2816 = vmatprep.subr.mxu0 0.0
    %2817 = vmatpush1.msra.mxu0 0.0
    %2818 = vmatprep.subr.mxu0 0.0
    %2819 = vmatpush1.msra.mxu0 0.0
    %2820 = vmatprep.subr.mxu0 0.0
    %2821 = vmatpush1.msra.mxu0 0.0
    %2822 = vmatprep.subr.mxu0 0.0
    %2823 = vmatpush1.msra.mxu0 0.0
    %2824 = vmatprep.subr.mxu0 0.0
    %2825 = vmatpush1.msra.mxu0 0.0
    %2826 = vmatprep.subr.mxu0 0.0
    %2827 = vmatpush1.msra.mxu0 0.0
    %2828 = vmatprep.subr.mxu0 0.0
    %2829 = vmatpush1.msra.mxu0 0.0
    %2830 = vmatprep.subr.mxu0 0.0
    %2831 = vmatpush1.msra.mxu0 0.0
    %2832 = vmatprep.subr.mxu0 0.0
    %2833 = vmatpush1.msra.mxu0 0.0
    %2834 = vmatprep.subr.mxu0 0.0
    %2835 = vmatpush1.msra.mxu0 0.0
    %2836 = vmatprep.subr.mxu0 0.0
    %2837 = vmatpush1.msra.mxu0 0.0
    %2838 = vmatprep.subr.mxu0 0.0
    %2839 = vmatpush1.msra.mxu0 %v288
    %2840 = vmatprep.subr.mxu0 0.0
    %2841 = vmatpush1.msra.mxu0 %v286
    %2842 = vmatprep.subr.mxu0 0.0
    %2843 = vmatpush2.msra.mxu0 0.0
    %2844 = vmatprep.subr.mxu0 0.0
    %2845 = vmatpush2.msra.mxu0 0.0
    %2846 = vmatprep.subr.mxu0 0.0
    %2847 = vmatpush2.msra.mxu0 0.0
    %2848 = vmatprep.subr.mxu0 0.0
    %2849 = vmatpush2.msra.mxu0 0.0
    %2850 = vmatprep.subr.mxu0 0.0
    %2851 = vmatpush2.msra.mxu0 0.0
    %2852 = vmatprep.subr.mxu0 0.0
    %2853 = vmatpush2.msra.mxu0 0.0
    %2854 = vmatprep.subr.mxu0 0.0
    %2855 = vmatpush2.msra.mxu0 0.0
    %2856 = vmatprep.subr.mxu0 0.0
    %2857 = vmatpush2.msra.mxu0 0.0
    %2858 = vmatprep.subr.mxu0 0.0
    %2859 = vmatpush2.msra.mxu0 0.0
    %2860 = vmatprep.subr.mxu0 0.0
    %2861 = vmatpush2.msra.mxu0 0.0
    %2862 = vmatprep.subr.mxu0 0.0
    %2863 = vmatpush2.msra.mxu0 0.0
    %2864 = vmatprep.subr.mxu0 0.0
    %2865 = vmatpush2.msra.mxu0 0.0
    %2866 = vmatprep.subr.mxu0 0.0
    %2867 = vmatpush2.msra.mxu0 0.0
    %2868 = vmatprep.subr.mxu0 0.0
    %2869 = vmatpush2.msra.mxu0 0.0
    %2870 = vmatprep.subr.mxu0 0.0
    %2871 = vmatpush2.msra.mxu0 0.0
    %2872 = vmatprep.subr.mxu0 0.0
    %2873 = vmatpush2.msra.mxu0 0.0
    %2874 = vmatprep.mubr.f32.mxu0 0.0
    %2875 = vmatmul.mubr.f32.gmra.mxu0 %v2805
    %v2876 = vpop.f32.mrf.mxu0
    %v2877 = vadd.f32 0.0, %v2876
    %v2878 = vpop.f32.mrf.mxu0
    %2879 = vmatprep.mubr.f32.mxu0 0.0
    %2880 = vmatmul.mubr.f32.gmra.mxu0 %v2808
    %v2881 = vpop.f32.mrf.mxu0
    %v2882 = vadd.f32 0.0, %v2881
    %v2883 = vpop.f32.mrf.mxu0
    %2884 = vdwg.mxu0
    %v2886 = vsel %vm1722, %v2063, 0
    %v2889 = vsel %vm1722, %v2064, 0
    %2891 = vmatprep.subr.mxu0 0.0
    %2892 = vmatpush1.msra.mxu0 0.0
    %2893 = vmatprep.subr.mxu0 0.0
    %2894 = vmatpush1.msra.mxu0 0.0
    %2895 = vmatprep.subr.mxu0 0.0
    %2896 = vmatpush1.msra.mxu0 0.0
    %2897 = vmatprep.subr.mxu0 0.0
    %2898 = vmatpush1.msra.mxu0 0.0
    %2899 = vmatprep.subr.mxu0 0.0
    %2900 = vmatpush1.msra.mxu0 0.0
    %2901 = vmatprep.subr.mxu0 0.0
    %2902 = vmatpush1.msra.mxu0 0.0
    %2903 = vmatprep.subr.mxu0 0.0
    %2904 = vmatpush1.msra.mxu0 0.0
    %2905 = vmatprep.subr.mxu0 0.0
    %2906 = vmatpush1.msra.mxu0 0.0
    %2907 = vmatprep.subr.mxu0 0.0
    %2908 = vmatpush1.msra.mxu0 0.0
    %2909 = vmatprep.subr.mxu0 0.0
    %2910 = vmatpush1.msra.mxu0 0.0
    %2911 = vmatprep.subr.mxu0 0.0
    %2912 = vmatpush1.msra.mxu0 0.0
    %2913 = vmatprep.subr.mxu0 0.0
    %2914 = vmatpush1.msra.mxu0 0.0
    %2915 = vmatprep.subr.mxu0 0.0
    %2916 = vmatpush1.msra.mxu0 0.0
    %2917 = vmatprep.subr.mxu0 0.0
    %2918 = vmatpush1.msra.mxu0 0.0
    %2919 = vmatprep.subr.mxu0 0.0
    %2920 = vmatpush1.msra.mxu0 %v296
    %2921 = vmatprep.subr.mxu0 0.0
    %2922 = vmatpush1.msra.mxu0 %v294
    %2923 = vmatprep.subr.mxu0 0.0
    %2924 = vmatpush2.msra.mxu0 0.0
    %2925 = vmatprep.subr.mxu0 0.0
    %2926 = vmatpush2.msra.mxu0 0.0
    %2927 = vmatprep.subr.mxu0 0.0
    %2928 = vmatpush2.msra.mxu0 0.0
    %2929 = vmatprep.subr.mxu0 0.0
    %2930 = vmatpush2.msra.mxu0 0.0
    %2931 = vmatprep.subr.mxu0 0.0
    %2932 = vmatpush2.msra.mxu0 0.0
    %2933 = vmatprep.subr.mxu0 0.0
    %2934 = vmatpush2.msra.mxu0 0.0
    %2935 = vmatprep.subr.mxu0 0.0
    %2936 = vmatpush2.msra.mxu0 0.0
    %2937 = vmatprep.subr.mxu0 0.0
    %2938 = vmatpush2.msra.mxu0 0.0
    %2939 = vmatprep.subr.mxu0 0.0
    %2940 = vmatpush2.msra.mxu0 0.0
    %2941 = vmatprep.subr.mxu0 0.0
    %2942 = vmatpush2.msra.mxu0 0.0
    %2943 = vmatprep.subr.mxu0 0.0
    %2944 = vmatpush2.msra.mxu0 0.0
    %2945 = vmatprep.subr.mxu0 0.0
    %2946 = vmatpush2.msra.mxu0 0.0
    %2947 = vmatprep.subr.mxu0 0.0
    %2948 = vmatpush2.msra.mxu0 0.0
    %2949 = vmatprep.subr.mxu0 0.0
    %2950 = vmatpush2.msra.mxu0 0.0
    %2951 = vmatprep.subr.mxu0 0.0
    %2952 = vmatpush2.msra.mxu0 0.0
    %2953 = vmatprep.subr.mxu0 0.0
    %2954 = vmatpush2.msra.mxu0 0.0
    %2955 = vmatprep.mubr.f32.mxu0 0.0
    %2956 = vmatmul.mubr.f32.gmra.mxu0 %v2886
    %v2957 = vpop.f32.mrf.mxu0
    %v2958 = vadd.f32 0.0, %v2957
    %v2959 = vpop.f32.mrf.mxu0
    %2960 = vmatprep.mubr.f32.mxu0 0.0
    %2961 = vmatmul.mubr.f32.gmra.mxu0 %v2889
    %v2962 = vpop.f32.mrf.mxu0
    %v2963 = vadd.f32 0.0, %v2962
    %v2964 = vpop.f32.mrf.mxu0
    %2965 = vdwg.mxu0
    %v2967 = vsel %vm1722, %v2065, 0
    %v2970 = vsel %vm1722, %v2066, 0
    %2972 = vmatprep.subr.mxu0 0.0
    %2973 = vmatpush1.msra.mxu0 0.0
    %2974 = vmatprep.subr.mxu0 0.0
    %2975 = vmatpush1.msra.mxu0 0.0
    %2976 = vmatprep.subr.mxu0 0.0
    %2977 = vmatpush1.msra.mxu0 0.0
    %2978 = vmatprep.subr.mxu0 0.0
    %2979 = vmatpush1.msra.mxu0 0.0
    %2980 = vmatprep.subr.mxu0 0.0
    %2981 = vmatpush1.msra.mxu0 0.0
    %2982 = vmatprep.subr.mxu0 0.0
    %2983 = vmatpush1.msra.mxu0 0.0
    %2984 = vmatprep.subr.mxu0 0.0
    %2985 = vmatpush1.msra.mxu0 0.0
    %2986 = vmatprep.subr.mxu0 0.0
    %2987 = vmatpush1.msra.mxu0 0.0
    %2988 = vmatprep.subr.mxu0 0.0
    %2989 = vmatpush1.msra.mxu0 0.0
    %2990 = vmatprep.subr.mxu0 0.0
    %2991 = vmatpush1.msra.mxu0 0.0
    %2992 = vmatprep.subr.mxu0 0.0
    %2993 = vmatpush1.msra.mxu0 0.0
    %2994 = vmatprep.subr.mxu0 0.0
    %2995 = vmatpush1.msra.mxu0 0.0
    %2996 = vmatprep.subr.mxu0 0.0
    %2997 = vmatpush1.msra.mxu0 0.0
    %2998 = vmatprep.subr.mxu0 0.0
    %2999 = vmatpush1.msra.mxu0 0.0
    %3000 = vmatprep.subr.mxu0 0.0
    %3001 = vmatpush1.msra.mxu0 %v300
    %3002 = vmatprep.subr.mxu0 0.0
    %3003 = vmatpush1.msra.mxu0 %v298
    %3004 = vmatprep.subr.mxu0 0.0
    %3005 = vmatpush2.msra.mxu0 0.0
    %3006 = vmatprep.subr.mxu0 0.0
    %3007 = vmatpush2.msra.mxu0 0.0
    %3008 = vmatprep.subr.mxu0 0.0
    %3009 = vmatpush2.msra.mxu0 0.0
    %3010 = vmatprep.subr.mxu0 0.0
    %3011 = vmatpush2.msra.mxu0 0.0
    %3012 = vmatprep.subr.mxu0 0.0
    %3013 = vmatpush2.msra.mxu0 0.0
    %3014 = vmatprep.subr.mxu0 0.0
    %3015 = vmatpush2.msra.mxu0 0.0
    %3016 = vmatprep.subr.mxu0 0.0
    %3017 = vmatpush2.msra.mxu0 0.0
    %3018 = vmatprep.subr.mxu0 0.0
    %3019 = vmatpush2.msra.mxu0 0.0
    %3020 = vmatprep.subr.mxu0 0.0
    %3021 = vmatpush2.msra.mxu0 0.0
    %3022 = vmatprep.subr.mxu0 0.0
    %3023 = vmatpush2.msra.mxu0 0.0
    %3024 = vmatprep.subr.mxu0 0.0
    %3025 = vmatpush2.msra.mxu0 0.0
    %3026 = vmatprep.subr.mxu0 0.0
    %3027 = vmatpush2.msra.mxu0 0.0
    %3028 = vmatprep.subr.mxu0 0.0
    %3029 = vmatpush2.msra.mxu0 0.0
    %3030 = vmatprep.subr.mxu0 0.0
    %3031 = vmatpush2.msra.mxu0 0.0
    %3032 = vmatprep.subr.mxu0 0.0
    %3033 = vmatpush2.msra.mxu0 0.0
    %3034 = vmatprep.subr.mxu0 0.0
    %3035 = vmatpush2.msra.mxu0 0.0
    %3036 = vmatprep.mubr.f32.mxu0 0.0
    %3037 = vmatmul.mubr.f32.gmra.mxu0 %v2967
    %v3038 = vpop.f32.mrf.mxu0
    %v3039 = vadd.f32 0.0, %v3038
    %v3040 = vpop.f32.mrf.mxu0
    %3041 = vmatprep.mubr.f32.mxu0 0.0
    %3042 = vmatmul.mubr.f32.gmra.mxu0 %v2970
    %v3043 = vpop.f32.mrf.mxu0
    %v3044 = vadd.f32 0.0, %v3043
    %v3045 = vpop.f32.mrf.mxu0
    %3046 = vdwg.mxu0
    %v3048 = vsel %vm1722, %v2067, 0
    %v3051 = vsel %vm1722, %v2068, 0
    %3053 = vmatprep.subr.mxu0 0.0
    %3054 = vmatpush1.msra.mxu0 0.0
    %3055 = vmatprep.subr.mxu0 0.0
    %3056 = vmatpush1.msra.mxu0 0.0
    %3057 = vmatprep.subr.mxu0 0.0
    %3058 = vmatpush1.msra.mxu0 0.0
    %3059 = vmatprep.subr.mxu0 0.0
    %3060 = vmatpush1.msra.mxu0 0.0
    %3061 = vmatprep.subr.mxu0 0.0
    %3062 = vmatpush1.msra.mxu0 0.0
    %3063 = vmatprep.subr.mxu0 0.0
    %3064 = vmatpush1.msra.mxu0 0.0
    %3065 = vmatprep.subr.mxu0 0.0
    %3066 = vmatpush1.msra.mxu0 0.0
    %3067 = vmatprep.subr.mxu0 0.0
    %3068 = vmatpush1.msra.mxu0 0.0
    %3069 = vmatprep.subr.mxu0 0.0
    %3070 = vmatpush1.msra.mxu0 0.0
    %3071 = vmatprep.subr.mxu0 0.0
    %3072 = vmatpush1.msra.mxu0 0.0
    %3073 = vmatprep.subr.mxu0 0.0
    %3074 = vmatpush1.msra.mxu0 0.0
    %3075 = vmatprep.subr.mxu0 0.0
    %3076 = vmatpush1.msra.mxu0 0.0
    %3077 = vmatprep.subr.mxu0 0.0
    %3078 = vmatpush1.msra.mxu0 0.0
    %3079 = vmatprep.subr.mxu0 0.0
    %3080 = vmatpush1.msra.mxu0 0.0
    %3081 = vmatprep.subr.mxu0 0.0
    %3082 = vmatpush1.msra.mxu0 %v308
    %3083 = vmatprep.subr.mxu0 0.0
    %3084 = vmatpush1.msra.mxu0 %v306
    %3085 = vmatprep.subr.mxu0 0.0
    %3086 = vmatpush2.msra.mxu0 0.0
    %3087 = vmatprep.subr.mxu0 0.0
    %3088 = vmatpush2.msra.mxu0 0.0
    %3089 = vmatprep.subr.mxu0 0.0
    %3090 = vmatpush2.msra.mxu0 0.0
    %3091 = vmatprep.subr.mxu0 0.0
    %3092 = vmatpush2.msra.mxu0 0.0
    %3093 = vmatprep.subr.mxu0 0.0
    %3094 = vmatpush2.msra.mxu0 0.0
    %3095 = vmatprep.subr.mxu0 0.0
    %3096 = vmatpush2.msra.mxu0 0.0
    %3097 = vmatprep.subr.mxu0 0.0
    %3098 = vmatpush2.msra.mxu0 0.0
    %3099 = vmatprep.subr.mxu0 0.0
    %3100 = vmatpush2.msra.mxu0 0.0
    %3101 = vmatprep.subr.mxu0 0.0
    %3102 = vmatpush2.msra.mxu0 0.0
    %3103 = vmatprep.subr.mxu0 0.0
    %3104 = vmatpush2.msra.mxu0 0.0
    %3105 = vmatprep.subr.mxu0 0.0
    %3106 = vmatpush2.msra.mxu0 0.0
    %3107 = vmatprep.subr.mxu0 0.0
    %3108 = vmatpush2.msra.mxu0 0.0
    %3109 = vmatprep.subr.mxu0 0.0
    %3110 = vmatpush2.msra.mxu0 0.0
    %3111 = vmatprep.subr.mxu0 0.0
    %3112 = vmatpush2.msra.mxu0 0.0
    %3113 = vmatprep.subr.mxu0 0.0
    %3114 = vmatpush2.msra.mxu0 0.0
    %3115 = vmatprep.subr.mxu0 0.0
    %3116 = vmatpush2.msra.mxu0 0.0
    %3117 = vmatprep.mubr.f32.mxu0 0.0
    %3118 = vmatmul.mubr.f32.gmra.mxu0 %v3048
    %v3119 = vpop.f32.mrf.mxu0
    %v3120 = vadd.f32 0.0, %v3119
    %v3121 = vpop.f32.mrf.mxu0
    %3122 = vmatprep.mubr.f32.mxu0 0.0
    %3123 = vmatmul.mubr.f32.gmra.mxu0 %v3051
    %v3124 = vpop.f32.mrf.mxu0
    %v3125 = vadd.f32 0.0, %v3124
    %v3126 = vpop.f32.mrf.mxu0
    %3127 = vdwg.mxu0
    %v3129 = vsel %vm1722, %v2069, 0
    %v3132 = vsel %vm1722, %v2070, 0
    %3134 = vmatprep.subr.mxu0 0.0
    %3135 = vmatpush1.msra.mxu0 0.0
    %3136 = vmatprep.subr.mxu0 0.0
    %3137 = vmatpush1.msra.mxu0 0.0
    %3138 = vmatprep.subr.mxu0 0.0
    %3139 = vmatpush1.msra.mxu0 0.0
    %3140 = vmatprep.subr.mxu0 0.0
    %3141 = vmatpush1.msra.mxu0 0.0
    %3142 = vmatprep.subr.mxu0 0.0
    %3143 = vmatpush1.msra.mxu0 0.0
    %3144 = vmatprep.subr.mxu0 0.0
    %3145 = vmatpush1.msra.mxu0 0.0
    %3146 = vmatprep.subr.mxu0 0.0
    %3147 = vmatpush1.msra.mxu0 0.0
    %3148 = vmatprep.subr.mxu0 0.0
    %3149 = vmatpush1.msra.mxu0 0.0
    %3150 = vmatprep.subr.mxu0 0.0
    %3151 = vmatpush1.msra.mxu0 0.0
    %3152 = vmatprep.subr.mxu0 0.0
    %3153 = vmatpush1.msra.mxu0 0.0
    %3154 = vmatprep.subr.mxu0 0.0
    %3155 = vmatpush1.msra.mxu0 0.0
    %3156 = vmatprep.subr.mxu0 0.0
    %3157 = vmatpush1.msra.mxu0 0.0
    %3158 = vmatprep.subr.mxu0 0.0
    %3159 = vmatpush1.msra.mxu0 0.0
    %3160 = vmatprep.subr.mxu0 0.0
    %3161 = vmatpush1.msra.mxu0 0.0
    %3162 = vmatprep.subr.mxu0 0.0
    %3163 = vmatpush1.msra.mxu0 %v312
    %3164 = vmatprep.subr.mxu0 0.0
    %3165 = vmatpush1.msra.mxu0 %v310
    %3166 = vmatprep.subr.mxu0 0.0
    %3167 = vmatpush2.msra.mxu0 0.0
    %3168 = vmatprep.subr.mxu0 0.0
    %3169 = vmatpush2.msra.mxu0 0.0
    %3170 = vmatprep.subr.mxu0 0.0
    %3171 = vmatpush2.msra.mxu0 0.0
    %3172 = vmatprep.subr.mxu0 0.0
    %3173 = vmatpush2.msra.mxu0 0.0
    %3174 = vmatprep.subr.mxu0 0.0
    %3175 = vmatpush2.msra.mxu0 0.0
    %3176 = vmatprep.subr.mxu0 0.0
    %3177 = vmatpush2.msra.mxu0 0.0
    %3178 = vmatprep.subr.mxu0 0.0
    %3179 = vmatpush2.msra.mxu0 0.0
    %3180 = vmatprep.subr.mxu0 0.0
    %3181 = vmatpush2.msra.mxu0 0.0
    %3182 = vmatprep.subr.mxu0 0.0
    %3183 = vmatpush2.msra.mxu0 0.0
    %3184 = vmatprep.subr.mxu0 0.0
    %3185 = vmatpush2.msra.mxu0 0.0
    %3186 = vmatprep.subr.mxu0 0.0
    %3187 = vmatpush2.msra.mxu0 0.0
    %3188 = vmatprep.subr.mxu0 0.0
    %3189 = vmatpush2.msra.mxu0 0.0
    %3190 = vmatprep.subr.mxu0 0.0
    %3191 = vmatpush2.msra.mxu0 0.0
    %3192 = vmatprep.subr.mxu0 0.0
    %3193 = vmatpush2.msra.mxu0 0.0
    %3194 = vmatprep.subr.mxu0 0.0
    %3195 = vmatpush2.msra.mxu0 0.0
    %3196 = vmatprep.subr.mxu0 0.0
    %3197 = vmatpush2.msra.mxu0 0.0
    %3198 = vmatprep.mubr.f32.mxu0 0.0
    %3199 = vmatmul.mubr.f32.gmra.mxu0 %v3129
    %v3200 = vpop.f32.mrf.mxu0
    %v3201 = vadd.f32 0.0, %v3200
    %v3202 = vpop.f32.mrf.mxu0
    %3203 = vmatprep.mubr.f32.mxu0 0.0
    %3204 = vmatmul.mubr.f32.gmra.mxu0 %v3132
    %v3205 = vpop.f32.mrf.mxu0
    %v3206 = vadd.f32 0.0, %v3205
    %v3207 = vpop.f32.mrf.mxu0
    %3208 = vdwg.mxu0
    %v3210 = vsel %vm1722, %v2071, 0
    %v3213 = vsel %vm1722, %v2072, 0
    %3215 = vmatprep.subr.mxu0 0.0
    %3216 = vmatpush1.msra.mxu0 0.0
    %3217 = vmatprep.subr.mxu0 0.0
    %3218 = vmatpush1.msra.mxu0 0.0
    %3219 = vmatprep.subr.mxu0 0.0
    %3220 = vmatpush1.msra.mxu0 0.0
    %3221 = vmatprep.subr.mxu0 0.0
    %3222 = vmatpush1.msra.mxu0 0.0
    %3223 = vmatprep.subr.mxu0 0.0
    %3224 = vmatpush1.msra.mxu0 0.0
    %3225 = vmatprep.subr.mxu0 0.0
    %3226 = vmatpush1.msra.mxu0 0.0
    %3227 = vmatprep.subr.mxu0 0.0
    %3228 = vmatpush1.msra.mxu0 0.0
    %3229 = vmatprep.subr.mxu0 0.0
    %3230 = vmatpush1.msra.mxu0 0.0
    %3231 = vmatprep.subr.mxu0 0.0
    %3232 = vmatpush1.msra.mxu0 0.0
    %3233 = vmatprep.subr.mxu0 0.0
    %3234 = vmatpush1.msra.mxu0 0.0
    %3235 = vmatprep.subr.mxu0 0.0
    %3236 = vmatpush1.msra.mxu0 0.0
    %3237 = vmatprep.subr.mxu0 0.0
    %3238 = vmatpush1.msra.mxu0 0.0
    %3239 = vmatprep.subr.mxu0 0.0
    %3240 = vmatpush1.msra.mxu0 0.0
    %3241 = vmatprep.subr.mxu0 0.0
    %3242 = vmatpush1.msra.mxu0 0.0
    %3243 = vmatprep.subr.mxu0 0.0
    %3244 = vmatpush1.msra.mxu0 %v320
    %3245 = vmatprep.subr.mxu0 0.0
    %3246 = vmatpush1.msra.mxu0 %v318
    %3247 = vmatprep.subr.mxu0 0.0
    %3248 = vmatpush2.msra.mxu0 0.0
    %3249 = vmatprep.subr.mxu0 0.0
    %3250 = vmatpush2.msra.mxu0 0.0
    %3251 = vmatprep.subr.mxu0 0.0
    %3252 = vmatpush2.msra.mxu0 0.0
    %3253 = vmatprep.subr.mxu0 0.0
    %3254 = vmatpush2.msra.mxu0 0.0
    %3255 = vmatprep.subr.mxu0 0.0
    %3256 = vmatpush2.msra.mxu0 0.0
    %3257 = vmatprep.subr.mxu0 0.0
    %3258 = vmatpush2.msra.mxu0 0.0
    %3259 = vmatprep.subr.mxu0 0.0
    %3260 = vmatpush2.msra.mxu0 0.0
    %3261 = vmatprep.subr.mxu0 0.0
    %3262 = vmatpush2.msra.mxu0 0.0
    %3263 = vmatprep.subr.mxu0 0.0
    %3264 = vmatpush2.msra.mxu0 0.0
    %3265 = vmatprep.subr.mxu0 0.0
    %3266 = vmatpush2.msra.mxu0 0.0
    %3267 = vmatprep.subr.mxu0 0.0
    %3268 = vmatpush2.msra.mxu0 0.0
    %3269 = vmatprep.subr.mxu0 0.0
    %3270 = vmatpush2.msra.mxu0 0.0
    %3271 = vmatprep.subr.mxu0 0.0
    %3272 = vmatpush2.msra.mxu0 0.0
    %3273 = vmatprep.subr.mxu0 0.0
    %3274 = vmatpush2.msra.mxu0 0.0
    %3275 = vmatprep.subr.mxu0 0.0
    %3276 = vmatpush2.msra.mxu0 0.0
    %3277 = vmatprep.subr.mxu0 0.0
    %3278 = vmatpush2.msra.mxu0 0.0
    %3279 = vmatprep.mubr.f32.mxu0 0.0
    %3280 = vmatmul.mubr.f32.gmra.mxu0 %v3210
    %v3281 = vpop.f32.mrf.mxu0
    %v3282 = vadd.f32 0.0, %v3281
    %v3283 = vpop.f32.mrf.mxu0
    %3284 = vmatprep.mubr.f32.mxu0 0.0
    %3285 = vmatmul.mubr.f32.gmra.mxu0 %v3213
    %v3286 = vpop.f32.mrf.mxu0
    %v3287 = vadd.f32 0.0, %v3286
    %v3288 = vpop.f32.mrf.mxu0
    %3289 = vdwg.mxu0
    %v3291 = vsel %vm1722, %v2073, 0
    %v3294 = vsel %vm1722, %v2074, 0
    %3296 = vmatprep.subr.mxu0 0.0
    %3297 = vmatpush1.msra.mxu0 0.0
    %3298 = vmatprep.subr.mxu0 0.0
    %3299 = vmatpush1.msra.mxu0 0.0
    %3300 = vmatprep.subr.mxu0 0.0
    %3301 = vmatpush1.msra.mxu0 0.0
    %3302 = vmatprep.subr.mxu0 0.0
    %3303 = vmatpush1.msra.mxu0 0.0
    %3304 = vmatprep.subr.mxu0 0.0
    %3305 = vmatpush1.msra.mxu0 0.0
    %3306 = vmatprep.subr.mxu0 0.0
    %3307 = vmatpush1.msra.mxu0 0.0
    %3308 = vmatprep.subr.mxu0 0.0
    %3309 = vmatpush1.msra.mxu0 0.0
    %3310 = vmatprep.subr.mxu0 0.0
    %3311 = vmatpush1.msra.mxu0 0.0
    %3312 = vmatprep.subr.mxu0 0.0
    %3313 = vmatpush1.msra.mxu0 0.0
    %3314 = vmatprep.subr.mxu0 0.0
    %3315 = vmatpush1.msra.mxu0 0.0
    %3316 = vmatprep.subr.mxu0 0.0
    %3317 = vmatpush1.msra.mxu0 0.0
    %3318 = vmatprep.subr.mxu0 0.0
    %3319 = vmatpush1.msra.mxu0 0.0
    %3320 = vmatprep.subr.mxu0 0.0
    %3321 = vmatpush1.msra.mxu0 0.0
    %3322 = vmatprep.subr.mxu0 0.0
    %3323 = vmatpush1.msra.mxu0 0.0
    %3324 = vmatprep.subr.mxu0 0.0
    %3325 = vmatpush1.msra.mxu0 %v324
    %3326 = vmatprep.subr.mxu0 0.0
    %3327 = vmatpush1.msra.mxu0 %v322
    %3328 = vmatprep.subr.mxu0 0.0
    %3329 = vmatpush2.msra.mxu0 0.0
    %3330 = vmatprep.subr.mxu0 0.0
    %3331 = vmatpush2.msra.mxu0 0.0
    %3332 = vmatprep.subr.mxu0 0.0
    %3333 = vmatpush2.msra.mxu0 0.0
    %3334 = vmatprep.subr.mxu0 0.0
    %3335 = vmatpush2.msra.mxu0 0.0
    %3336 = vmatprep.subr.mxu0 0.0
    %3337 = vmatpush2.msra.mxu0 0.0
    %3338 = vmatprep.subr.mxu0 0.0
    %3339 = vmatpush2.msra.mxu0 0.0
    %3340 = vmatprep.subr.mxu0 0.0
    %3341 = vmatpush2.msra.mxu0 0.0
    %3342 = vmatprep.subr.mxu0 0.0
    %3343 = vmatpush2.msra.mxu0 0.0
    %3344 = vmatprep.subr.mxu0 0.0
    %3345 = vmatpush2.msra.mxu0 0.0
    %3346 = vmatprep.subr.mxu0 0.0
    %3347 = vmatpush2.msra.mxu0 0.0
    %3348 = vmatprep.subr.mxu0 0.0
    %3349 = vmatpush2.msra.mxu0 0.0
    %3350 = vmatprep.subr.mxu0 0.0
    %3351 = vmatpush2.msra.mxu0 0.0
    %3352 = vmatprep.subr.mxu0 0.0
    %3353 = vmatpush2.msra.mxu0 0.0
    %3354 = vmatprep.subr.mxu0 0.0
    %3355 = vmatpush2.msra.mxu0 0.0
    %3356 = vmatprep.subr.mxu0 0.0
    %3357 = vmatpush2.msra.mxu0 0.0
    %3358 = vmatprep.subr.mxu0 0.0
    %3359 = vmatpush2.msra.mxu0 0.0
    %3360 = vmatprep.mubr.f32.mxu0 0.0
    %3361 = vmatmul.mubr.f32.gmra.mxu0 %v3291
    %v3362 = vpop.f32.mrf.mxu0
    %v3363 = vadd.f32 0.0, %v3362
    %v3364 = vpop.f32.mrf.mxu0
    %3365 = vmatprep.mubr.f32.mxu0 0.0
    %3366 = vmatmul.mubr.f32.gmra.mxu0 %v3294
    %v3367 = vpop.f32.mrf.mxu0
    %v3368 = vadd.f32 0.0, %v3367
    %v3369 = vpop.f32.mrf.mxu0
    %3370 = vdwg.mxu0
    %3375 = vrot.lane.b32.xlu0 %v2310, 8
    %v3376 = vpop.permute.xlu0 %3375
    %3377 = vrot.lane.b32.xlu0 %v2315, 8
    %v3378 = vpop.permute.xlu0 %3377
    %3379 = vrot.lane.b32.xlu0 %v2391, 8
    %v3380 = vpop.permute.xlu0 %3379
    %3381 = vrot.lane.b32.xlu0 %v2396, 8
    %v3382 = vpop.permute.xlu0 %3381
    %3391 = vrot.lane.b32.xlu0 %v2472, 16
    %v3392 = vpop.permute.xlu0 %3391
    %3393 = vrot.lane.b32.xlu0 %v2477, 16
    %v3394 = vpop.permute.xlu0 %3393
    %3395 = vrot.lane.b32.xlu0 %v2553, 16
    %v3396 = vpop.permute.xlu0 %3395
    %3397 = vrot.lane.b32.xlu0 %v2558, 16
    %v3398 = vpop.permute.xlu0 %3397
    %3407 = vrot.lane.b32.xlu0 %v2634, 24
    %v3408 = vpop.permute.xlu0 %3407
    %3409 = vrot.lane.b32.xlu0 %v2639, 24
    %v3410 = vpop.permute.xlu0 %3409
    %3411 = vrot.lane.b32.xlu0 %v2715, 24
    %v3412 = vpop.permute.xlu0 %3411
    %3413 = vrot.lane.b32.xlu0 %v2720, 24
    %v3414 = vpop.permute.xlu0 %3413
    %3423 = vrot.lane.b32.xlu0 %v2796, 32
    %v3424 = vpop.permute.xlu0 %3423
    %3425 = vrot.lane.b32.xlu0 %v2801, 32
    %v3426 = vpop.permute.xlu0 %3425
    %3427 = vrot.lane.b32.xlu0 %v2877, 32
    %v3428 = vpop.permute.xlu0 %3427
    %3429 = vrot.lane.b32.xlu0 %v2882, 32
    %v3430 = vpop.permute.xlu0 %3429
    %3439 = vrot.lane.b32.xlu0 %v2958, 40
    %v3440 = vpop.permute.xlu0 %3439
    %3441 = vrot.lane.b32.xlu0 %v2963, 40
    %v3442 = vpop.permute.xlu0 %3441
    %3443 = vrot.lane.b32.xlu0 %v3039, 40
    %v3444 = vpop.permute.xlu0 %3443
    %3445 = vrot.lane.b32.xlu0 %v3044, 40
    %v3446 = vpop.permute.xlu0 %3445
    %3455 = vrot.lane.b32.xlu0 %v3120, 48
    %v3456 = vpop.permute.xlu0 %3455
    %3457 = vrot.lane.b32.xlu0 %v3125, 48
    %v3458 = vpop.permute.xlu0 %3457
    %3459 = vrot.lane.b32.xlu0 %v3201, 48
    %v3460 = vpop.permute.xlu0 %3459
    %3461 = vrot.lane.b32.xlu0 %v3206, 48
    %v3462 = vpop.permute.xlu0 %3461
    %3471 = vrot.lane.b32.xlu0 %v3282, 56
    %v3472 = vpop.permute.xlu0 %3471
    %3473 = vrot.lane.b32.xlu0 %v3287, 56
    %v3474 = vpop.permute.xlu0 %3473
    %3475 = vrot.lane.b32.xlu0 %v3363, 56
    %v3476 = vpop.permute.xlu0 %3475
    %3477 = vrot.lane.b32.xlu0 %v3368, 56
    %v3478 = vpop.permute.xlu0 %3477
    %v3483 = vsel %vm333, %v2148, %v3376
    %v3484 = vsel %vm333, %v2153, %v3378
    %v3485 = vsel %vm333, %v2229, %v3380
    %v3486 = vsel %vm333, %v2234, %v3382
    %v3487 = vsel %vm1722, %v3483, %v3392
    %v3488 = vsel %vm1722, %v3484, %v3394
    %v3489 = vsel %vm1722, %v3485, %v3396
    %v3490 = vsel %vm1722, %v3486, %v3398
    %vm3491 = vcmask 195584
    %v3492 = vsel %vm3491, %v3487, %v3408
    %v3493 = vsel %vm3491, %v3488, %v3410
    %v3494 = vsel %vm3491, %v3489, %v3412
    %v3495 = vsel %vm3491, %v3490, %v3414
    %vm3496 = vcmask 261120
    %v3497 = vsel %vm3496, %v3492, %v3424
    %v3498 = vsel %vm3496, %v3493, %v3426
    %v3499 = vsel %vm3496, %v3494, %v3428
    %v3500 = vsel %vm3496, %v3495, %v3430
    %vm3501 = vcmask 326656
    %v3502 = vsel %vm3501, %v3497, %v3440
    %v3503 = vsel %vm3501, %v3498, %v3442
    %v3504 = vsel %vm3501, %v3499, %v3444
    %v3505 = vsel %vm3501, %v3500, %v3446
    %vm3506 = vcmask 392192
    %v3507 = vsel %vm3506, %v3502, %v3456
    %v3508 = vsel %vm3506, %v3503, %v3458
    %v3509 = vsel %vm3506, %v3504, %v3460
    %v3510 = vsel %vm3506, %v3505, %v3462
    %vm3511 = vcmask 457728
    %v3512 = vsel %vm3511, %v3507, %v3472
    %v3513 = vsel %vm3511, %v3508, %v3474
    %v3514 = vsel %vm3511, %v3509, %v3476
    %v3515 = vsel %vm3511, %v3510, %v3478
    %v3516 = vld [vmem:[#allocation7] sm:$0xff]
    %v3517 = vld [vmem:[#allocation7 + $0x8] sm:$0xff]
    %v3518 = vld [vmem:[#allocation7 + $0x10] sm:$0xff]
    %v3519 = vld [vmem:[#allocation7 + $0x18] sm:$0xff]
    %v3520 = vld [vmem:[#allocation7 + $0x20] sm:$0xff]
    %v3521 = vld [vmem:[#allocation7 + $0x28] sm:$0xff]
    %v3522 = vld [vmem:[#allocation7 + $0x30] sm:$0xff]
    %v3523 = vld [vmem:[#allocation7 + $0x38] sm:$0xff]
    %v3524 = vld [vmem:[%s3] sm:$0x1]
    %v3526 = vlaneseq
    %v3527 = vshrl.u32 %v3526, 7
    %v3528 = vsub.s32 0, %v3527
    %v3529 = vrot.slane %v3524, %v3528
    %v3532 = vsel %vm79, %v3512, 0
    %v3535 = vsel %vm79, %v3513, 0
    %v3538 = vsel %vm79, %v3514, 0
    %v3541 = vsel %vm79, %v3515, 0
    %3543 = vmatprep.subr.mxu0 0.0
    %3544 = vmatpush1.msra.mxu0 0.0
    %3545 = vmatprep.subr.mxu0 0.0
    %3546 = vmatpush1.msra.mxu0 0.0
    %3547 = vmatprep.subr.mxu0 0.0
    %3548 = vmatpush1.msra.mxu0 0.0
    %3549 = vmatprep.subr.mxu0 0.0
    %3550 = vmatpush1.msra.mxu0 0.0
    %3551 = vmatprep.subr.mxu0 0.0
    %3552 = vmatpush1.msra.mxu0 0.0
    %3553 = vmatprep.subr.mxu0 0.0
    %3554 = vmatpush1.msra.mxu0 0.0
    %3555 = vmatprep.subr.mxu0 0.0
    %3556 = vmatpush1.msra.mxu0 0.0
    %3557 = vmatprep.subr.mxu0 0.0
    %3558 = vmatpush1.msra.mxu0 0.0
    %3559 = vmatprep.subr.mxu0 0.0
    %3560 = vmatpush1.msra.mxu0 %v3523
    %3561 = vmatprep.subr.mxu0 0.0
    %3562 = vmatpush1.msra.mxu0 %v3522
    %3563 = vmatprep.subr.mxu0 0.0
    %3564 = vmatpush1.msra.mxu0 %v3521
    %3565 = vmatprep.subr.mxu0 0.0
    %3566 = vmatpush1.msra.mxu0 %v3520
    %3567 = vmatprep.subr.mxu0 0.0
    %3568 = vmatpush1.msra.mxu0 %v3519
    %3569 = vmatprep.subr.mxu0 0.0
    %3570 = vmatpush1.msra.mxu0 %v3518
    %3571 = vmatprep.subr.mxu0 0.0
    %3572 = vmatpush1.msra.mxu0 %v3517
    %3573 = vmatprep.subr.mxu0 0.0
    %3574 = vmatpush1.msra.mxu0 %v3516
    %3575 = vmatprep.subr.mxu0 0.0
    %3576 = vmatpush2.msra.mxu0 0.0
    %3577 = vmatprep.subr.mxu0 0.0
    %3578 = vmatpush2.msra.mxu0 0.0
    %3579 = vmatprep.subr.mxu0 0.0
    %3580 = vmatpush2.msra.mxu0 0.0
    %3581 = vmatprep.subr.mxu0 0.0
    %3582 = vmatpush2.msra.mxu0 0.0
    %3583 = vmatprep.subr.mxu0 0.0
    %3584 = vmatpush2.msra.mxu0 0.0
    %3585 = vmatprep.subr.mxu0 0.0
    %3586 = vmatpush2.msra.mxu0 0.0
    %3587 = vmatprep.subr.mxu0 0.0
    %3588 = vmatpush2.msra.mxu0 0.0
    %3589 = vmatprep.subr.mxu0 0.0
    %3590 = vmatpush2.msra.mxu0 0.0
    %3591 = vmatprep.subr.mxu0 0.0
    %3592 = vmatpush2.msra.mxu0 0.0
    %3593 = vmatprep.subr.mxu0 0.0
    %3594 = vmatpush2.msra.mxu0 0.0
    %3595 = vmatprep.subr.mxu0 0.0
    %3596 = vmatpush2.msra.mxu0 0.0
    %3597 = vmatprep.subr.mxu0 0.0
    %3598 = vmatpush2.msra.mxu0 0.0
    %3599 = vmatprep.subr.mxu0 0.0
    %3600 = vmatpush2.msra.mxu0 0.0
    %3601 = vmatprep.subr.mxu0 0.0
    %3602 = vmatpush2.msra.mxu0 0.0
    %3603 = vmatprep.subr.mxu0 0.0
    %3604 = vmatpush2.msra.mxu0 0.0
    %3605 = vmatprep.subr.mxu0 0.0
    %3606 = vmatpush2.msra.mxu0 0.0
    %3607 = vmatprep.mubr.f32.mxu0 0.0
    %3608 = vmatmul.mubr.f32.gmra.mxu0 %v3532
    %v3609 = vpop.f32.mrf.mxu0
    %v3610 = vadd.f32 %v3529, %v3609
    %v3611 = vpop.f32.mrf.mxu0
    %3612 = vmatprep.mubr.f32.mxu0 0.0
    %3613 = vmatmul.mubr.f32.gmra.mxu0 %v3535
    %v3614 = vpop.f32.mrf.mxu0
    %v3615 = vadd.f32 %v3529, %v3614
    %v3616 = vpop.f32.mrf.mxu0
    %3617 = vmatprep.mubr.f32.mxu0 0.0
    %3618 = vmatmul.mubr.f32.gmra.mxu0 %v3538
    %v3619 = vpop.f32.mrf.mxu0
    %v3620 = vadd.f32 %v3529, %v3619
    %v3621 = vpop.f32.mrf.mxu0
    %3622 = vmatprep.mubr.f32.mxu0 0.0
    %3623 = vmatmul.mubr.f32.gmra.mxu0 %v3541
    %v3624 = vpop.f32.mrf.mxu0
    %v3625 = vadd.f32 %v3529, %v3624
    %v3626 = vpop.f32.mrf.mxu0
    %3627 = vdwg.mxu0
    %3628 = vst.msk [vmem:[#allocation8] sm:$0xff] %vm79, %v3610
    %3629 = vst.msk [vmem:[#allocation8 + $0x8] sm:$0xff] %vm79, %v3615
    %3630 = vst.msk [vmem:[#allocation8 + $0x10] sm:$0xff] %vm79, %v3620
    %3631 = vst.msk [vmem:[#allocation8 + $0x18] sm:$0xff] %vm79, %v3625
    // Predicated region
    $region30: #{tpu_custom_call.1} parent=1 // pred_check
      _
    $region31: #{tpu_custom_call.1} parent=1 // pred_check_branch
      %3633 = sbr.rel (0) target = $region33
    $region32: #{tpu_custom_call.1} parent=1 // pred_region
      %s3635 = ssub.s32 512, 512
      %3636 = vsyncadd [#allocation4], %s3635
      %s3637 = sshll.u32 [#allocation8], 4
      %s3638 = int_to_ptr.vmem [resolvable:$true] %s3637
      %3643 = dma.vmem_to_hbm [thread:$0]  %s3638, 512, %s4, [#allocation4], 128, 128, 8
    $region33: #{tpu_custom_call.1} parent=1 // pred_fallthru
      _
    // Predicated region
    $region34: #{tpu_custom_call.1} parent=1 // pred_check
      _
    $region35: #{tpu_custom_call.1} parent=1 // pred_check_branch
      %3645 = sbr.rel (0) target = $region37
    $region36: #{tpu_custom_call.1} parent=1 // pred_region
      %3646 = dma.done [#allocation4], 512
    $region37: #{tpu_custom_call.1} parent=1 // pred_fallthru
      _
    %3647 = vsyncpa [#allocation3], 1
    %3648 = vsyncpa [#allocation6], 1
    %3649 = vsyncpa [#allocation4], 1

</llo_original>
